<compile_context>
chip_gen: v6e
topology: v6e:2x2x1
jax: 0.10.0
libtpu: 0.0.40
codegen_flags: <defaults>
</compile_context>

<pallas_src>
import functools
import re

import jax
import jax.numpy as jnp
import numpy as np
from jax import lax
from jax.experimental import pallas as pl
from jax.experimental.pallas import tpu as pltpu

_NEG = -1e30  # large-negative additive mask bias (safer than -inf for reduced precision)


# ----------------------------------------------------------------------------
# helpers
# ----------------------------------------------------------------------------
def _round_up(n, m):
    return ((n + m - 1) // m) * m


def _pad_to(x, target_shape, fill=0.0):
    pads = [(0, t - s) for s, t in zip(x.shape, target_shape)]
    if all(p == (0, 0) for p in pads):
        return x
    return jnp.pad(x, pads, constant_values=fill)


def _device_kind():
    try:
        return str(jax.devices()[0].device_kind)
    except Exception:
        return ""


def _tpu_info():
    try:
        return pltpu.get_tpu_info()
    except Exception:
        return None


def _tpu_generation():
    """Best-effort TPU generation number (4, 5, 6, 7, ...); 0 if unknown."""
    candidates = []
    info = _tpu_info()
    if info is not None:
        for attr in ("chip_version", "version", "chip", "generation"):
            v = getattr(info, attr, None)
            if v is not None:
                candidates.append(str(v))
    candidates.append(_device_kind())
    for s in candidates:
        m = re.search(r"(\d+)", s)
        if m:
            return int(m.group(1))
    return 0


def _auto_compute_dtype():
    """bf16 tanh path on generations with bf16 VPU/EUP (v6e, v7x, ...); f32 otherwise."""
    return jnp.bfloat16 if _tpu_generation() >= 6 else jnp.float32


def _vmem_budget_bytes():
    """~75% of per-TensorCore VMEM; prefers the Pallas hardware query."""
    cap = None
    info = _tpu_info()
    if info is not None:
        for attr in ("vmem_capacity_bytes", "vmem_bytes", "vmem_size_bytes"):
            v = getattr(info, attr, None)
            if v:
                cap = int(v)
                break
    # Guard against missing info / per-chip (2-TC) reporting: cap at the known
    # per-core ceiling for the detected generation (64 MiB on gen>=7, else 128).
    gen_cap = (64 if _tpu_generation() >= 7 else 128) * 1024 * 1024
    cap = gen_cap if cap is None else min(cap, gen_cap)
    return (3 * cap) // 4


def _choose_tiling(T, Qp, Hp, Ep, DEp, compute_bytes, stream_bytes, budget):
    """chunk = rows of the live tanh slab; t_tile = rows per grid step (DMA tile)."""
    # Chunk: largest of (64, 32, 16, 8) whose live slab (~2 temporaries) fits in
    # ~1/6 of the VMEM budget; bounded by the (8-padded) problem size.
    chunk = 8
    for cand in (64, 32, 16, 8):
        if 2 * cand * Qp * Hp * compute_bytes <= budget // 6:
            chunk = cand
            break
    chunk = min(chunk, _round_up(T, 8))

    def footprint(tt):
        d_buf = 2 * tt * DEp * stream_bytes            # double-buffered decoder tile
        o_buf = 2 * tt * Qp * 4                        # double-buffered output tile
        q_buf = 2 * Qp * Ep * stream_bytes             # query tile (per batch element)
        w_buf = 2 * ((Ep + DEp) * Hp * stream_bytes    # W1_input, W1_h
                     + 2 * Hp * 4 + Hp * compute_bytes + Qp * 4)  # biases, w2, mask bias
        live = 2 * chunk * Qp * Hp * compute_bytes     # tanh slab + temporaries
        live += 2 * Qp * Hp * compute_bytes            # qt (f32 matmul out + cast)
        live += chunk * Hp * 4                         # ht (f32 accumulate)
        misc = 2 * 1024 * 1024
        return d_buf + o_buf + q_buf + w_buf + live + misc

    t_tile = chunk
    for cand in (1024, 512, 256, 128, 64, 32, 16, 8):
        tt = max(chunk, (cand // chunk) * chunk)
        if footprint(tt) <= budget:
            t_tile = tt
            break
    t_tile = min(t_tile, _round_up(T, chunk))          # small problems -> fewer rows
    return chunk, t_tile


# ----------------------------------------------------------------------------
# kernel
# ----------------------------------------------------------------------------
def _pointer_net_kernel(q_ref, d_ref, bias_ref,
                        w1i_ref, b1i_ref, w1h_ref, b1h_ref, w2_ref,
                        out_ref, *, compute_dtype, chunk, n_chunks):
    # Query-side Linear, recomputed per grid step (cheap; no t==0 phase gate, no
    # persistent scratch => both grid axes can be "parallel").
    qt = jnp.dot(q_ref[...], w1i_ref[...],
                 preferred_element_type=jnp.float32) + b1i_ref[...]        # (Qp, Hp) f32
    qt = qt.astype(compute_dtype)[None, :, :]                              # (1, Qp, Hp)

    bias = bias_ref[...]                                                   # (1, Qp)  f32
    w2 = w2_ref[...][None, :, :]                                           # (1, 1, Hp)

    def _chunk(c):
        r0 = c * chunk
        if not isinstance(r0, int):
            r0 = pl.multiple_of(r0, chunk)
        # Decoder-side Linear for this chunk (MXU, f32 accumulate).
        ht = jnp.dot(d_ref[pl.ds(r0, chunk), :], w1h_ref[...],
                     preferred_element_type=jnp.float32) + b1h_ref[...]    # (chunk, Hp)
        ht = ht.astype(compute_dtype)
        # Broadcast add + tanh: the dominant (chunk, Qp, Hp) slab, in compute dtype.
        act = jnp.tanh(ht[:, None, :] + qt)                                # (chunk, Qp, Hp)
        # dense2: contract H (VPU mul + XLU lane reduce), add folded mask+bias (f32).
        scores = jnp.sum(act * w2, axis=-1).astype(jnp.float32) + bias     # (chunk, Qp)
        # Softmax over the lane-dense padded query axis, all f32.
        m = jnp.max(scores, axis=-1, keepdims=True)
        e = jnp.exp(scores - m)
        s = jnp.sum(e, axis=-1, keepdims=True)
        out_ref[pl.ds(r0, chunk), :] = (e * pl.reciprocal(s, approx=True)
                                        ).astype(out_ref.dtype)

    if n_chunks == 1:
        _chunk(0)
    else:
        def body(c, carry):
            _chunk(c)
            return carry
        # A visible loop bounds the live slab to one chunk; unroll short loops
        # for LLO scheduling visibility.
        lax.fori_loop(0, n_chunks, body, 0, unroll=n_chunks <= 4)


# ----------------------------------------------------------------------------
# wrapper
# ----------------------------------------------------------------------------
def pointer_net(query_embed, query_token_embed_mask, decoder_states, params,
                compute_dtype=None, out_dtype=jnp.float32):
    B, Q, E = query_embed.shape
    _, T, DE = decoder_states.shape
    H = params["w1_input"].shape[1]

    if compute_dtype is None:
        compute_dtype = _auto_compute_dtype()
    compute_dtype = jnp.dtype(compute_dtype)
    f32 = jnp.float32
    # Streamed operands follow the compute dtype: bf16 halves HBM traffic and
    # pipeline VMEM on bf16 chips; the f32 path streams f32 (full accuracy).
    stream_dtype = compute_dtype if compute_dtype == jnp.dtype(jnp.bfloat16) else f32

    # Pad feature / query axes to lane width (128) -> lane-dense loads & stores.
    Qp = _round_up(Q, 128)
    Hp = _round_up(H, 128)
    Ep = _round_up(E, 128)
    DEp = _round_up(DE, 128)

    budget = _vmem_budget_bytes()
    chunk, t_tile = _choose_tiling(T, Qp, Hp, Ep, DEp,
                                   compute_dtype.itemsize,
                                   jnp.dtype(stream_dtype).itemsize, budget)
    Tp = _round_up(T, t_tile)
    n_t = Tp // t_tile
    n_chunks = t_tile // chunk

    qe = _pad_to(query_embed.astype(stream_dtype), (B, Qp, Ep))
    dsts = _pad_to(decoder_states.astype(stream_dtype), (B, Tp, DEp))

    w1i = _pad_to(params["w1_input"].astype(stream_dtype), (Ep, Hp))
    b1i = _pad_to(params["b1_input"].astype(f32), (1, Hp))
    w1h = _pad_to(params["w1_h"].astype(stream_dtype), (DEp, Hp))
    b1h = _pad_to(params["b1_h"].astype(f32), (1, Hp))
    w2 = _pad_to(params["w2"].astype(f32), (1, Hp)).astype(compute_dtype)
    b2 = params["b2"].astype(f32).reshape(())

    # masked_fill_(-inf) + dense2 bias folded into one additive f32 bias; padded
    # query lanes also get the large-negative value so they contribute exactly 0.
    bias = jnp.where(query_token_embed_mask, _NEG, 0.0).astype(f32) + b2   # (B, Q)
    bias = _pad_to(bias[:, None, :], (B, 1, Qp), fill=_NEG)                # (B, 1, Qp)

    grid_spec = pltpu.PrefetchScalarGridSpec(
        num_scalar_prefetch=0,
        grid=(B, n_t),
        in_specs=[
            pl.BlockSpec((None, Qp, Ep), lambda b, t: (b, 0, 0)),          # query_embed
            pl.BlockSpec((None, t_tile, DEp), lambda b, t: (b, t, 0)),     # decoder tile
            pl.BlockSpec((None, 1, Qp), lambda b, t: (b, 0, 0)),           # folded mask+bias
            pl.BlockSpec((Ep, Hp), lambda b, t: (0, 0)),                   # W1_input^T
            pl.BlockSpec((1, Hp), lambda b, t: (0, 0)),                    # b1_input
            pl.BlockSpec((DEp, Hp), lambda b, t: (0, 0)),                  # W1_h^T
            pl.BlockSpec((1, Hp), lambda b, t: (0, 0)),                    # b1_h
            pl.BlockSpec((1, Hp), lambda b, t: (0, 0)),                    # w2 (dense2)
        ],
        out_specs=pl.BlockSpec((None, t_tile, Qp), lambda b, t: (b, t, 0)),
    )

    kernel = functools.partial(_pointer_net_kernel, compute_dtype=compute_dtype,
                               chunk=chunk, n_chunks=n_chunks)

    out = pl.pallas_call(
        kernel,
        out_shape=jax.ShapeDtypeStruct((B, Tp, Qp), jnp.dtype(out_dtype)),
        grid_spec=grid_spec,
        compiler_params=pltpu.CompilerParams(
            # No cross-step state -> both axes megacore-shardable.
            dimension_semantics=("parallel", "parallel"),
            vmem_limit_bytes=int(budget)),
    )(qe, dsts, bias, w1i, b1i, w1h, b1h, w2)

    return out[:, :T, :Q]


# ----------------------------------------------------------------------------
# params / reference
# ----------------------------------------------------------------------------
def init_params(key, enc_hidden, dec_hidden, ptr_hidden):
    """nn.Linear-style init (uniform +/- 1/sqrt(fan_in)), stored transposed (x @ W)."""
    ks = jax.random.split(key, 6)

    def lin(kw, kb, fan_in, fan_out):
        bound = 1.0 / np.sqrt(fan_in)
        w = jax.random.uniform(kw, (fan_in, fan_out), jnp.float32, -bound, bound)
        b = jax.random.uniform(kb, (1, fan_out), jnp.float32, -bound, bound)
        return w, b

    w1i, b1i = lin(ks[0], ks[1], enc_hidden, ptr_hidden)
    w1h, b1h = lin(ks[2], ks[3], dec_hidden + enc_hidden, ptr_hidden)
    w2, b2 = lin(ks[4], ks[5], ptr_hidden, 1)
    return {
        "w1_input": w1i, "b1_input": b1i,
        "w1_h": w1h, "b1_h": b1h,
        "w2": w2.T,            # (1, H)
        "b2": b2.reshape(1, 1),
    }


def reference(query_embed, query_token_embed_mask, decoder_states, params):
    qt = query_embed @ params["w1_input"] + params["b1_input"][0]            # (B, Q, H)
    ht = decoder_states @ params["w1_h"] + params["b1_h"][0]                 # (B, T, H)
    act = jnp.tanh(qt[:, None, :, :] + ht[:, :, None, :])                    # (B, T, Q, H)
    scores = jnp.sum(act * params["w2"][0][None, None, None, :], axis=-1) + params["b2"][0, 0]
    scores = jnp.where(query_token_embed_mask[:, None, :], -jnp.inf, scores)
    return jax.nn.softmax(scores, axis=-1)


# ----------------------------------------------------------------------------
# self-test
# ----------------------------------------------------------------------------
if __name__ == "__main__":
    root = jax.random.PRNGKey(0)
    k_params, k_q1, k_d1, k_q2, k_d2 = jax.random.split(root, 5)

    B, Q = 2, 8
    ENC_HIDDEN, DEC_HIDDEN, PTR_HIDDEN = 32, 32, 32
    params = init_params(k_params, ENC_HIDDEN, DEC_HIDDEN, PTR_HIDDEN)

    # mask: True == padded / masked-out query token (last 2 positions of each batch)
    pos = jnp.arange(Q)[None, :]
    mask = jnp.broadcast_to(pos >= (Q - 2), (B, Q))

    # --- case 1: tiny T (single chunk, single grid step) ----------------------
    T1 = 8
    qe1 = jax.random.normal(k_q1, (B, Q, ENC_HIDDEN), jnp.float32)
    ds1 = jax.random.normal(k_d1, (B, T1, DEC_HIDDEN + ENC_HIDDEN), jnp.float32)
    ref1 = reference(qe1, mask, ds1, params)

    out_f32 = jax.block_until_ready(
        pointer_net(qe1, mask, ds1, params, compute_dtype=jnp.float32))
    np.testing.assert_allclose(np.asarray(out_f32), np.asarray(ref1), rtol=2e-3, atol=2e-3)

    cdt = _auto_compute_dtype()
    tol = 5e-2 if jnp.dtype(cdt) == jnp.dtype(jnp.bfloat16) else 2e-3
    out_auto = jax.block_until_ready(
        pointer_net(qe1, mask, ds1, params, compute_dtype=cdt))
    np.testing.assert_allclose(np.asarray(out_auto), np.asarray(ref1), rtol=tol, atol=tol)

    # --- case 2: larger T (exercises the in-kernel chunk loop + T padding) ----
    T2 = 200
    qe2 = jax.random.normal(k_q2, (B, Q, ENC_HIDDEN), jnp.float32)
    ds2 = jax.random.normal(k_d2, (B, T2, DEC_HIDDEN + ENC_HIDDEN), jnp.float32)
    ref2 = reference(qe2, mask, ds2, params)
    out2 = jax.block_until_ready(
        pointer_net(qe2, mask, ds2, params, compute_dtype=jnp.float32))
    np.testing.assert_allclose(np.asarray(out2), np.asarray(ref2), rtol=2e-3, atol=2e-3)

    print("KERNEL_OK")
</pallas_src>

<mosaic_0001>
module attributes {stable_mosaic.version = 11 : i64} {
  func.func @_pointer_net_kernel(%arg0: i32, %arg1: i32, %arg2: memref<1x128x128xf32, #tpu.memory_space<vmem>>, %arg3: memref<1x8x128xf32, #tpu.memory_space<vmem>>, %arg4: memref<1x1x128xf32, #tpu.memory_space<vmem>>, %arg5: memref<128x128xf32, #tpu.memory_space<vmem>>, %arg6: memref<1x128xf32, #tpu.memory_space<vmem>>, %arg7: memref<128x128xf32, #tpu.memory_space<vmem>>, %arg8: memref<1x128xf32, #tpu.memory_space<vmem>>, %arg9: memref<1x128xf32, #tpu.memory_space<vmem>>, %arg10: memref<1x8x128xf32, #tpu.memory_space<vmem>>) attributes {dimension_semantics = [#tpu.dimension_semantics<parallel>, #tpu.dimension_semantics<parallel>], iteration_bounds = array<i64: 2, 1>, scalar_prefetch = 0 : i64, scratch_operands = 0 : i64, tpu.core_type = #tpu.core_type<tc>, window_params = [{transform_indices = @transform_0, window_bounds = array<i64: 1, 128, 128>}, {transform_indices = @transform_1, window_bounds = array<i64: 1, 8, 128>}, {transform_indices = @transform_2, window_bounds = array<i64: 1, 1, 128>}, {pipeline_mode = #tpu.pipeline_mode<synchronous>, transform_indices = @transform_3, window_bounds = array<i64: 128, 128>}, {pipeline_mode = #tpu.pipeline_mode<synchronous>, transform_indices = @transform_4, window_bounds = array<i64: 1, 128>}, {pipeline_mode = #tpu.pipeline_mode<synchronous>, transform_indices = @transform_5, window_bounds = array<i64: 128, 128>}, {pipeline_mode = #tpu.pipeline_mode<synchronous>, transform_indices = @transform_6, window_bounds = array<i64: 1, 128>}, {pipeline_mode = #tpu.pipeline_mode<synchronous>, transform_indices = @transform_7, window_bounds = array<i64: 1, 128>}, {transform_indices = @transform_8, window_bounds = array<i64: 1, 8, 128>}]} {
    %c0 = arith.constant 0 : index
    %c0_0 = arith.constant 0 : index
    %c0_1 = arith.constant 0 : index
    %0 = vector.load %arg2[%c0, %c0_0, %c0_1] : memref<1x128x128xf32, #tpu.memory_space<vmem>>, vector<1x128x128xf32>
    %1 = vector.shape_cast %0 : vector<1x128x128xf32> to vector<128x128xf32>
    %c0_2 = arith.constant 0 : index
    %c0_3 = arith.constant 0 : index
    %2 = vector.load %arg5[%c0_2, %c0_3] : memref<128x128xf32, #tpu.memory_space<vmem>>, vector<128x128xf32>
    %cst = arith.constant dense<0.000000e+00> : vector<128x128xf32>
    %3 = tpu.matmul %1, %2, %cst {dimension_numbers = #tpu.dot_dimension_numbers<[1], [0], [0], [1], [0, 0, 1, 1], [], []>} : vector<128x128xf32>, vector<128x128xf32>, vector<128x128xf32> -> vector<128x128xf32>
    %c0_4 = arith.constant 0 : index
    %c0_5 = arith.constant 0 : index
    %4 = vector.load %arg6[%c0_4, %c0_5] : memref<1x128xf32, #tpu.memory_space<vmem>>, vector<1x128xf32>
    %5 = vector.broadcast %4 : vector<1x128xf32> to vector<128x128xf32>
    %6 = arith.addf %3, %5 : vector<128x128xf32>
    %7 = vector.shape_cast %6 : vector<128x128xf32> to vector<1x128x128xf32>
    %c0_6 = arith.constant 0 : index
    %c0_7 = arith.constant 0 : index
    %c0_8 = arith.constant 0 : index
    %8 = vector.load %arg4[%c0_6, %c0_7, %c0_8] : memref<1x1x128xf32, #tpu.memory_space<vmem>>, vector<1x1x128xf32>
    %9 = vector.shape_cast %8 : vector<1x1x128xf32> to vector<1x128xf32>
    %c0_9 = arith.constant 0 : index
    %c0_10 = arith.constant 0 : index
    %10 = vector.load %arg9[%c0_9, %c0_10] : memref<1x128xf32, #tpu.memory_space<vmem>>, vector<1x128xf32>
    %11 = vector.shape_cast %10 : vector<1x128xf32> to vector<1x1x128xf32>
    %c0_11 = arith.constant 0 : index
    %c0_12 = arith.constant 0 : index
    %c0_13 = arith.constant 0 : index
    %12 = vector.load %arg3[%c0_11, %c0_12, %c0_13] : memref<1x8x128xf32, #tpu.memory_space<vmem>>, vector<1x8x128xf32>
    %13 = vector.shape_cast %12 : vector<1x8x128xf32> to vector<8x128xf32>
    %c0_14 = arith.constant 0 : index
    %c0_15 = arith.constant 0 : index
    %14 = vector.load %arg7[%c0_14, %c0_15] : memref<128x128xf32, #tpu.memory_space<vmem>>, vector<128x128xf32>
    %cst_16 = arith.constant dense<0.000000e+00> : vector<8x128xf32>
    %15 = tpu.matmul %13, %14, %cst_16 {dimension_numbers = #tpu.dot_dimension_numbers<[1], [0], [0], [1], [0, 0, 1, 1], [], []>} : vector<8x128xf32>, vector<128x128xf32>, vector<8x128xf32> -> vector<8x128xf32>
    %c0_17 = arith.constant 0 : index
    %c0_18 = arith.constant 0 : index
    %16 = vector.load %arg8[%c0_17, %c0_18] : memref<1x128xf32, #tpu.memory_space<vmem>>, vector<1x128xf32>
    %17 = vector.broadcast %16 : vector<1x128xf32> to vector<8x128xf32>
    %18 = arith.addf %15, %17 : vector<8x128xf32>
    %19 = vector.shape_cast %18 : vector<8x128xf32> to vector<8x1x128xf32>
    %20 = vector.broadcast %19 : vector<8x1x128xf32> to vector<8x128x128xf32>
    %21 = vector.broadcast %7 : vector<1x128x128xf32> to vector<8x128x128xf32>
    %22 = arith.addf %20, %21 : vector<8x128x128xf32>
    %23 = math.tanh %22 : vector<8x128x128xf32>
    %24 = vector.broadcast %11 : vector<1x1x128xf32> to vector<8x128x128xf32>
    %25 = arith.mulf %23, %24 : vector<8x128x128xf32>
    %cst_19 = arith.constant dense<0.000000e+00> : vector<8x128xf32>
    %26 = vector.multi_reduction <add>, %25, %cst_19 [2] : vector<8x128x128xf32> to vector<8x128xf32>
    %27 = vector.broadcast %9 : vector<1x128xf32> to vector<8x128xf32>
    %28 = arith.addf %26, %27 : vector<8x128xf32>
    %cst_20 = arith.constant dense<0xFF800000> : vector<8xf32>
    %29 = vector.multi_reduction <maximumf>, %28, %cst_20 [1] : vector<8x128xf32> to vector<8xf32>
    %30 = vector.shape_cast %29 : vector<8xf32> to vector<8x1xf32>
    %31 = vector.broadcast %30 : vector<8x1xf32> to vector<8x128xf32>
    %32 = arith.subf %28, %31 : vector<8x128xf32>
    %33 = math.exp %32 : vector<8x128xf32>
    %cst_21 = arith.constant dense<0.000000e+00> : vector<8xf32>
    %34 = vector.multi_reduction <add>, %33, %cst_21 [1] : vector<8x128xf32> to vector<8xf32>
    %35 = vector.shape_cast %34 : vector<8xf32> to vector<8x1xf32>
    %36 = tpu.reciprocal %35 {approx = true} : vector<8x1xf32> -> vector<8x1xf32>
    %37 = vector.broadcast %36 : vector<8x1xf32> to vector<8x128xf32>
    %38 = arith.mulf %33, %37 : vector<8x128xf32>
    %c0_22 = arith.constant 0 : index
    %c0_23 = arith.constant 0 : index
    %c0_24 = arith.constant 0 : index
    %39 = vector.load %arg10[%c0_22, %c0_23, %c0_24] : memref<1x8x128xf32, #tpu.memory_space<vmem>>, vector<1x8x128xf32>
    %40 = vector.shape_cast %39 : vector<1x8x128xf32> to vector<8x128xf32>
    %41 = vector.shape_cast %38 : vector<8x128xf32> to vector<1x8x128xf32>
    tpu.vector_store %arg10[%c0_22, %c0_23, %c0_24], %41 {strides = array<i32>} : memref<1x8x128xf32, #tpu.memory_space<vmem>>, vector<1x8x128xf32>,
    return
  }
  func.func @transform_0(%arg0: i32, %arg1: i32) -> (i32, i32, i32) {
    %c0_i32 = arith.constant 0 : i32
    %c0_i32_0 = arith.constant 0 : i32
    %c0_i32_1 = arith.constant 0 : i32
    return %arg0, %c0_i32, %c0_i32_0 : i32, i32, i32
  }
  func.func @transform_1(%arg0: i32, %arg1: i32) -> (i32, i32, i32) {
    %c0_i32 = arith.constant 0 : i32
    %c0_i32_0 = arith.constant 0 : i32
    return %arg0, %arg1, %c0_i32 : i32, i32, i32
  }
  func.func @transform_2(%arg0: i32, %arg1: i32) -> (i32, i32, i32) {
    %c0_i32 = arith.constant 0 : i32
    %c0_i32_0 = arith.constant 0 : i32
    %c0_i32_1 = arith.constant 0 : i32
    return %arg0, %c0_i32, %c0_i32_0 : i32, i32, i32
  }
  func.func @transform_3(%arg0: i32, %arg1: i32) -> (i32, i32) {
    %c0_i32 = arith.constant 0 : i32
    %c0_i32_0 = arith.constant 0 : i32
    %c0_i32_1 = arith.constant 0 : i32
    return %c0_i32, %c0_i32_0 : i32, i32
  }
  func.func @transform_4(%arg0: i32, %arg1: i32) -> (i32, i32) {
    %c0_i32 = arith.constant 0 : i32
    %c0_i32_0 = arith.constant 0 : i32
    %c0_i32_1 = arith.constant 0 : i32
    return %c0_i32, %c0_i32_0 : i32, i32
  }
  func.func @transform_5(%arg0: i32, %arg1: i32) -> (i32, i32) {
    %c0_i32 = arith.constant 0 : i32
    %c0_i32_0 = arith.constant 0 : i32
    %c0_i32_1 = arith.constant 0 : i32
    return %c0_i32, %c0_i32_0 : i32, i32
  }
  func.func @transform_6(%arg0: i32, %arg1: i32) -> (i32, i32) {
    %c0_i32 = arith.constant 0 : i32
    %c0_i32_0 = arith.constant 0 : i32
    %c0_i32_1 = arith.constant 0 : i32
    return %c0_i32, %c0_i32_0 : i32, i32
  }
  func.func @transform_7(%arg0: i32, %arg1: i32) -> (i32, i32) {
    %c0_i32 = arith.constant 0 : i32
    %c0_i32_0 = arith.constant 0 : i32
    %c0_i32_1 = arith.constant 0 : i32
    return %c0_i32, %c0_i32_0 : i32, i32
  }
  func.func @transform_8(%arg0: i32, %arg1: i32) -> (i32, i32, i32) {
    %c0_i32 = arith.constant 0 : i32
    %c0_i32_0 = arith.constant 0 : i32
    return %arg0, %arg1, %c0_i32 : i32, i32, i32
  }
}

</mosaic_0001>

<llo_original>
// kernel: tpu_custom_call.1
$region0: #{tpu_custom_call.1}
  #allocation0 [shape = 'u32[]', space=smem, size = 0x4, offset = 0x4, fixed_abs, tag = 'smem constant byte address 0x4 - core index']
  #allocation1 [shape = 'u32[144,128]{1,0:T(1,128)}', space=vmem, size = 0x12000, scoped, tag = 'internal scratch']
  %s0 = inlined_call_operand.hbm [shape: f32[2,128,128], index: 0, kind: input, shape index: {}]
  %s1 = inlined_call_operand.hbm [shape: f32[2,8,128], index: 1, kind: input, shape index: {}]
  %s2 = inlined_call_operand.vmem [shape: f32[2,1,128], index: 2, kind: input, shape index: {}]
  %s3 = inlined_call_operand.hbm [shape: f32[128,128], index: 3, kind: input, shape index: {}]
  %s4 = inlined_call_operand.vmem [shape: f32[1,128], index: 4, kind: input, shape index: {}]
  %s5 = inlined_call_operand.hbm [shape: f32[128,128], index: 5, kind: input, shape index: {}]
  %s6 = inlined_call_operand.vmem [shape: f32[1,128], index: 6, kind: input, shape index: {}]
  %s7 = inlined_call_operand.vmem [shape: f32[1,128], index: 7, kind: input, shape index: {}]
  %s8 = inlined_call_operand.hbm [shape: f32[2,8,128], index: 8, kind: output, shape index: {}]
  %s9 = sld [smem:[#allocation0]]
  $region81: #{tpu_custom_call.1} parent=0
    _
  %s11 = ssub.s32 1, %s9
  %s12 = scalar_select 0, %s11, %s9
  $region1: #{tpu_custom_call.1} parent=0
    #allocation2 [shape = 'u8[131072]{0}', space=vmem, size = 0x20000, scoped, tag = 'input window, operand 0']
    #allocation3 [shape = 's32[2]{0}', space=sflag, size = 0x8, scoped, tag = 'scoped memory for tpu_custom_call.1']
    #allocation4 [shape = 's32[2]{0}', space=sflag, size = 0x8, scoped, tag = 'scoped memory for tpu_custom_call.1']
    #allocation5 [shape = 'u8[8192]{0}', space=vmem, size = 0x2000, scoped, tag = 'input window, operand 1']
    #allocation6 [shape = 's32[2]{0}', space=sflag, size = 0x8, scoped, tag = 'scoped memory for tpu_custom_call.1']
    #allocation7 [shape = 'u8[65536]{0}', space=vmem, size = 0x10000, scoped, tag = 'input window, operand 3, single buffered']
    #allocation8 [shape = 'u8[65536]{0}', space=vmem, size = 0x10000, scoped, tag = 'input window, operand 5, single buffered']
    #allocation9 [shape = 's32[1]{0}', space=sflag, size = 0x4, scoped, tag = 'scoped memory for tpu_custom_call.1']
    #allocation10 [shape = 'u8[8192]{0}', space=vmem, size = 0x2000, scoped, tag = 'output window, operand 0']
    %13 = vsyncpa [#allocation3], 0
    %s14 = scalar_lea.sflag [#allocation3], 1
    %15 = vsyncpa %s14, 0
    %16 = vsyncpa [#allocation6], 0
    %s17 = scalar_lea.sflag [#allocation6], 1
    %18 = vsyncpa %s17, 0
    %19 = vsyncpa [#allocation9], 0
    %20 = vsyncpa [#allocation4], 0
    %s21 = scalar_lea.sflag [#allocation4], 1
    %22 = vsyncpa %s21, 0
    loop: start=0, step=1, limit=4
    $region2: #{tpu_custom_call.1} parent=1 // loop_pre_header
      _
    $region3: #{tpu_custom_call.1} parent=1 // loop_header
      %s24 = sphi 0, %s28
      %p25 = scmp.ge.s32.totalorder %s24, 4
      %s31 = sphi 0, %s43
      %s32 = sphi 0, %s39
      %s33 = sphi 0, %s31
      %s34 = sphi 0, %s32
      %s35 = sphi 0, %s33
      %s36 = sphi 0, %s34
      %s46 = sphi 0, %s48
      %s49 = sphi 0, %s46
      %s50 = sphi 0, %s49
      %s66 = sphi 0, %s50
      %s74 = sphi 0, %s76
      %s77 = sphi 0, %s74
      %s78 = sphi 0, %s77
      %s94 = sphi 0, %s78
      %s100 = sphi 0, %s102
      %s103 = sphi 0, %s100
      %s104 = sphi 0, %s103
      %s120 = sphi 0, %s104
      %s124 = sphi 0, %s124
      %s126 = sphi 0, %s124
      %s127 = sphi 0, %s126
      %s141 = sphi 0, %s127
      %s145 = sphi 0, %s145
      %s147 = sphi 0, %s145
      %s148 = sphi 0, %s147
      %s162 = sphi 0, %s148
      %s166 = sphi 0, %s166
      %s168 = sphi 0, %s166
      %s169 = sphi 0, %s168
      %s183 = sphi 0, %s169
      %s187 = sphi 0, %s187
      %s189 = sphi 0, %s187
      %s190 = sphi 0, %s189
      %s204 = sphi 0, %s190
      %s208 = sphi 0, %s208
      %s210 = sphi 0, %s208
      %s211 = sphi 0, %s210
      %s225 = sphi 0, %s211
      %s233 = sphi 0, %s235
      %s236 = sphi 0, %s233
      %s237 = sphi 0, %s236
      %s253 = sphi 0, %s237
    $region4: #{tpu_custom_call.1} parent=1 // loop_header_branch
      %27 = sbr.rel (%p25) target = $region8
    $region5: #{tpu_custom_call.1} parent=1 // loop_body
      %s29 = ssub.s32 %s24, 1
      %s30 = ssub.s32 %s24, 2
      %s37 = sadd.s32 1, %s32
      %p38 = scmp.ge.s32.totalorder %s37, 1
      %s39 = scalar_select %p38, 0, %s37
      %s40 = sadd.s32 1, %s31
      %s41 = scalar_select %p38, %s40, %s31
      %p42 = scmp.ge.s32.totalorder %s41, 2
      %s43 = scalar_select %p42, 0, %s41
      %s44 = ssub.s32 %s31, %s43
      %p45 = scmp.eq.s32.totalorder %s44, 0
      %s47 = sadd.s32 %s46, 1
      %s48 = scalar_select %p45, %s46, %s47
      %p51 = pneg %p45
      %p52 = scmp.eq.s32.totalorder %s24, 1
      %p53 = por %p51, %p52
      %p54 = scmp.ne.s32.totalorder %s46, %s49
      %p55 = scmp.eq.s32.totalorder %s24, 0
      %p56 = por %p54, %p55
      %p57 = scmp.ne.s32.totalorder %s46, %s49
      %p58 = scmp.eq.s32.totalorder %s29, 1
      %p59 = por %p57, %p58
      %p60 = scmp.ne.s32.totalorder %s49, %s50
      %p61 = scmp.eq.s32.totalorder %s29, 0
      %p62 = por %p60, %p61
      %p63 = scmp.ne.s32.totalorder %s49, %s50
      %p64 = scmp.eq.s32.totalorder %s30, 1
      %p65 = por %p63, %p64
      %p67 = scmp.ne.s32.totalorder %s50, %s66
      %p68 = scmp.eq.s32.totalorder %s30, 0
      %p69 = por %p67, %p68
      %s70 = ssub.s32 %s31, %s43
      %s71 = ssub.s32 %s32, %s39
      %s72 = sor.u32 %s70, %s71
      %p73 = scmp.eq.s32.totalorder %s72, 0
      %s75 = sadd.s32 %s74, 1
      %s76 = scalar_select %p73, %s74, %s75
      %p79 = pneg %p73
      %p80 = scmp.eq.s32.totalorder %s24, 1
      %p81 = por %p79, %p80
      %p82 = scmp.ne.s32.totalorder %s74, %s77
      %p83 = scmp.eq.s32.totalorder %s24, 0
      %p84 = por %p82, %p83
      %p85 = scmp.ne.s32.totalorder %s74, %s77
      %p86 = scmp.eq.s32.totalorder %s29, 1
      %p87 = por %p85, %p86
      %p88 = scmp.ne.s32.totalorder %s77, %s78
      %p89 = scmp.eq.s32.totalorder %s29, 0
      %p90 = por %p88, %p89
      %p91 = scmp.ne.s32.totalorder %s77, %s78
      %p92 = scmp.eq.s32.totalorder %s30, 1
      %p93 = por %p91, %p92
      %p95 = scmp.ne.s32.totalorder %s78, %s94
      %p96 = scmp.eq.s32.totalorder %s30, 0
      %p97 = por %p95, %p96
      %s98 = ssub.s32 %s31, %s43
      %p99 = scmp.eq.s32.totalorder %s98, 0
      %s101 = sadd.s32 %s100, 1
      %s102 = scalar_select %p99, %s100, %s101
      %p105 = pneg %p99
      %p106 = scmp.eq.s32.totalorder %s24, 1
      %p107 = por %p105, %p106
      %p108 = scmp.ne.s32.totalorder %s100, %s103
      %p109 = scmp.eq.s32.totalorder %s24, 0
      %p110 = por %p108, %p109
      %p111 = scmp.ne.s32.totalorder %s100, %s103
      %p112 = scmp.eq.s32.totalorder %s29, 1
      %p113 = por %p111, %p112
      %p114 = scmp.ne.s32.totalorder %s103, %s104
      %p115 = scmp.eq.s32.totalorder %s29, 0
      %p116 = por %p114, %p115
      %p117 = scmp.ne.s32.totalorder %s103, %s104
      %p118 = scmp.eq.s32.totalorder %s30, 1
      %p119 = por %p117, %p118
      %p121 = scmp.ne.s32.totalorder %s104, %s120
      %p122 = scmp.eq.s32.totalorder %s30, 0
      %p123 = por %p121, %p122
      %s125 = sadd.s32 %s124, 1
      %p128 = scmp.eq.s32.totalorder %s24, 1
      %p129 = scmp.ne.s32.totalorder %s124, %s126
      %p130 = scmp.eq.s32.totalorder %s24, 0
      %p131 = por %p129, %p130
      %p132 = scmp.ne.s32.totalorder %s124, %s126
      %p133 = scmp.eq.s32.totalorder %s29, 1
      %p134 = por %p132, %p133
      %p135 = scmp.ne.s32.totalorder %s126, %s127
      %p136 = scmp.eq.s32.totalorder %s29, 0
      %p137 = por %p135, %p136
      %p138 = scmp.ne.s32.totalorder %s126, %s127
      %p139 = scmp.eq.s32.totalorder %s30, 1
      %p140 = por %p138, %p139
      %p142 = scmp.ne.s32.totalorder %s127, %s141
      %p143 = scmp.eq.s32.totalorder %s30, 0
      %p144 = por %p142, %p143
      %s146 = sadd.s32 %s145, 1
      %p149 = scmp.eq.s32.totalorder %s24, 1
      %p150 = scmp.ne.s32.totalorder %s145, %s147
      %p151 = scmp.eq.s32.totalorder %s24, 0
      %p152 = por %p150, %p151
      %p153 = scmp.ne.s32.totalorder %s145, %s147
      %p154 = scmp.eq.s32.totalorder %s29, 1
      %p155 = por %p153, %p154
      %p156 = scmp.ne.s32.totalorder %s147, %s148
      %p157 = scmp.eq.s32.totalorder %s29, 0
      %p158 = por %p156, %p157
      %p159 = scmp.ne.s32.totalorder %s147, %s148
      %p160 = scmp.eq.s32.totalorder %s30, 1
      %p161 = por %p159, %p160
      %p163 = scmp.ne.s32.totalorder %s148, %s162
      %p164 = scmp.eq.s32.totalorder %s30, 0
      %p165 = por %p163, %p164
      %s167 = sadd.s32 %s166, 1
      %p170 = scmp.eq.s32.totalorder %s24, 1
      %p171 = scmp.ne.s32.totalorder %s166, %s168
      %p172 = scmp.eq.s32.totalorder %s24, 0
      %p173 = por %p171, %p172
      %p174 = scmp.ne.s32.totalorder %s166, %s168
      %p175 = scmp.eq.s32.totalorder %s29, 1
      %p176 = por %p174, %p175
      %p177 = scmp.ne.s32.totalorder %s168, %s169
      %p178 = scmp.eq.s32.totalorder %s29, 0
      %p179 = por %p177, %p178
      %p180 = scmp.ne.s32.totalorder %s168, %s169
      %p181 = scmp.eq.s32.totalorder %s30, 1
      %p182 = por %p180, %p181
      %p184 = scmp.ne.s32.totalorder %s169, %s183
      %p185 = scmp.eq.s32.totalorder %s30, 0
      %p186 = por %p184, %p185
      %s188 = sadd.s32 %s187, 1
      %p191 = scmp.eq.s32.totalorder %s24, 1
      %p192 = scmp.ne.s32.totalorder %s187, %s189
      %p193 = scmp.eq.s32.totalorder %s24, 0
      %p194 = por %p192, %p193
      %p195 = scmp.ne.s32.totalorder %s187, %s189
      %p196 = scmp.eq.s32.totalorder %s29, 1
      %p197 = por %p195, %p196
      %p198 = scmp.ne.s32.totalorder %s189, %s190
      %p199 = scmp.eq.s32.totalorder %s29, 0
      %p200 = por %p198, %p199
      %p201 = scmp.ne.s32.totalorder %s189, %s190
      %p202 = scmp.eq.s32.totalorder %s30, 1
      %p203 = por %p201, %p202
      %p205 = scmp.ne.s32.totalorder %s190, %s204
      %p206 = scmp.eq.s32.totalorder %s30, 0
      %p207 = por %p205, %p206
      %s209 = sadd.s32 %s208, 1
      %p212 = scmp.eq.s32.totalorder %s24, 1
      %p213 = scmp.ne.s32.totalorder %s208, %s210
      %p214 = scmp.eq.s32.totalorder %s24, 0
      %p215 = por %p213, %p214
      %p216 = scmp.ne.s32.totalorder %s208, %s210
      %p217 = scmp.eq.s32.totalorder %s29, 1
      %p218 = por %p216, %p217
      %p219 = scmp.ne.s32.totalorder %s210, %s211
      %p220 = scmp.eq.s32.totalorder %s29, 0
      %p221 = por %p219, %p220
      %p222 = scmp.ne.s32.totalorder %s210, %s211
      %p223 = scmp.eq.s32.totalorder %s30, 1
      %p224 = por %p222, %p223
      %p226 = scmp.ne.s32.totalorder %s211, %s225
      %p227 = scmp.eq.s32.totalorder %s30, 0
      %p228 = por %p226, %p227
      %s229 = ssub.s32 %s31, %s43
      %s230 = ssub.s32 %s32, %s39
      %s231 = sor.u32 %s229, %s230
      %p232 = scmp.eq.s32.totalorder %s231, 0
      %s234 = sadd.s32 %s233, 1
      %s235 = scalar_select %p232, %s233, %s234
      %p238 = pneg %p232
      %p239 = scmp.eq.s32.totalorder %s24, 1
      %p240 = por %p238, %p239
      %p241 = scmp.ne.s32.totalorder %s233, %s236
      %p242 = scmp.eq.s32.totalorder %s24, 0
      %p243 = por %p241, %p242
      %p244 = scmp.ne.s32.totalorder %s233, %s236
      %p245 = scmp.eq.s32.totalorder %s29, 1
      %p246 = por %p244, %p245
      %p247 = scmp.ne.s32.totalorder %s236, %s237
      %p248 = scmp.eq.s32.totalorder %s29, 0
      %p249 = por %p247, %p248
      %p250 = scmp.ne.s32.totalorder %s236, %s237
      %p251 = scmp.eq.s32.totalorder %s30, 1
      %p252 = por %p250, %p251
      %p254 = scmp.ne.s32.totalorder %s237, %s253
      %p255 = scmp.eq.s32.totalorder %s30, 0
      %p256 = por %p254, %p255
      %p257 = scmp.le.s32.totalorder 1, %s24
      %p258 = scmp.lt.s32.totalorder %s24, 3
      %p259 = pnand %p257, %p258
      %p260 = pneg %p259
      // Predicated region
      $region9: #{tpu_custom_call.1} parent=5 // pred_check
        _
      $region10: #{tpu_custom_call.1} parent=5 // pred_check_branch
        %262 = sbr.rel (%p259) target = $region12
      $region11: #{tpu_custom_call.1} parent=5 // pred_region
        %s263 = ssub.s32 %s24, 1
        // Predicated region
        $region13: #{tpu_custom_call.1} parent=11 // pred_check
          %p264 = pneg %p137
        $region14: #{tpu_custom_call.1} parent=11 // pred_check_branch
          %266 = sbr.rel (%p264) target = $region16
        $region15: #{tpu_custom_call.1} parent=11 // pred_region
          %s268 = ssub.s32 2048, 2048
          %269 = vsyncadd [#allocation6], %s268
          %s270 = sshll.u32 [#allocation7], 4
          %s271 = int_to_ptr.vmem [resolvable:$true] %s270
          %276 = dma.hbm_to_vmem [thread:$0]  %s3, 2048, %s271, [#allocation6], 128, 128, 8
        $region16: #{tpu_custom_call.1} parent=11 // pred_fallthru
          _
        // Predicated region
        $region17: #{tpu_custom_call.1} parent=11 // pred_check
          %p277 = pneg %p158
        $region18: #{tpu_custom_call.1} parent=11 // pred_check_branch
          %279 = sbr.rel (%p277) target = $region20
        $region19: #{tpu_custom_call.1} parent=11 // pred_region
          _
        $region20: #{tpu_custom_call.1} parent=11 // pred_fallthru
          _
        // Predicated region
        $region21: #{tpu_custom_call.1} parent=11 // pred_check
          %p280 = pneg %p179
        $region22: #{tpu_custom_call.1} parent=11 // pred_check_branch
          %282 = sbr.rel (%p280) target = $region24
        $region23: #{tpu_custom_call.1} parent=11 // pred_region
          %s284 = ssub.s32 2048, 2048
          %285 = vsyncadd [#allocation9], %s284
          %s286 = sshll.u32 [#allocation8], 4
          %s287 = int_to_ptr.vmem [resolvable:$true] %s286
          %292 = dma.hbm_to_vmem [thread:$0]  %s5, 2048, %s287, [#allocation9], 128, 128, 8
        $region24: #{tpu_custom_call.1} parent=11 // pred_fallthru
          _
        // Predicated region
        $region25: #{tpu_custom_call.1} parent=11 // pred_check
          %p293 = pneg %p200
        $region26: #{tpu_custom_call.1} parent=11 // pred_check_branch
          %295 = sbr.rel (%p293) target = $region28
        $region27: #{tpu_custom_call.1} parent=11 // pred_region
          _
        $region28: #{tpu_custom_call.1} parent=11 // pred_fallthru
          _
        // Predicated region
        $region29: #{tpu_custom_call.1} parent=11 // pred_check
          %p296 = pneg %p221
        $region30: #{tpu_custom_call.1} parent=11 // pred_check_branch
          %298 = sbr.rel (%p296) target = $region32
        $region31: #{tpu_custom_call.1} parent=11 // pred_region
          _
        $region32: #{tpu_custom_call.1} parent=11 // pred_fallthru
          _
      $region12: #{tpu_custom_call.1} parent=5 // pred_fallthru
        _
      %p299 = scmp.lt.s32.totalorder %s24, 2
      // Predicated region
      $region33: #{tpu_custom_call.1} parent=5 // pred_check
        %p300 = pneg %p299
      $region34: #{tpu_custom_call.1} parent=5 // pred_check_branch
        %302 = sbr.rel (%p300) target = $region36
      $region35: #{tpu_custom_call.1} parent=5 // pred_region
        // Predicated region
        $region37: #{tpu_custom_call.1} parent=35 // pred_check
          %p303 = pneg %p56
        $region38: #{tpu_custom_call.1} parent=35 // pred_check_branch
          %305 = sbr.rel (%p303) target = $region40
        $region39: #{tpu_custom_call.1} parent=35 // pred_region
          %s306 = sand.u32 %s46, 1
          %s307 = scalar_lea.sflag [#allocation3], %s306
          %s308 = sand.u32 %s46, 1
          %s309 = smul.addr %s308, 128
          %s310 = scalar_lea.vmem [#allocation2], %s309
          %s312 = ssub.s32 2048, 2048
          %313 = vsyncadd %s307, %s312
          %s314 = smul.addr %s31, 16
          %s315 = smul.addr %s314, 128
          %s316 = scalar_lea.hbm %s0, %s315
          %s317 = sshll.u32 %s310, 4
          %s318 = int_to_ptr.vmem [resolvable:$true] %s317
          %323 = dma.hbm_to_vmem [thread:$0]  %s316, 2048, %s318, %s307, 128, 128, 8
        $region40: #{tpu_custom_call.1} parent=35 // pred_fallthru
          _
        // Predicated region
        $region41: #{tpu_custom_call.1} parent=35 // pred_check
          %p324 = pneg %p84
        $region42: #{tpu_custom_call.1} parent=35 // pred_check_branch
          %326 = sbr.rel (%p324) target = $region44
        $region43: #{tpu_custom_call.1} parent=35 // pred_region
          %s327 = sand.u32 %s24, 1
          %s328 = scalar_lea.sflag [#allocation6], %s327
          %s329 = sand.u32 %s74, 1
          %s330 = smul.addr %s329, 8
          %s331 = scalar_lea.vmem [#allocation5], %s330
          %s333 = ssub.s32 128, 128
          %334 = vsyncadd %s328, %s333
          %s335 = sadd.s32 %s32, %s31
          %s336 = smul.addr %s335, 128
          %s337 = scalar_lea.hbm %s1, %s336
          %s339 = sshll.u32 %s331, 4
          %s340 = int_to_ptr.vmem [resolvable:$true] %s339
          %342 = dma.hbm_to_vmem [thread:$0]  %s337, 128, %s340, %s328
        $region44: #{tpu_custom_call.1} parent=35 // pred_fallthru
          _
        // Predicated region
        $region45: #{tpu_custom_call.1} parent=35 // pred_check
          %p343 = pneg %p110
        $region46: #{tpu_custom_call.1} parent=35 // pred_check_branch
          %345 = sbr.rel (%p343) target = $region48
        $region47: #{tpu_custom_call.1} parent=35 // pred_region
          %p346 = scmp.lt.s32.totalorder %s31, 1
          %s347 = scalar_select %p346, %s31, 1
          %s348 = scalar_lea.vmem %s2, %s347
        $region48: #{tpu_custom_call.1} parent=35 // pred_fallthru
          _
      $region36: #{tpu_custom_call.1} parent=5 // pred_fallthru
        _
      %p349 = scmp.le.s32.totalorder 1, %s24
      %p350 = scmp.lt.s32.totalorder %s24, 3
      %p351 = pnand %p349, %p350
      %p352 = pneg %p351
      // Predicated region
      $region49: #{tpu_custom_call.1} parent=5 // pred_check
        _
      $region50: #{tpu_custom_call.1} parent=5 // pred_check_branch
        %354 = sbr.rel (%p351) target = $region52
      $region51: #{tpu_custom_call.1} parent=5 // pred_region
        %s355 = ssub.s32 %s24, 1
        %s356 = sand.u32 %s49, 1
        %s357 = scalar_lea.sflag [#allocation3], %s356
        %s358 = sand.u32 %s49, 1
        %s359 = smul.addr %s358, 128
        %s360 = scalar_lea.vmem [#allocation2], %s359
        // Predicated region
        $region53: #{tpu_custom_call.1} parent=51 // pred_check
          %p361 = pneg %p62
        $region54: #{tpu_custom_call.1} parent=51 // pred_check_branch
          %363 = sbr.rel (%p361) target = $region56
        $region55: #{tpu_custom_call.1} parent=51 // pred_region
          %364 = dma.done %s357, 2048
        $region56: #{tpu_custom_call.1} parent=51 // pred_fallthru
          _
        %s365 = sand.u32 %s29, 1
        %s366 = scalar_lea.sflag [#allocation6], %s365
        %s367 = sand.u32 %s77, 1
        %s368 = smul.addr %s367, 8
        %s369 = scalar_lea.vmem [#allocation5], %s368
        // Predicated region
        $region57: #{tpu_custom_call.1} parent=51 // pred_check
          %p370 = pneg %p90
        $region58: #{tpu_custom_call.1} parent=51 // pred_check_branch
          %372 = sbr.rel (%p370) target = $region60
        $region59: #{tpu_custom_call.1} parent=51 // pred_region
          %373 = dma.done %s366, 128
        $region60: #{tpu_custom_call.1} parent=51 // pred_fallthru
          _
        // Predicated region
        $region61: #{tpu_custom_call.1} parent=51 // pred_check
          %p374 = pneg %p137
        $region62: #{tpu_custom_call.1} parent=51 // pred_check_branch
          %376 = sbr.rel (%p374) target = $region64
        $region63: #{tpu_custom_call.1} parent=51 // pred_region
          %377 = dma.done [#allocation6], 2048
        $region64: #{tpu_custom_call.1} parent=51 // pred_fallthru
          _
        // Predicated region
        $region65: #{tpu_custom_call.1} parent=51 // pred_check
          %p378 = pneg %p179
        $region66: #{tpu_custom_call.1} parent=51 // pred_check_branch
          %380 = sbr.rel (%p378) target = $region68
        $region67: #{tpu_custom_call.1} parent=51 // pred_region
          %381 = dma.done [#allocation9], 2048
        $region68: #{tpu_custom_call.1} parent=51 // pred_fallthru
          _
        %s382 = sand.u32 %s49, 1
        %s383 = scalar_lea.sflag [#allocation3], %s382
        %s384 = sand.u32 %s49, 1
        %s385 = smul.addr %s384, 128
        %s386 = scalar_lea.vmem [#allocation2], %s385
        %p387 = pneg %p62
        %p388 = pneg %p59
        %s389 = sand.u32 %s29, 1
        %s390 = scalar_lea.sflag [#allocation6], %s389
        %s391 = sand.u32 %s77, 1
        %s392 = smul.addr %s391, 8
        %s393 = scalar_lea.vmem [#allocation5], %s392
        %p394 = pneg %p90
        %p395 = pneg %p87
        %p396 = scmp.lt.s32.totalorder %s33, 1
        %s397 = scalar_select %p396, %s33, 1
        %s398 = scalar_lea.vmem %s2, %s397
        %p399 = pneg %p116
        %p400 = pneg %p113
        %p401 = pneg %p137
        %p402 = pneg %p134
        %p403 = pneg %p158
        %p404 = pneg %p155
        %p405 = pneg %p179
        %p406 = pneg %p176
        %p407 = pneg %p200
        %p408 = pneg %p197
        %p409 = pneg %p221
        %p410 = pneg %p218
        %p411 = pneg %p249
        %p412 = pneg %p246
        %s413 = sand.u32 %s236, 1
        %s414 = scalar_lea.sflag [#allocation4], %s413
        %s415 = sand.u32 %s236, 1
        %s416 = smul.addr %s415, 8
        %s417 = scalar_lea.vmem [#allocation10], %s416
        %p418 = scmp.lt.s32.totalorder %s33, 1
        %s419 = scalar_select %p418, %s33, 1
        %s420 = scalar_lea.vmem %s2, %s419
        %v421 = vld [vmem:[%s360] sm:$0xff]
        %v422 = vld [vmem:[%s360 + $0x8] sm:$0xff]
        %v423 = vld [vmem:[%s360 + $0x10] sm:$0xff]
        %v424 = vld [vmem:[%s360 + $0x18] sm:$0xff]
        %v425 = vld [vmem:[%s360 + $0x20] sm:$0xff]
        %v426 = vld [vmem:[%s360 + $0x28] sm:$0xff]
        %v427 = vld [vmem:[%s360 + $0x30] sm:$0xff]
        %v428 = vld [vmem:[%s360 + $0x38] sm:$0xff]
        %v429 = vld [vmem:[%s360 + $0x40] sm:$0xff]
        %v430 = vld [vmem:[%s360 + $0x48] sm:$0xff]
        %v431 = vld [vmem:[%s360 + $0x50] sm:$0xff]
        %v432 = vld [vmem:[%s360 + $0x58] sm:$0xff]
        %v433 = vld [vmem:[%s360 + $0x60] sm:$0xff]
        %v434 = vld [vmem:[%s360 + $0x68] sm:$0xff]
        %v435 = vld [vmem:[%s360 + $0x70] sm:$0xff]
        %v436 = vld [vmem:[%s360 + $0x78] sm:$0xff]
        %v437 = vld [vmem:[#allocation7] sm:$0xff]
        %v438 = vld [vmem:[#allocation7 + $0x8] sm:$0xff]
        %v439 = vld [vmem:[#allocation7 + $0x10] sm:$0xff]
        %v440 = vld [vmem:[#allocation7 + $0x18] sm:$0xff]
        %v441 = vld [vmem:[#allocation7 + $0x20] sm:$0xff]
        %v442 = vld [vmem:[#allocation7 + $0x28] sm:$0xff]
        %v443 = vld [vmem:[#allocation7 + $0x30] sm:$0xff]
        %v444 = vld [vmem:[#allocation7 + $0x38] sm:$0xff]
        %v445 = vld [vmem:[#allocation7 + $0x40] sm:$0xff]
        %v446 = vld [vmem:[#allocation7 + $0x48] sm:$0xff]
        %v447 = vld [vmem:[#allocation7 + $0x50] sm:$0xff]
        %v448 = vld [vmem:[#allocation7 + $0x58] sm:$0xff]
        %v449 = vld [vmem:[#allocation7 + $0x60] sm:$0xff]
        %v450 = vld [vmem:[#allocation7 + $0x68] sm:$0xff]
        %v451 = vld [vmem:[#allocation7 + $0x70] sm:$0xff]
        %v452 = vld [vmem:[#allocation7 + $0x78] sm:$0xff]
        %v453 = vld [vmem:[%s4] sm:$0x1]
        %v455 = vlaneseq
        %v456 = vshrl.u32 %v455, 7
        %v457 = vsub.s32 0, %v456
        %v458 = vrot.slane %v453, %v457
        %460 = vmatprep.subr.mxu0 0.0
        %461 = vmatpush1.msra.mxu0 %v452
        %462 = vmatprep.subr.mxu0 0.0
        %463 = vmatpush1.msra.mxu0 %v451
        %464 = vmatprep.subr.mxu0 0.0
        %465 = vmatpush1.msra.mxu0 %v450
        %466 = vmatprep.subr.mxu0 0.0
        %467 = vmatpush1.msra.mxu0 %v449
        %468 = vmatprep.subr.mxu0 0.0
        %469 = vmatpush1.msra.mxu0 %v448
        %470 = vmatprep.subr.mxu0 0.0
        %471 = vmatpush1.msra.mxu0 %v447
        %472 = vmatprep.subr.mxu0 0.0
        %473 = vmatpush1.msra.mxu0 %v446
        %474 = vmatprep.subr.mxu0 0.0
        %475 = vmatpush1.msra.mxu0 %v445
        %476 = vmatprep.subr.mxu0 0.0
        %477 = vmatpush1.msra.mxu0 %v444
        %478 = vmatprep.subr.mxu0 0.0
        %479 = vmatpush1.msra.mxu0 %v443
        %480 = vmatprep.subr.mxu0 0.0
        %481 = vmatpush1.msra.mxu0 %v442
        %482 = vmatprep.subr.mxu0 0.0
        %483 = vmatpush1.msra.mxu0 %v441
        %484 = vmatprep.subr.mxu0 0.0
        %485 = vmatpush1.msra.mxu0 %v440
        %486 = vmatprep.subr.mxu0 0.0
        %487 = vmatpush1.msra.mxu0 %v439
        %488 = vmatprep.subr.mxu0 0.0
        %489 = vmatpush1.msra.mxu0 %v438
        %490 = vmatprep.subr.mxu0 0.0
        %491 = vmatpush1.msra.mxu0 %v437
        %492 = vmatprep.subr.mxu0 0.0
        %493 = vmatpush2.msra.mxu0 0.0
        %494 = vmatprep.subr.mxu0 0.0
        %495 = vmatpush2.msra.mxu0 0.0
        %496 = vmatprep.subr.mxu0 0.0
        %497 = vmatpush2.msra.mxu0 0.0
        %498 = vmatprep.subr.mxu0 0.0
        %499 = vmatpush2.msra.mxu0 0.0
        %500 = vmatprep.subr.mxu0 0.0
        %501 = vmatpush2.msra.mxu0 0.0
        %502 = vmatprep.subr.mxu0 0.0
        %503 = vmatpush2.msra.mxu0 0.0
        %504 = vmatprep.subr.mxu0 0.0
        %505 = vmatpush2.msra.mxu0 0.0
        %506 = vmatprep.subr.mxu0 0.0
        %507 = vmatpush2.msra.mxu0 0.0
        %508 = vmatprep.subr.mxu0 0.0
        %509 = vmatpush2.msra.mxu0 0.0
        %510 = vmatprep.subr.mxu0 0.0
        %511 = vmatpush2.msra.mxu0 0.0
        %512 = vmatprep.subr.mxu0 0.0
        %513 = vmatpush2.msra.mxu0 0.0
        %514 = vmatprep.subr.mxu0 0.0
        %515 = vmatpush2.msra.mxu0 0.0
        %516 = vmatprep.subr.mxu0 0.0
        %517 = vmatpush2.msra.mxu0 0.0
        %518 = vmatprep.subr.mxu0 0.0
        %519 = vmatpush2.msra.mxu0 0.0
        %520 = vmatprep.subr.mxu0 0.0
        %521 = vmatpush2.msra.mxu0 0.0
        %522 = vmatprep.subr.mxu0 0.0
        %523 = vmatpush2.msra.mxu0 0.0
        %524 = vmatprep.mubr.f32.mxu0 0.0
        %525 = vmatmul.mubr.f32.gmra.mxu0 %v421
        %v526 = vpop.f32.mrf.mxu0
        %v527 = vadd.f32 %v458, %v526
        %v528 = vpop.f32.mrf.mxu0
        %529 = vmatprep.mubr.f32.mxu0 0.0
        %530 = vmatmul.mubr.f32.gmra.mxu0 %v422
        %v531 = vpop.f32.mrf.mxu0
        %v532 = vadd.f32 %v458, %v531
        %v533 = vpop.f32.mrf.mxu0
        %534 = vmatprep.mubr.f32.mxu0 0.0
        %535 = vmatmul.mubr.f32.gmra.mxu0 %v423
        %v536 = vpop.f32.mrf.mxu0
        %v537 = vadd.f32 %v458, %v536
        %v538 = vpop.f32.mrf.mxu0
        %539 = vmatprep.mubr.f32.mxu0 0.0
        %540 = vmatmul.mubr.f32.gmra.mxu0 %v424
        %v541 = vpop.f32.mrf.mxu0
        %v542 = vadd.f32 %v458, %v541
        %v543 = vpop.f32.mrf.mxu0
        %544 = vmatprep.mubr.f32.mxu0 0.0
        %545 = vmatmul.mubr.f32.gmra.mxu0 %v425
        %v546 = vpop.f32.mrf.mxu0
        %v547 = vadd.f32 %v458, %v546
        %v548 = vpop.f32.mrf.mxu0
        %549 = vmatprep.mubr.f32.mxu0 0.0
        %550 = vmatmul.mubr.f32.gmra.mxu0 %v426
        %v551 = vpop.f32.mrf.mxu0
        %v552 = vadd.f32 %v458, %v551
        %v553 = vpop.f32.mrf.mxu0
        %554 = vmatprep.mubr.f32.mxu0 0.0
        %555 = vmatmul.mubr.f32.gmra.mxu0 %v427
        %v556 = vpop.f32.mrf.mxu0
        %v557 = vadd.f32 %v458, %v556
        %v558 = vpop.f32.mrf.mxu0
        %559 = vmatprep.mubr.f32.mxu0 0.0
        %560 = vmatmul.mubr.f32.gmra.mxu0 %v428
        %v561 = vpop.f32.mrf.mxu0
        %v562 = vadd.f32 %v458, %v561
        %v563 = vpop.f32.mrf.mxu0
        %564 = vmatprep.mubr.f32.mxu0 0.0
        %565 = vmatmul.mubr.f32.gmra.mxu0 %v429
        %v566 = vpop.f32.mrf.mxu0
        %v567 = vadd.f32 %v458, %v566
        %v568 = vpop.f32.mrf.mxu0
        %569 = vmatprep.mubr.f32.mxu0 0.0
        %570 = vmatmul.mubr.f32.gmra.mxu0 %v430
        %v571 = vpop.f32.mrf.mxu0
        %v572 = vadd.f32 %v458, %v571
        %v573 = vpop.f32.mrf.mxu0
        %574 = vmatprep.mubr.f32.mxu0 0.0
        %575 = vmatmul.mubr.f32.gmra.mxu0 %v431
        %v576 = vpop.f32.mrf.mxu0
        %v577 = vadd.f32 %v458, %v576
        %v578 = vpop.f32.mrf.mxu0
        %579 = vmatprep.mubr.f32.mxu0 0.0
        %580 = vmatmul.mubr.f32.gmra.mxu0 %v432
        %v581 = vpop.f32.mrf.mxu0
        %v582 = vadd.f32 %v458, %v581
        %v583 = vpop.f32.mrf.mxu0
        %584 = vmatprep.mubr.f32.mxu0 0.0
        %585 = vmatmul.mubr.f32.gmra.mxu0 %v433
        %v586 = vpop.f32.mrf.mxu0
        %v587 = vadd.f32 %v458, %v586
        %v588 = vpop.f32.mrf.mxu0
        %589 = vmatprep.mubr.f32.mxu0 0.0
        %590 = vmatmul.mubr.f32.gmra.mxu0 %v434
        %v591 = vpop.f32.mrf.mxu0
        %v592 = vadd.f32 %v458, %v591
        %v593 = vpop.f32.mrf.mxu0
        %594 = vmatprep.mubr.f32.mxu0 0.0
        %595 = vmatmul.mubr.f32.gmra.mxu0 %v435
        %v596 = vpop.f32.mrf.mxu0
        %v597 = vadd.f32 %v458, %v596
        %v598 = vpop.f32.mrf.mxu0
        %599 = vmatprep.mubr.f32.mxu0 0.0
        %600 = vmatmul.mubr.f32.gmra.mxu0 %v436
        %v601 = vpop.f32.mrf.mxu0
        %v602 = vadd.f32 %v458, %v601
        %v603 = vpop.f32.mrf.mxu0
        %604 = vdwg.mxu0
        %v605 = vld [vmem:[%s420] sm:$0x1]
        %v606 = vld [vmem:[%s7] sm:$0x1]
        %v607 = vld [vmem:[%s369] sm:$0xff]
        %v608 = vld [vmem:[#allocation8] sm:$0xff]
        %v609 = vld [vmem:[#allocation8 + $0x8] sm:$0xff]
        %v610 = vld [vmem:[#allocation8 + $0x10] sm:$0xff]
        %v611 = vld [vmem:[#allocation8 + $0x18] sm:$0xff]
        %v612 = vld [vmem:[#allocation8 + $0x20] sm:$0xff]
        %v613 = vld [vmem:[#allocation8 + $0x28] sm:$0xff]
        %v614 = vld [vmem:[#allocation8 + $0x30] sm:$0xff]
        %v615 = vld [vmem:[#allocation8 + $0x38] sm:$0xff]
        %v616 = vld [vmem:[#allocation8 + $0x40] sm:$0xff]
        %v617 = vld [vmem:[#allocation8 + $0x48] sm:$0xff]
        %v618 = vld [vmem:[#allocation8 + $0x50] sm:$0xff]
        %v619 = vld [vmem:[#allocation8 + $0x58] sm:$0xff]
        %v620 = vld [vmem:[#allocation8 + $0x60] sm:$0xff]
        %v621 = vld [vmem:[#allocation8 + $0x68] sm:$0xff]
        %v622 = vld [vmem:[#allocation8 + $0x70] sm:$0xff]
        %v623 = vld [vmem:[#allocation8 + $0x78] sm:$0xff]
        %v624 = vld [vmem:[%s6] sm:$0x1]
        %v626 = vlaneseq
        %v627 = vshrl.u32 %v626, 7
        %v628 = vsub.s32 0, %v627
        %v629 = vrot.slane %v624, %v628
        %631 = vmatprep.subr.mxu0 0.0
        %632 = vmatpush1.msra.mxu0 %v623
        %633 = vmatprep.subr.mxu0 0.0
        %634 = vmatpush1.msra.mxu0 %v622
        %635 = vmatprep.subr.mxu0 0.0
        %636 = vmatpush1.msra.mxu0 %v621
        %637 = vmatprep.subr.mxu0 0.0
        %638 = vmatpush1.msra.mxu0 %v620
        %639 = vmatprep.subr.mxu0 0.0
        %640 = vmatpush1.msra.mxu0 %v619
        %641 = vmatprep.subr.mxu0 0.0
        %642 = vmatpush1.msra.mxu0 %v618
        %643 = vmatprep.subr.mxu0 0.0
        %644 = vmatpush1.msra.mxu0 %v617
        %645 = vmatprep.subr.mxu0 0.0
        %646 = vmatpush1.msra.mxu0 %v616
        %647 = vmatprep.subr.mxu0 0.0
        %648 = vmatpush1.msra.mxu0 %v615
        %649 = vmatprep.subr.mxu0 0.0
        %650 = vmatpush1.msra.mxu0 %v614
        %651 = vmatprep.subr.mxu0 0.0
        %652 = vmatpush1.msra.mxu0 %v613
        %653 = vmatprep.subr.mxu0 0.0
        %654 = vmatpush1.msra.mxu0 %v612
        %655 = vmatprep.subr.mxu0 0.0
        %656 = vmatpush1.msra.mxu0 %v611
        %657 = vmatprep.subr.mxu0 0.0
        %658 = vmatpush1.msra.mxu0 %v610
        %659 = vmatprep.subr.mxu0 0.0
        %660 = vmatpush1.msra.mxu0 %v609
        %661 = vmatprep.subr.mxu0 0.0
        %662 = vmatpush1.msra.mxu0 %v608
        %663 = vmatprep.subr.mxu0 0.0
        %664 = vmatpush2.msra.mxu0 0.0
        %665 = vmatprep.subr.mxu0 0.0
        %666 = vmatpush2.msra.mxu0 0.0
        %667 = vmatprep.subr.mxu0 0.0
        %668 = vmatpush2.msra.mxu0 0.0
        %669 = vmatprep.subr.mxu0 0.0
        %670 = vmatpush2.msra.mxu0 0.0
        %671 = vmatprep.subr.mxu0 0.0
        %672 = vmatpush2.msra.mxu0 0.0
        %673 = vmatprep.subr.mxu0 0.0
        %674 = vmatpush2.msra.mxu0 0.0
        %675 = vmatprep.subr.mxu0 0.0
        %676 = vmatpush2.msra.mxu0 0.0
        %677 = vmatprep.subr.mxu0 0.0
        %678 = vmatpush2.msra.mxu0 0.0
        %679 = vmatprep.subr.mxu0 0.0
        %680 = vmatpush2.msra.mxu0 0.0
        %681 = vmatprep.subr.mxu0 0.0
        %682 = vmatpush2.msra.mxu0 0.0
        %683 = vmatprep.subr.mxu0 0.0
        %684 = vmatpush2.msra.mxu0 0.0
        %685 = vmatprep.subr.mxu0 0.0
        %686 = vmatpush2.msra.mxu0 0.0
        %687 = vmatprep.subr.mxu0 0.0
        %688 = vmatpush2.msra.mxu0 0.0
        %689 = vmatprep.subr.mxu0 0.0
        %690 = vmatpush2.msra.mxu0 0.0
        %691 = vmatprep.subr.mxu0 0.0
        %692 = vmatpush2.msra.mxu0 0.0
        %693 = vmatprep.subr.mxu0 0.0
        %694 = vmatpush2.msra.mxu0 0.0
        %695 = vmatprep.mubr.f32.mxu0 0.0
        %696 = vmatmul.mubr.f32.gmra.mxu0 %v607
        %v697 = vpop.f32.mrf.mxu0
        %v698 = vadd.f32 %v629, %v697
        %v699 = vpop.f32.mrf.mxu0
        %700 = vdwg.mxu0
        %v702 = vcombine.high %v698, %v698
        %v704 = vunpack.c.l.s4 1966171168
        %v705 = vunpack.c.0.s8 %v704
        %v706 = vlaneseq
        %v707 = vshrl.u32 %v706, 7
        %v708 = vsub.s32 %v705, %v707
        %v709 = vrot.slane %v698, %v708
        %v711 = vunpack.c.l.s4 1966171168
        %v712 = vunpack.c.0.s8 %v711
        %v713 = vlaneseq
        %v714 = vshrl.u32 %v713, 7
        %v715 = vsub.s32 %v712, %v714
        %v716 = vrot.slane %v702, %v715
        %v717 = vcombine.high %v709, %v709
        %v718 = vcombine.high %v716, %v716
        %v720 = vunpack.c.l.s4 1966171168
        %v721 = vunpack.c.0.s8 %v720
        %v722 = vlaneseq
        %v723 = vshrl.u32 %v722, 7
        %v724 = vsub.s32 %v721, %v723
        %v725 = vrot.slane %v709, %v724
        %v727 = vunpack.c.l.s4 1966171168
        %v728 = vunpack.c.0.s8 %v727
        %v729 = vlaneseq
        %v730 = vshrl.u32 %v729, 7
        %v731 = vsub.s32 %v728, %v730
        %v732 = vrot.slane %v716, %v731
        %v734 = vunpack.c.l.s4 1966171168
        %v735 = vunpack.c.0.s8 %v734
        %v736 = vlaneseq
        %v737 = vshrl.u32 %v736, 7
        %v738 = vsub.s32 %v735, %v737
        %v739 = vrot.slane %v717, %v738
        %v741 = vunpack.c.l.s4 1966171168
        %v742 = vunpack.c.0.s8 %v741
        %v743 = vlaneseq
        %v744 = vshrl.u32 %v743, 7
        %v745 = vsub.s32 %v742, %v744
        %v746 = vrot.slane %v718, %v745
        %v747 = vcombine.high %v725, %v725
        %v748 = vcombine.high %v732, %v732
        %v749 = vcombine.high %v739, %v739
        %v750 = vcombine.high %v746, %v746
        %v751 = vlaneseq
        %v752 = vshrl.u32 %v751, 7
        %v753 = vsub.s32 0, %v752
        %v754 = vrot.slane %v725, %v753
        %v755 = vlaneseq
        %v756 = vshrl.u32 %v755, 7
        %v757 = vsub.s32 0, %v756
        %v758 = vrot.slane %v739, %v757
        %v759 = vlaneseq
        %v760 = vshrl.u32 %v759, 7
        %v761 = vsub.s32 0, %v760
        %v762 = vrot.slane %v747, %v761
        %v763 = vlaneseq
        %v764 = vshrl.u32 %v763, 7
        %v765 = vsub.s32 0, %v764
        %v766 = vrot.slane %v749, %v765
        %v767 = vlaneseq
        %v768 = vshrl.u32 %v767, 7
        %v769 = vsub.s32 0, %v768
        %v770 = vrot.slane %v732, %v769
        %v771 = vlaneseq
        %v772 = vshrl.u32 %v771, 7
        %v773 = vsub.s32 0, %v772
        %v774 = vrot.slane %v746, %v773
        %v775 = vlaneseq
        %v776 = vshrl.u32 %v775, 7
        %v777 = vsub.s32 0, %v776
        %v778 = vrot.slane %v748, %v777
        %v779 = vlaneseq
        %v780 = vshrl.u32 %v779, 7
        %v781 = vsub.s32 0, %v780
        %v782 = vrot.slane %v750, %v781
        %v791 = vadd.f32 %v754, %v527
        %v792 = vadd.f32 %v754, %v532
        %v793 = vadd.f32 %v754, %v537
        %v794 = vadd.f32 %v754, %v542
        %v795 = vadd.f32 %v754, %v547
        %v796 = vadd.f32 %v754, %v552
        %v797 = vadd.f32 %v754, %v557
        %v798 = vadd.f32 %v754, %v562
        %v799 = vadd.f32 %v754, %v567
        %v800 = vadd.f32 %v754, %v572
        %v801 = vadd.f32 %v754, %v577
        %v802 = vadd.f32 %v754, %v582
        %v803 = vadd.f32 %v754, %v587
        %v804 = vadd.f32 %v754, %v592
        %v805 = vadd.f32 %v754, %v597
        %v806 = vadd.f32 %v754, %v602
        %v807 = vadd.f32 %v758, %v527
        %v808 = vadd.f32 %v758, %v532
        %v809 = vadd.f32 %v758, %v537
        %v810 = vadd.f32 %v758, %v542
        %v811 = vadd.f32 %v758, %v547
        %v812 = vadd.f32 %v758, %v552
        %v813 = vadd.f32 %v758, %v557
        %v814 = vadd.f32 %v758, %v562
        %v815 = vadd.f32 %v758, %v567
        %v816 = vadd.f32 %v758, %v572
        %v817 = vadd.f32 %v758, %v577
        %v818 = vadd.f32 %v758, %v582
        %v819 = vadd.f32 %v758, %v587
        %v820 = vadd.f32 %v758, %v592
        %v821 = vadd.f32 %v758, %v597
        %v822 = vadd.f32 %v758, %v602
        %v823 = vadd.f32 %v762, %v527
        %v824 = vadd.f32 %v762, %v532
        %v825 = vadd.f32 %v762, %v537
        %v826 = vadd.f32 %v762, %v542
        %v827 = vadd.f32 %v762, %v547
        %v828 = vadd.f32 %v762, %v552
        %v829 = vadd.f32 %v762, %v557
        %v830 = vadd.f32 %v762, %v562
        %v831 = vadd.f32 %v762, %v567
        %v832 = vadd.f32 %v762, %v572
        %v833 = vadd.f32 %v762, %v577
        %v834 = vadd.f32 %v762, %v582
        %v835 = vadd.f32 %v762, %v587
        %v836 = vadd.f32 %v762, %v592
        %v837 = vadd.f32 %v762, %v597
        %v838 = vadd.f32 %v762, %v602
        %v839 = vadd.f32 %v766, %v527
        %v840 = vadd.f32 %v766, %v532
        %v841 = vadd.f32 %v766, %v537
        %v842 = vadd.f32 %v766, %v542
        %v843 = vadd.f32 %v766, %v547
        %v844 = vadd.f32 %v766, %v552
        %v845 = vadd.f32 %v766, %v557
        %v846 = vadd.f32 %v766, %v562
        %v847 = vadd.f32 %v766, %v567
        %v848 = vadd.f32 %v766, %v572
        %v849 = vadd.f32 %v766, %v577
        %v850 = vadd.f32 %v766, %v582
        %v851 = vadd.f32 %v766, %v587
        %v852 = vadd.f32 %v766, %v592
        %v853 = vadd.f32 %v766, %v597
        %v854 = vadd.f32 %v766, %v602
        %v855 = vadd.f32 %v770, %v527
        %v856 = vadd.f32 %v770, %v532
        %v857 = vadd.f32 %v770, %v537
        %v858 = vadd.f32 %v770, %v542
        %v859 = vadd.f32 %v770, %v547
        %v860 = vadd.f32 %v770, %v552
        %v861 = vadd.f32 %v770, %v557
        %v862 = vadd.f32 %v770, %v562
        %v863 = vadd.f32 %v770, %v567
        %v864 = vadd.f32 %v770, %v572
        %v865 = vadd.f32 %v770, %v577
        %v866 = vadd.f32 %v770, %v582
        %v867 = vadd.f32 %v770, %v587
        %v868 = vadd.f32 %v770, %v592
        %v869 = vadd.f32 %v770, %v597
        %v870 = vadd.f32 %v770, %v602
        %v871 = vadd.f32 %v774, %v527
        %v872 = vadd.f32 %v774, %v532
        %v873 = vadd.f32 %v774, %v537
        %v874 = vadd.f32 %v774, %v542
        %v875 = vadd.f32 %v774, %v547
        %v876 = vadd.f32 %v774, %v552
        %v877 = vadd.f32 %v774, %v557
        %v878 = vadd.f32 %v774, %v562
        %v879 = vadd.f32 %v774, %v567
        %v880 = vadd.f32 %v774, %v572
        %v881 = vadd.f32 %v774, %v577
        %v882 = vadd.f32 %v774, %v582
        %v883 = vadd.f32 %v774, %v587
        %v884 = vadd.f32 %v774, %v592
        %v885 = vadd.f32 %v774, %v597
        %v886 = vadd.f32 %v774, %v602
        %v887 = vadd.f32 %v778, %v527
        %v888 = vadd.f32 %v778, %v532
        %v889 = vadd.f32 %v778, %v537
        %v890 = vadd.f32 %v778, %v542
        %v891 = vadd.f32 %v778, %v547
        %v892 = vadd.f32 %v778, %v552
        %v893 = vadd.f32 %v778, %v557
        %v894 = vadd.f32 %v778, %v562
        %v895 = vadd.f32 %v778, %v567
        %v896 = vadd.f32 %v778, %v572
        %v897 = vadd.f32 %v778, %v577
        %v898 = vadd.f32 %v778, %v582
        %v899 = vadd.f32 %v778, %v587
        %v900 = vadd.f32 %v778, %v592
        %v901 = vadd.f32 %v778, %v597
        %v902 = vadd.f32 %v778, %v602
        %v903 = vadd.f32 %v782, %v527
        %v904 = vadd.f32 %v782, %v532
        %v905 = vadd.f32 %v782, %v537
        %v906 = vadd.f32 %v782, %v542
        %v907 = vadd.f32 %v782, %v547
        %v908 = vadd.f32 %v782, %v552
        %v909 = vadd.f32 %v782, %v557
        %v910 = vadd.f32 %v782, %v562
        %v911 = vadd.f32 %v782, %v567
        %v912 = vadd.f32 %v782, %v572
        %v913 = vadd.f32 %v782, %v577
        %v914 = vadd.f32 %v782, %v582
        %v915 = vadd.f32 %v782, %v587
        %v916 = vadd.f32 %v782, %v592
        %v917 = vadd.f32 %v782, %v597
        %v918 = vadd.f32 %v782, %v602
        %v919 = vtanh.pop %v791
        %v920 = vtanh.pop %v792
        %v921 = vtanh.pop %v793
        %v922 = vtanh.pop %v794
        %v923 = vtanh.pop %v795
        %v924 = vtanh.pop %v796
        %v925 = vtanh.pop %v797
        %v926 = vtanh.pop %v798
        %v927 = vtanh.pop %v799
        %v928 = vtanh.pop %v800
        %v929 = vtanh.pop %v801
        %v930 = vtanh.pop %v802
        %v931 = vtanh.pop %v803
        %v932 = vtanh.pop %v804
        %v933 = vtanh.pop %v805
        %v934 = vtanh.pop %v806
        %v935 = vtanh.pop %v807
        %v936 = vtanh.pop %v808
        %v937 = vtanh.pop %v809
        %v938 = vtanh.pop %v810
        %v939 = vtanh.pop %v811
        %v940 = vtanh.pop %v812
        %v941 = vtanh.pop %v813
        %v942 = vtanh.pop %v814
        %v943 = vtanh.pop %v815
        %v944 = vtanh.pop %v816
        %v945 = vtanh.pop %v817
        %v946 = vtanh.pop %v818
        %v947 = vtanh.pop %v819
        %v948 = vtanh.pop %v820
        %v949 = vtanh.pop %v821
        %v950 = vtanh.pop %v822
        %v951 = vtanh.pop %v823
        %v952 = vtanh.pop %v824
        %v953 = vtanh.pop %v825
        %v954 = vtanh.pop %v826
        %v955 = vtanh.pop %v827
        %v956 = vtanh.pop %v828
        %v957 = vtanh.pop %v829
        %v958 = vtanh.pop %v830
        %v959 = vtanh.pop %v831
        %v960 = vtanh.pop %v832
        %v961 = vtanh.pop %v833
        %v962 = vtanh.pop %v834
        %v963 = vtanh.pop %v835
        %v964 = vtanh.pop %v836
        %v965 = vtanh.pop %v837
        %v966 = vtanh.pop %v838
        %v967 = vtanh.pop %v839
        %v968 = vtanh.pop %v840
        %v969 = vtanh.pop %v841
        %v970 = vtanh.pop %v842
        %v971 = vtanh.pop %v843
        %v972 = vtanh.pop %v844
        %v973 = vtanh.pop %v845
        %v974 = vtanh.pop %v846
        %v975 = vtanh.pop %v847
        %v976 = vtanh.pop %v848
        %v977 = vtanh.pop %v849
        %v978 = vtanh.pop %v850
        %v979 = vtanh.pop %v851
        %v980 = vtanh.pop %v852
        %v981 = vtanh.pop %v853
        %v982 = vtanh.pop %v854
        %v983 = vtanh.pop %v855
        %v984 = vtanh.pop %v856
        %v985 = vtanh.pop %v857
        %v986 = vtanh.pop %v858
        %v987 = vtanh.pop %v859
        %v988 = vtanh.pop %v860
        %v989 = vtanh.pop %v861
        %v990 = vtanh.pop %v862
        %v991 = vtanh.pop %v863
        %v992 = vtanh.pop %v864
        %v993 = vtanh.pop %v865
        %v994 = vtanh.pop %v866
        %v995 = vtanh.pop %v867
        %v996 = vtanh.pop %v868
        %v997 = vtanh.pop %v869
        %v998 = vtanh.pop %v870
        %v999 = vtanh.pop %v871
        %v1000 = vtanh.pop %v872
        %v1001 = vtanh.pop %v873
        %v1002 = vtanh.pop %v874
        %v1003 = vtanh.pop %v875
        %v1004 = vtanh.pop %v876
        %v1005 = vtanh.pop %v877
        %v1006 = vtanh.pop %v878
        %v1007 = vtanh.pop %v879
        %v1008 = vtanh.pop %v880
        %v1009 = vtanh.pop %v881
        %v1010 = vtanh.pop %v882
        %v1011 = vtanh.pop %v883
        %v1012 = vtanh.pop %v884
        %v1013 = vtanh.pop %v885
        %v1014 = vtanh.pop %v886
        %v1015 = vtanh.pop %v887
        %v1016 = vtanh.pop %v888
        %v1017 = vtanh.pop %v889
        %v1018 = vtanh.pop %v890
        %v1019 = vtanh.pop %v891
        %v1020 = vtanh.pop %v892
        %v1021 = vtanh.pop %v893
        %v1022 = vtanh.pop %v894
        %v1023 = vtanh.pop %v895
        %v1024 = vtanh.pop %v896
        %v1025 = vtanh.pop %v897
        %v1026 = vtanh.pop %v898
        %v1027 = vtanh.pop %v899
        %v1028 = vtanh.pop %v900
        %v1029 = vtanh.pop %v901
        %v1030 = vtanh.pop %v902
        %v1031 = vtanh.pop %v903
        %v1032 = vtanh.pop %v904
        %v1033 = vtanh.pop %v905
        %v1034 = vtanh.pop %v906
        %v1035 = vtanh.pop %v907
        %v1036 = vtanh.pop %v908
        %v1037 = vtanh.pop %v909
        %v1038 = vtanh.pop %v910
        %v1039 = vtanh.pop %v911
        %v1040 = vtanh.pop %v912
        %v1041 = vtanh.pop %v913
        %v1042 = vtanh.pop %v914
        %v1043 = vtanh.pop %v915
        %v1044 = vtanh.pop %v916
        %v1045 = vtanh.pop %v917
        %v1046 = vtanh.pop %v918
        %v1048 = vlaneseq
        %v1049 = vshrl.u32 %v1048, 7
        %v1050 = vsub.s32 0, %v1049
        %v1051 = vrot.slane %v606, %v1050
        %v1053 = vmul.f32 %v919, %v1051
        %v1054 = vmul.f32 %v920, %v1051
        %v1055 = vmul.f32 %v921, %v1051
        %v1056 = vmul.f32 %v922, %v1051
        %v1057 = vmul.f32 %v923, %v1051
        %v1058 = vmul.f32 %v924, %v1051
        %v1059 = vmul.f32 %v925, %v1051
        %v1060 = vmul.f32 %v926, %v1051
        %v1061 = vmul.f32 %v927, %v1051
        %v1062 = vmul.f32 %v928, %v1051
        %v1063 = vmul.f32 %v929, %v1051
        %v1064 = vmul.f32 %v930, %v1051
        %v1065 = vmul.f32 %v931, %v1051
        %v1066 = vmul.f32 %v932, %v1051
        %v1067 = vmul.f32 %v933, %v1051
        %v1068 = vmul.f32 %v934, %v1051
        %v1069 = vmul.f32 %v935, %v1051
        %v1070 = vmul.f32 %v936, %v1051
        %v1071 = vmul.f32 %v937, %v1051
        %v1072 = vmul.f32 %v938, %v1051
        %v1073 = vmul.f32 %v939, %v1051
        %v1074 = vmul.f32 %v940, %v1051
        %v1075 = vmul.f32 %v941, %v1051
        %v1076 = vmul.f32 %v942, %v1051
        %v1077 = vmul.f32 %v943, %v1051
        %v1078 = vmul.f32 %v944, %v1051
        %v1079 = vmul.f32 %v945, %v1051
        %v1080 = vmul.f32 %v946, %v1051
        %v1081 = vmul.f32 %v947, %v1051
        %v1082 = vmul.f32 %v948, %v1051
        %v1083 = vmul.f32 %v949, %v1051
        %v1084 = vmul.f32 %v950, %v1051
        %v1085 = vmul.f32 %v951, %v1051
        %v1086 = vmul.f32 %v952, %v1051
        %v1087 = vmul.f32 %v953, %v1051
        %v1088 = vmul.f32 %v954, %v1051
        %v1089 = vmul.f32 %v955, %v1051
        %v1090 = vmul.f32 %v956, %v1051
        %v1091 = vmul.f32 %v957, %v1051
        %v1092 = vmul.f32 %v958, %v1051
        %v1093 = vmul.f32 %v959, %v1051
        %v1094 = vmul.f32 %v960, %v1051
        %v1095 = vmul.f32 %v961, %v1051
        %v1096 = vmul.f32 %v962, %v1051
        %v1097 = vmul.f32 %v963, %v1051
        %v1098 = vmul.f32 %v964, %v1051
        %v1099 = vmul.f32 %v965, %v1051
        %v1100 = vmul.f32 %v966, %v1051
        %v1101 = vmul.f32 %v967, %v1051
        %v1102 = vmul.f32 %v968, %v1051
        %v1103 = vmul.f32 %v969, %v1051
        %v1104 = vmul.f32 %v970, %v1051
        %v1105 = vmul.f32 %v971, %v1051
        %v1106 = vmul.f32 %v972, %v1051
        %v1107 = vmul.f32 %v973, %v1051
        %v1108 = vmul.f32 %v974, %v1051
        %v1109 = vmul.f32 %v975, %v1051
        %v1110 = vmul.f32 %v976, %v1051
        %v1111 = vmul.f32 %v977, %v1051
        %v1112 = vmul.f32 %v978, %v1051
        %v1113 = vmul.f32 %v979, %v1051
        %v1114 = vmul.f32 %v980, %v1051
        %v1115 = vmul.f32 %v981, %v1051
        %v1116 = vmul.f32 %v982, %v1051
        %v1117 = vmul.f32 %v983, %v1051
        %v1118 = vmul.f32 %v984, %v1051
        %v1119 = vmul.f32 %v985, %v1051
        %v1120 = vmul.f32 %v986, %v1051
        %v1121 = vmul.f32 %v987, %v1051
        %v1122 = vmul.f32 %v988, %v1051
        %v1123 = vmul.f32 %v989, %v1051
        %v1124 = vmul.f32 %v990, %v1051
        %v1125 = vmul.f32 %v991, %v1051
        %v1126 = vmul.f32 %v992, %v1051
        %v1127 = vmul.f32 %v993, %v1051
        %v1128 = vmul.f32 %v994, %v1051
        %v1129 = vmul.f32 %v995, %v1051
        %v1130 = vmul.f32 %v996, %v1051
        %v1131 = vmul.f32 %v997, %v1051
        %v1132 = vmul.f32 %v998, %v1051
        %v1133 = vmul.f32 %v999, %v1051
        %v1134 = vmul.f32 %v1000, %v1051
        %v1135 = vmul.f32 %v1001, %v1051
        %v1136 = vmul.f32 %v1002, %v1051
        %v1137 = vmul.f32 %v1003, %v1051
        %v1138 = vmul.f32 %v1004, %v1051
        %v1139 = vmul.f32 %v1005, %v1051
        %v1140 = vmul.f32 %v1006, %v1051
        %v1141 = vmul.f32 %v1007, %v1051
        %v1142 = vmul.f32 %v1008, %v1051
        %v1143 = vmul.f32 %v1009, %v1051
        %v1144 = vmul.f32 %v1010, %v1051
        %v1145 = vmul.f32 %v1011, %v1051
        %v1146 = vmul.f32 %v1012, %v1051
        %v1147 = vmul.f32 %v1013, %v1051
        %v1148 = vmul.f32 %v1014, %v1051
        %v1149 = vmul.f32 %v1015, %v1051
        %v1150 = vmul.f32 %v1016, %v1051
        %v1151 = vmul.f32 %v1017, %v1051
        %v1152 = vmul.f32 %v1018, %v1051
        %v1153 = vmul.f32 %v1019, %v1051
        %v1154 = vmul.f32 %v1020, %v1051
        %v1155 = vmul.f32 %v1021, %v1051
        %v1156 = vmul.f32 %v1022, %v1051
        %v1157 = vmul.f32 %v1023, %v1051
        %v1158 = vmul.f32 %v1024, %v1051
        %v1159 = vmul.f32 %v1025, %v1051
        %v1160 = vmul.f32 %v1026, %v1051
        %v1161 = vmul.f32 %v1027, %v1051
        %v1162 = vmul.f32 %v1028, %v1051
        %v1163 = vmul.f32 %v1029, %v1051
        %v1164 = vmul.f32 %v1030, %v1051
        %v1165 = vmul.f32 %v1031, %v1051
        %v1166 = vmul.f32 %v1032, %v1051
        %v1167 = vmul.f32 %v1033, %v1051
        %v1168 = vmul.f32 %v1034, %v1051
        %v1169 = vmul.f32 %v1035, %v1051
        %v1170 = vmul.f32 %v1036, %v1051
        %v1171 = vmul.f32 %v1037, %v1051
        %v1172 = vmul.f32 %v1038, %v1051
        %v1173 = vmul.f32 %v1039, %v1051
        %v1174 = vmul.f32 %v1040, %v1051
        %v1175 = vmul.f32 %v1041, %v1051
        %v1176 = vmul.f32 %v1042, %v1051
        %v1177 = vmul.f32 %v1043, %v1051
        %v1178 = vmul.f32 %v1044, %v1051
        %v1179 = vmul.f32 %v1045, %v1051
        %v1180 = vmul.f32 %v1046, %v1051
        %1181 = vadd.xlane.f32.xlu0 %v1053
        %v1182 = vpop.xlane.xlu0 %1181
        %1183 = vadd.xlane.f32.xlu0 %v1054
        %v1184 = vpop.xlane.xlu0 %1183
        %1185 = vadd.xlane.f32.xlu0 %v1055
        %v1186 = vpop.xlane.xlu0 %1185
        %1187 = vadd.xlane.f32.xlu0 %v1056
        %v1188 = vpop.xlane.xlu0 %1187
        %1189 = vadd.xlane.f32.xlu0 %v1057
        %v1190 = vpop.xlane.xlu0 %1189
        %1191 = vadd.xlane.f32.xlu0 %v1058
        %v1192 = vpop.xlane.xlu0 %1191
        %1193 = vadd.xlane.f32.xlu0 %v1059
        %v1194 = vpop.xlane.xlu0 %1193
        %1195 = vadd.xlane.f32.xlu0 %v1060
        %v1196 = vpop.xlane.xlu0 %1195
        %1197 = vadd.xlane.f32.xlu0 %v1061
        %v1198 = vpop.xlane.xlu0 %1197
        %1199 = vadd.xlane.f32.xlu0 %v1062
        %v1200 = vpop.xlane.xlu0 %1199
        %1201 = vadd.xlane.f32.xlu0 %v1063
        %v1202 = vpop.xlane.xlu0 %1201
        %1203 = vadd.xlane.f32.xlu0 %v1064
        %v1204 = vpop.xlane.xlu0 %1203
        %1205 = vadd.xlane.f32.xlu0 %v1065
        %v1206 = vpop.xlane.xlu0 %1205
        %1207 = vadd.xlane.f32.xlu0 %v1066
        %v1208 = vpop.xlane.xlu0 %1207
        %1209 = vadd.xlane.f32.xlu0 %v1067
        %v1210 = vpop.xlane.xlu0 %1209
        %1211 = vadd.xlane.f32.xlu0 %v1068
        %v1212 = vpop.xlane.xlu0 %1211
        %1213 = vadd.xlane.f32.xlu0 %v1069
        %v1214 = vpop.xlane.xlu0 %1213
        %1215 = vadd.xlane.f32.xlu0 %v1070
        %v1216 = vpop.xlane.xlu0 %1215
        %1217 = vadd.xlane.f32.xlu0 %v1071
        %v1218 = vpop.xlane.xlu0 %1217
        %1219 = vadd.xlane.f32.xlu0 %v1072
        %v1220 = vpop.xlane.xlu0 %1219
        %1221 = vadd.xlane.f32.xlu0 %v1073
        %v1222 = vpop.xlane.xlu0 %1221
        %1223 = vadd.xlane.f32.xlu0 %v1074
        %v1224 = vpop.xlane.xlu0 %1223
        %1225 = vadd.xlane.f32.xlu0 %v1075
        %v1226 = vpop.xlane.xlu0 %1225
        %1227 = vadd.xlane.f32.xlu0 %v1076
        %v1228 = vpop.xlane.xlu0 %1227
        %1229 = vadd.xlane.f32.xlu0 %v1077
        %v1230 = vpop.xlane.xlu0 %1229
        %1231 = vadd.xlane.f32.xlu0 %v1078
        %v1232 = vpop.xlane.xlu0 %1231
        %1233 = vadd.xlane.f32.xlu0 %v1079
        %v1234 = vpop.xlane.xlu0 %1233
        %1235 = vadd.xlane.f32.xlu0 %v1080
        %v1236 = vpop.xlane.xlu0 %1235
        %1237 = vadd.xlane.f32.xlu0 %v1081
        %v1238 = vpop.xlane.xlu0 %1237
        %1239 = vadd.xlane.f32.xlu0 %v1082
        %v1240 = vpop.xlane.xlu0 %1239
        %1241 = vadd.xlane.f32.xlu0 %v1083
        %v1242 = vpop.xlane.xlu0 %1241
        %1243 = vadd.xlane.f32.xlu0 %v1084
        %v1244 = vpop.xlane.xlu0 %1243
        %1245 = vadd.xlane.f32.xlu0 %v1085
        %v1246 = vpop.xlane.xlu0 %1245
        %1247 = vadd.xlane.f32.xlu0 %v1086
        %v1248 = vpop.xlane.xlu0 %1247
        %1249 = vadd.xlane.f32.xlu0 %v1087
        %v1250 = vpop.xlane.xlu0 %1249
        %1251 = vadd.xlane.f32.xlu0 %v1088
        %v1252 = vpop.xlane.xlu0 %1251
        %1253 = vadd.xlane.f32.xlu0 %v1089
        %v1254 = vpop.xlane.xlu0 %1253
        %1255 = vadd.xlane.f32.xlu0 %v1090
        %v1256 = vpop.xlane.xlu0 %1255
        %1257 = vadd.xlane.f32.xlu0 %v1091
        %v1258 = vpop.xlane.xlu0 %1257
        %1259 = vadd.xlane.f32.xlu0 %v1092
        %v1260 = vpop.xlane.xlu0 %1259
        %1261 = vadd.xlane.f32.xlu0 %v1093
        %v1262 = vpop.xlane.xlu0 %1261
        %1263 = vadd.xlane.f32.xlu0 %v1094
        %v1264 = vpop.xlane.xlu0 %1263
        %1265 = vadd.xlane.f32.xlu0 %v1095
        %v1266 = vpop.xlane.xlu0 %1265
        %1267 = vadd.xlane.f32.xlu0 %v1096
        %v1268 = vpop.xlane.xlu0 %1267
        %1269 = vadd.xlane.f32.xlu0 %v1097
        %v1270 = vpop.xlane.xlu0 %1269
        %1271 = vadd.xlane.f32.xlu0 %v1098
        %v1272 = vpop.xlane.xlu0 %1271
        %1273 = vadd.xlane.f32.xlu0 %v1099
        %v1274 = vpop.xlane.xlu0 %1273
        %1275 = vadd.xlane.f32.xlu0 %v1100
        %v1276 = vpop.xlane.xlu0 %1275
        %1277 = vadd.xlane.f32.xlu0 %v1101
        %v1278 = vpop.xlane.xlu0 %1277
        %1279 = vadd.xlane.f32.xlu0 %v1102
        %v1280 = vpop.xlane.xlu0 %1279
        %1281 = vadd.xlane.f32.xlu0 %v1103
        %v1282 = vpop.xlane.xlu0 %1281
        %1283 = vadd.xlane.f32.xlu0 %v1104
        %v1284 = vpop.xlane.xlu0 %1283
        %1285 = vadd.xlane.f32.xlu0 %v1105
        %v1286 = vpop.xlane.xlu0 %1285
        %1287 = vadd.xlane.f32.xlu0 %v1106
        %v1288 = vpop.xlane.xlu0 %1287
        %1289 = vadd.xlane.f32.xlu0 %v1107
        %v1290 = vpop.xlane.xlu0 %1289
        %1291 = vadd.xlane.f32.xlu0 %v1108
        %v1292 = vpop.xlane.xlu0 %1291
        %1293 = vadd.xlane.f32.xlu0 %v1109
        %v1294 = vpop.xlane.xlu0 %1293
        %1295 = vadd.xlane.f32.xlu0 %v1110
        %v1296 = vpop.xlane.xlu0 %1295
        %1297 = vadd.xlane.f32.xlu0 %v1111
        %v1298 = vpop.xlane.xlu0 %1297
        %1299 = vadd.xlane.f32.xlu0 %v1112
        %v1300 = vpop.xlane.xlu0 %1299
        %1301 = vadd.xlane.f32.xlu0 %v1113
        %v1302 = vpop.xlane.xlu0 %1301
        %1303 = vadd.xlane.f32.xlu0 %v1114
        %v1304 = vpop.xlane.xlu0 %1303
        %1305 = vadd.xlane.f32.xlu0 %v1115
        %v1306 = vpop.xlane.xlu0 %1305
        %1307 = vadd.xlane.f32.xlu0 %v1116
        %v1308 = vpop.xlane.xlu0 %1307
        %1309 = vadd.xlane.f32.xlu0 %v1117
        %v1310 = vpop.xlane.xlu0 %1309
        %1311 = vadd.xlane.f32.xlu0 %v1118
        %v1312 = vpop.xlane.xlu0 %1311
        %1313 = vadd.xlane.f32.xlu0 %v1119
        %v1314 = vpop.xlane.xlu0 %1313
        %1315 = vadd.xlane.f32.xlu0 %v1120
        %v1316 = vpop.xlane.xlu0 %1315
        %1317 = vadd.xlane.f32.xlu0 %v1121
        %v1318 = vpop.xlane.xlu0 %1317
        %1319 = vadd.xlane.f32.xlu0 %v1122
        %v1320 = vpop.xlane.xlu0 %1319
        %1321 = vadd.xlane.f32.xlu0 %v1123
        %v1322 = vpop.xlane.xlu0 %1321
        %1323 = vadd.xlane.f32.xlu0 %v1124
        %v1324 = vpop.xlane.xlu0 %1323
        %1325 = vadd.xlane.f32.xlu0 %v1125
        %v1326 = vpop.xlane.xlu0 %1325
        %1327 = vadd.xlane.f32.xlu0 %v1126
        %v1328 = vpop.xlane.xlu0 %1327
        %1329 = vadd.xlane.f32.xlu0 %v1127
        %v1330 = vpop.xlane.xlu0 %1329
        %1331 = vadd.xlane.f32.xlu0 %v1128
        %v1332 = vpop.xlane.xlu0 %1331
        %1333 = vadd.xlane.f32.xlu0 %v1129
        %v1334 = vpop.xlane.xlu0 %1333
        %1335 = vadd.xlane.f32.xlu0 %v1130
        %v1336 = vpop.xlane.xlu0 %1335
        %1337 = vadd.xlane.f32.xlu0 %v1131
        %v1338 = vpop.xlane.xlu0 %1337
        %1339 = vadd.xlane.f32.xlu0 %v1132
        %v1340 = vpop.xlane.xlu0 %1339
        %1341 = vadd.xlane.f32.xlu0 %v1133
        %v1342 = vpop.xlane.xlu0 %1341
        %1343 = vadd.xlane.f32.xlu0 %v1134
        %v1344 = vpop.xlane.xlu0 %1343
        %1345 = vadd.xlane.f32.xlu0 %v1135
        %v1346 = vpop.xlane.xlu0 %1345
        %1347 = vadd.xlane.f32.xlu0 %v1136
        %v1348 = vpop.xlane.xlu0 %1347
        %1349 = vadd.xlane.f32.xlu0 %v1137
        %v1350 = vpop.xlane.xlu0 %1349
        %1351 = vadd.xlane.f32.xlu0 %v1138
        %v1352 = vpop.xlane.xlu0 %1351
        %1353 = vadd.xlane.f32.xlu0 %v1139
        %v1354 = vpop.xlane.xlu0 %1353
        %1355 = vadd.xlane.f32.xlu0 %v1140
        %v1356 = vpop.xlane.xlu0 %1355
        %1357 = vadd.xlane.f32.xlu0 %v1141
        %v1358 = vpop.xlane.xlu0 %1357
        %1359 = vadd.xlane.f32.xlu0 %v1142
        %v1360 = vpop.xlane.xlu0 %1359
        %1361 = vadd.xlane.f32.xlu0 %v1143
        %v1362 = vpop.xlane.xlu0 %1361
        %1363 = vadd.xlane.f32.xlu0 %v1144
        %v1364 = vpop.xlane.xlu0 %1363
        %1365 = vadd.xlane.f32.xlu0 %v1145
        %v1366 = vpop.xlane.xlu0 %1365
        %1367 = vadd.xlane.f32.xlu0 %v1146
        %v1368 = vpop.xlane.xlu0 %1367
        %1369 = vadd.xlane.f32.xlu0 %v1147
        %v1370 = vpop.xlane.xlu0 %1369
        %1371 = vadd.xlane.f32.xlu0 %v1148
        %v1372 = vpop.xlane.xlu0 %1371
        %1373 = vadd.xlane.f32.xlu0 %v1149
        %v1374 = vpop.xlane.xlu0 %1373
        %1375 = vadd.xlane.f32.xlu0 %v1150
        %v1376 = vpop.xlane.xlu0 %1375
        %1377 = vadd.xlane.f32.xlu0 %v1151
        %v1378 = vpop.xlane.xlu0 %1377
        %1379 = vadd.xlane.f32.xlu0 %v1152
        %v1380 = vpop.xlane.xlu0 %1379
        %1381 = vadd.xlane.f32.xlu0 %v1153
        %v1382 = vpop.xlane.xlu0 %1381
        %1383 = vadd.xlane.f32.xlu0 %v1154
        %v1384 = vpop.xlane.xlu0 %1383
        %1385 = vadd.xlane.f32.xlu0 %v1155
        %v1386 = vpop.xlane.xlu0 %1385
        %1387 = vadd.xlane.f32.xlu0 %v1156
        %v1388 = vpop.xlane.xlu0 %1387
        %1389 = vadd.xlane.f32.xlu0 %v1157
        %v1390 = vpop.xlane.xlu0 %1389
        %1391 = vadd.xlane.f32.xlu0 %v1158
        %v1392 = vpop.xlane.xlu0 %1391
        %1393 = vadd.xlane.f32.xlu0 %v1159
        %v1394 = vpop.xlane.xlu0 %1393
        %1395 = vadd.xlane.f32.xlu0 %v1160
        %v1396 = vpop.xlane.xlu0 %1395
        %1397 = vadd.xlane.f32.xlu0 %v1161
        %v1398 = vpop.xlane.xlu0 %1397
        %1399 = vadd.xlane.f32.xlu0 %v1162
        %v1400 = vpop.xlane.xlu0 %1399
        %1401 = vadd.xlane.f32.xlu0 %v1163
        %v1402 = vpop.xlane.xlu0 %1401
        %1403 = vadd.xlane.f32.xlu0 %v1164
        %v1404 = vpop.xlane.xlu0 %1403
        %1405 = vadd.xlane.f32.xlu0 %v1165
        %v1406 = vpop.xlane.xlu0 %1405
        %1407 = vadd.xlane.f32.xlu0 %v1166
        %v1408 = vpop.xlane.xlu0 %1407
        %1409 = vadd.xlane.f32.xlu0 %v1167
        %v1410 = vpop.xlane.xlu0 %1409
        %1411 = vadd.xlane.f32.xlu0 %v1168
        %v1412 = vpop.xlane.xlu0 %1411
        %1413 = vadd.xlane.f32.xlu0 %v1169
        %v1414 = vpop.xlane.xlu0 %1413
        %1415 = vadd.xlane.f32.xlu0 %v1170
        %v1416 = vpop.xlane.xlu0 %1415
        %1417 = vadd.xlane.f32.xlu0 %v1171
        %v1418 = vpop.xlane.xlu0 %1417
        %1419 = vadd.xlane.f32.xlu0 %v1172
        %v1420 = vpop.xlane.xlu0 %1419
        %1421 = vadd.xlane.f32.xlu0 %v1173
        %v1422 = vpop.xlane.xlu0 %1421
        %1423 = vadd.xlane.f32.xlu0 %v1174
        %v1424 = vpop.xlane.xlu0 %1423
        %1425 = vadd.xlane.f32.xlu0 %v1175
        %v1426 = vpop.xlane.xlu0 %1425
        %1427 = vadd.xlane.f32.xlu0 %v1176
        %v1428 = vpop.xlane.xlu0 %1427
        %1429 = vadd.xlane.f32.xlu0 %v1177
        %v1430 = vpop.xlane.xlu0 %1429
        %1431 = vadd.xlane.f32.xlu0 %v1178
        %v1432 = vpop.xlane.xlu0 %1431
        %1433 = vadd.xlane.f32.xlu0 %v1179
        %v1434 = vpop.xlane.xlu0 %1433
        %1435 = vadd.xlane.f32.xlu0 %v1180
        %v1436 = vpop.xlane.xlu0 %1435
        %v1438 = vlaneseq
        %v1439 = vshrl.u32 %v1438, 7
        %v1440 = vsub.s32 0, %v1439
        %v1441 = vrot.slane %v605, %v1440
        %1443 = vbcast.lane.b32.xlu0 %v1441, 256
        %v1444 = vpop.permute.xlu0 %1443
        %s1446 = sor.u32 256, 8
        %1447 = vbcast.lane.b32.xlu0 %v1441, %s1446
        %v1448 = vpop.permute.xlu0 %1447
        %s1450 = sor.u32 256, 16
        %1451 = vbcast.lane.b32.xlu0 %v1441, %s1450
        %v1452 = vpop.permute.xlu0 %1451
        %s1454 = sor.u32 256, 24
        %1455 = vbcast.lane.b32.xlu0 %v1441, %s1454
        %v1456 = vpop.permute.xlu0 %1455
        %s1458 = sor.u32 256, 32
        %1459 = vbcast.lane.b32.xlu0 %v1441, %s1458
        %v1460 = vpop.permute.xlu0 %1459
        %s1462 = sor.u32 256, 40
        %1463 = vbcast.lane.b32.xlu0 %v1441, %s1462
        %v1464 = vpop.permute.xlu0 %1463
        %s1466 = sor.u32 256, 48
        %1467 = vbcast.lane.b32.xlu0 %v1441, %s1466
        %v1468 = vpop.permute.xlu0 %1467
        %s1470 = sor.u32 256, 56
        %1471 = vbcast.lane.b32.xlu0 %v1441, %s1470
        %v1472 = vpop.permute.xlu0 %1471
        %s1474 = sor.u32 256, 64
        %1475 = vbcast.lane.b32.xlu0 %v1441, %s1474
        %v1476 = vpop.permute.xlu0 %1475
        %s1478 = sor.u32 256, 72
        %1479 = vbcast.lane.b32.xlu0 %v1441, %s1478
        %v1480 = vpop.permute.xlu0 %1479
        %s1482 = sor.u32 256, 80
        %1483 = vbcast.lane.b32.xlu0 %v1441, %s1482
        %v1484 = vpop.permute.xlu0 %1483
        %s1486 = sor.u32 256, 88
        %1487 = vbcast.lane.b32.xlu0 %v1441, %s1486
        %v1488 = vpop.permute.xlu0 %1487
        %s1490 = sor.u32 256, 96
        %1491 = vbcast.lane.b32.xlu0 %v1441, %s1490
        %v1492 = vpop.permute.xlu0 %1491
        %s1494 = sor.u32 256, 104
        %1495 = vbcast.lane.b32.xlu0 %v1441, %s1494
        %v1496 = vpop.permute.xlu0 %1495
        %s1498 = sor.u32 256, 112
        %1499 = vbcast.lane.b32.xlu0 %v1441, %s1498
        %v1500 = vpop.permute.xlu0 %1499
        %s1502 = sor.u32 256, 120
        %1503 = vbcast.lane.b32.xlu0 %v1441, %s1502
        %v1504 = vpop.permute.xlu0 %1503
        %v1521 = vadd.f32 %v1182, %v1444
        %v1522 = vadd.f32 %v1184, %v1448
        %v1523 = vadd.f32 %v1186, %v1452
        %v1524 = vadd.f32 %v1188, %v1456
        %v1525 = vadd.f32 %v1190, %v1460
        %v1526 = vadd.f32 %v1192, %v1464
        %v1527 = vadd.f32 %v1194, %v1468
        %v1528 = vadd.f32 %v1196, %v1472
        %v1529 = vadd.f32 %v1198, %v1476
        %v1530 = vadd.f32 %v1200, %v1480
        %v1531 = vadd.f32 %v1202, %v1484
        %v1532 = vadd.f32 %v1204, %v1488
        %v1533 = vadd.f32 %v1206, %v1492
        %v1534 = vadd.f32 %v1208, %v1496
        %v1535 = vadd.f32 %v1210, %v1500
        %v1536 = vadd.f32 %v1212, %v1504
        %v1537 = vadd.f32 %v1214, %v1444
        %v1538 = vadd.f32 %v1216, %v1448
        %v1539 = vadd.f32 %v1218, %v1452
        %v1540 = vadd.f32 %v1220, %v1456
        %v1541 = vadd.f32 %v1222, %v1460
        %v1542 = vadd.f32 %v1224, %v1464
        %v1543 = vadd.f32 %v1226, %v1468
        %v1544 = vadd.f32 %v1228, %v1472
        %v1545 = vadd.f32 %v1230, %v1476
        %v1546 = vadd.f32 %v1232, %v1480
        %v1547 = vadd.f32 %v1234, %v1484
        %v1548 = vadd.f32 %v1236, %v1488
        %v1549 = vadd.f32 %v1238, %v1492
        %v1550 = vadd.f32 %v1240, %v1496
        %v1551 = vadd.f32 %v1242, %v1500
        %v1552 = vadd.f32 %v1244, %v1504
        %v1553 = vadd.f32 %v1246, %v1444
        %v1554 = vadd.f32 %v1248, %v1448
        %v1555 = vadd.f32 %v1250, %v1452
        %v1556 = vadd.f32 %v1252, %v1456
        %v1557 = vadd.f32 %v1254, %v1460
        %v1558 = vadd.f32 %v1256, %v1464
        %v1559 = vadd.f32 %v1258, %v1468
        %v1560 = vadd.f32 %v1260, %v1472
        %v1561 = vadd.f32 %v1262, %v1476
        %v1562 = vadd.f32 %v1264, %v1480
        %v1563 = vadd.f32 %v1266, %v1484
        %v1564 = vadd.f32 %v1268, %v1488
        %v1565 = vadd.f32 %v1270, %v1492
        %v1566 = vadd.f32 %v1272, %v1496
        %v1567 = vadd.f32 %v1274, %v1500
        %v1568 = vadd.f32 %v1276, %v1504
        %v1569 = vadd.f32 %v1278, %v1444
        %v1570 = vadd.f32 %v1280, %v1448
        %v1571 = vadd.f32 %v1282, %v1452
        %v1572 = vadd.f32 %v1284, %v1456
        %v1573 = vadd.f32 %v1286, %v1460
        %v1574 = vadd.f32 %v1288, %v1464
        %v1575 = vadd.f32 %v1290, %v1468
        %v1576 = vadd.f32 %v1292, %v1472
        %v1577 = vadd.f32 %v1294, %v1476
        %v1578 = vadd.f32 %v1296, %v1480
        %v1579 = vadd.f32 %v1298, %v1484
        %v1580 = vadd.f32 %v1300, %v1488
        %v1581 = vadd.f32 %v1302, %v1492
        %v1582 = vadd.f32 %v1304, %v1496
        %v1583 = vadd.f32 %v1306, %v1500
        %v1584 = vadd.f32 %v1308, %v1504
        %v1585 = vadd.f32 %v1310, %v1444
        %v1586 = vadd.f32 %v1312, %v1448
        %v1587 = vadd.f32 %v1314, %v1452
        %v1588 = vadd.f32 %v1316, %v1456
        %v1589 = vadd.f32 %v1318, %v1460
        %v1590 = vadd.f32 %v1320, %v1464
        %v1591 = vadd.f32 %v1322, %v1468
        %v1592 = vadd.f32 %v1324, %v1472
        %v1593 = vadd.f32 %v1326, %v1476
        %v1594 = vadd.f32 %v1328, %v1480
        %v1595 = vadd.f32 %v1330, %v1484
        %v1596 = vadd.f32 %v1332, %v1488
        %v1597 = vadd.f32 %v1334, %v1492
        %v1598 = vadd.f32 %v1336, %v1496
        %v1599 = vadd.f32 %v1338, %v1500
        %v1600 = vadd.f32 %v1340, %v1504
        %v1601 = vadd.f32 %v1342, %v1444
        %v1602 = vadd.f32 %v1344, %v1448
        %v1603 = vadd.f32 %v1346, %v1452
        %v1604 = vadd.f32 %v1348, %v1456
        %v1605 = vadd.f32 %v1350, %v1460
        %v1606 = vadd.f32 %v1352, %v1464
        %v1607 = vadd.f32 %v1354, %v1468
        %v1608 = vadd.f32 %v1356, %v1472
        %v1609 = vadd.f32 %v1358, %v1476
        %v1610 = vadd.f32 %v1360, %v1480
        %v1611 = vadd.f32 %v1362, %v1484
        %v1612 = vadd.f32 %v1364, %v1488
        %v1613 = vadd.f32 %v1366, %v1492
        %v1614 = vadd.f32 %v1368, %v1496
        %v1615 = vadd.f32 %v1370, %v1500
        %v1616 = vadd.f32 %v1372, %v1504
        %v1617 = vadd.f32 %v1374, %v1444
        %v1618 = vadd.f32 %v1376, %v1448
        %v1619 = vadd.f32 %v1378, %v1452
        %v1620 = vadd.f32 %v1380, %v1456
        %v1621 = vadd.f32 %v1382, %v1460
        %v1622 = vadd.f32 %v1384, %v1464
        %v1623 = vadd.f32 %v1386, %v1468
        %v1624 = vadd.f32 %v1388, %v1472
        %v1625 = vadd.f32 %v1390, %v1476
        %v1626 = vadd.f32 %v1392, %v1480
        %v1627 = vadd.f32 %v1394, %v1484
        %v1628 = vadd.f32 %v1396, %v1488
        %v1629 = vadd.f32 %v1398, %v1492
        %v1630 = vadd.f32 %v1400, %v1496
        %v1631 = vadd.f32 %v1402, %v1500
        %v1632 = vadd.f32 %v1404, %v1504
        %v1633 = vadd.f32 %v1406, %v1444
        %v1634 = vadd.f32 %v1408, %v1448
        %v1635 = vadd.f32 %v1410, %v1452
        %v1636 = vadd.f32 %v1412, %v1456
        %v1637 = vadd.f32 %v1414, %v1460
        %v1638 = vadd.f32 %v1416, %v1464
        %v1639 = vadd.f32 %v1418, %v1468
        %v1640 = vadd.f32 %v1420, %v1472
        %v1641 = vadd.f32 %v1422, %v1476
        %v1642 = vadd.f32 %v1424, %v1480
        %v1643 = vadd.f32 %v1426, %v1484
        %v1644 = vadd.f32 %v1428, %v1488
        %v1645 = vadd.f32 %v1430, %v1492
        %v1646 = vadd.f32 %v1432, %v1496
        %v1647 = vadd.f32 %v1434, %v1500
        %v1648 = vadd.f32 %v1436, %v1504
        %1777 = vset.pattern.permute.xlu0 0
        %1778 = vperm.xlu0 %1777, %v1521
        %v1779 = vpop.permute.xlu0 %1778
        %1780 = vset.pattern.permute.xlu0 0
        %1781 = vperm.xlu0 %1780, %v1522
        %v1782 = vpop.permute.xlu0 %1781
        %1783 = vset.pattern.permute.xlu0 0
        %1784 = vperm.xlu0 %1783, %v1523
        %v1785 = vpop.permute.xlu0 %1784
        %1786 = vset.pattern.permute.xlu0 0
        %1787 = vperm.xlu0 %1786, %v1524
        %v1788 = vpop.permute.xlu0 %1787
        %1789 = vset.pattern.permute.xlu0 0
        %1790 = vperm.xlu0 %1789, %v1525
        %v1791 = vpop.permute.xlu0 %1790
        %1792 = vset.pattern.permute.xlu0 0
        %1793 = vperm.xlu0 %1792, %v1526
        %v1794 = vpop.permute.xlu0 %1793
        %1795 = vset.pattern.permute.xlu0 0
        %1796 = vperm.xlu0 %1795, %v1527
        %v1797 = vpop.permute.xlu0 %1796
        %1798 = vset.pattern.permute.xlu0 0
        %1799 = vperm.xlu0 %1798, %v1528
        %v1800 = vpop.permute.xlu0 %1799
        %1801 = vset.pattern.permute.xlu0 0
        %1802 = vperm.xlu0 %1801, %v1529
        %v1803 = vpop.permute.xlu0 %1802
        %1804 = vset.pattern.permute.xlu0 0
        %1805 = vperm.xlu0 %1804, %v1530
        %v1806 = vpop.permute.xlu0 %1805
        %1807 = vset.pattern.permute.xlu0 0
        %1808 = vperm.xlu0 %1807, %v1531
        %v1809 = vpop.permute.xlu0 %1808
        %1810 = vset.pattern.permute.xlu0 0
        %1811 = vperm.xlu0 %1810, %v1532
        %v1812 = vpop.permute.xlu0 %1811
        %1813 = vset.pattern.permute.xlu0 0
        %1814 = vperm.xlu0 %1813, %v1533
        %v1815 = vpop.permute.xlu0 %1814
        %1816 = vset.pattern.permute.xlu0 0
        %1817 = vperm.xlu0 %1816, %v1534
        %v1818 = vpop.permute.xlu0 %1817
        %1819 = vset.pattern.permute.xlu0 0
        %1820 = vperm.xlu0 %1819, %v1535
        %v1821 = vpop.permute.xlu0 %1820
        %1822 = vset.pattern.permute.xlu0 0
        %1823 = vperm.xlu0 %1822, %v1536
        %v1824 = vpop.permute.xlu0 %1823
        %1825 = vset.pattern.permute.xlu0 0
        %1826 = vperm.xlu0 %1825, %v1537
        %v1827 = vpop.permute.xlu0 %1826
        %1828 = vset.pattern.permute.xlu0 0
        %1829 = vperm.xlu0 %1828, %v1538
        %v1830 = vpop.permute.xlu0 %1829
        %1831 = vset.pattern.permute.xlu0 0
        %1832 = vperm.xlu0 %1831, %v1539
        %v1833 = vpop.permute.xlu0 %1832
        %1834 = vset.pattern.permute.xlu0 0
        %1835 = vperm.xlu0 %1834, %v1540
        %v1836 = vpop.permute.xlu0 %1835
        %1837 = vset.pattern.permute.xlu0 0
        %1838 = vperm.xlu0 %1837, %v1541
        %v1839 = vpop.permute.xlu0 %1838
        %1840 = vset.pattern.permute.xlu0 0
        %1841 = vperm.xlu0 %1840, %v1542
        %v1842 = vpop.permute.xlu0 %1841
        %1843 = vset.pattern.permute.xlu0 0
        %1844 = vperm.xlu0 %1843, %v1543
        %v1845 = vpop.permute.xlu0 %1844
        %1846 = vset.pattern.permute.xlu0 0
        %1847 = vperm.xlu0 %1846, %v1544
        %v1848 = vpop.permute.xlu0 %1847
        %1849 = vset.pattern.permute.xlu0 0
        %1850 = vperm.xlu0 %1849, %v1545
        %v1851 = vpop.permute.xlu0 %1850
        %1852 = vset.pattern.permute.xlu0 0
        %1853 = vperm.xlu0 %1852, %v1546
        %v1854 = vpop.permute.xlu0 %1853
        %1855 = vset.pattern.permute.xlu0 0
        %1856 = vperm.xlu0 %1855, %v1547
        %v1857 = vpop.permute.xlu0 %1856
        %1858 = vset.pattern.permute.xlu0 0
        %1859 = vperm.xlu0 %1858, %v1548
        %v1860 = vpop.permute.xlu0 %1859
        %1861 = vset.pattern.permute.xlu0 0
        %1862 = vperm.xlu0 %1861, %v1549
        %v1863 = vpop.permute.xlu0 %1862
        %1864 = vset.pattern.permute.xlu0 0
        %1865 = vperm.xlu0 %1864, %v1550
        %v1866 = vpop.permute.xlu0 %1865
        %1867 = vset.pattern.permute.xlu0 0
        %1868 = vperm.xlu0 %1867, %v1551
        %v1869 = vpop.permute.xlu0 %1868
        %1870 = vset.pattern.permute.xlu0 0
        %1871 = vperm.xlu0 %1870, %v1552
        %v1872 = vpop.permute.xlu0 %1871
        %1873 = vset.pattern.permute.xlu0 0
        %1874 = vperm.xlu0 %1873, %v1553
        %v1875 = vpop.permute.xlu0 %1874
        %1876 = vset.pattern.permute.xlu0 0
        %1877 = vperm.xlu0 %1876, %v1554
        %v1878 = vpop.permute.xlu0 %1877
        %1879 = vset.pattern.permute.xlu0 0
        %1880 = vperm.xlu0 %1879, %v1555
        %v1881 = vpop.permute.xlu0 %1880
        %1882 = vset.pattern.permute.xlu0 0
        %1883 = vperm.xlu0 %1882, %v1556
        %v1884 = vpop.permute.xlu0 %1883
        %1885 = vset.pattern.permute.xlu0 0
        %1886 = vperm.xlu0 %1885, %v1557
        %v1887 = vpop.permute.xlu0 %1886
        %1888 = vset.pattern.permute.xlu0 0
        %1889 = vperm.xlu0 %1888, %v1558
        %v1890 = vpop.permute.xlu0 %1889
        %1891 = vset.pattern.permute.xlu0 0
        %1892 = vperm.xlu0 %1891, %v1559
        %v1893 = vpop.permute.xlu0 %1892
        %1894 = vset.pattern.permute.xlu0 0
        %1895 = vperm.xlu0 %1894, %v1560
        %v1896 = vpop.permute.xlu0 %1895
        %1897 = vset.pattern.permute.xlu0 0
        %1898 = vperm.xlu0 %1897, %v1561
        %v1899 = vpop.permute.xlu0 %1898
        %1900 = vset.pattern.permute.xlu0 0
        %1901 = vperm.xlu0 %1900, %v1562
        %v1902 = vpop.permute.xlu0 %1901
        %1903 = vset.pattern.permute.xlu0 0
        %1904 = vperm.xlu0 %1903, %v1563
        %v1905 = vpop.permute.xlu0 %1904
        %1906 = vset.pattern.permute.xlu0 0
        %1907 = vperm.xlu0 %1906, %v1564
        %v1908 = vpop.permute.xlu0 %1907
        %1909 = vset.pattern.permute.xlu0 0
        %1910 = vperm.xlu0 %1909, %v1565
        %v1911 = vpop.permute.xlu0 %1910
        %1912 = vset.pattern.permute.xlu0 0
        %1913 = vperm.xlu0 %1912, %v1566
        %v1914 = vpop.permute.xlu0 %1913
        %1915 = vset.pattern.permute.xlu0 0
        %1916 = vperm.xlu0 %1915, %v1567
        %v1917 = vpop.permute.xlu0 %1916
        %1918 = vset.pattern.permute.xlu0 0
        %1919 = vperm.xlu0 %1918, %v1568
        %v1920 = vpop.permute.xlu0 %1919
        %1921 = vset.pattern.permute.xlu0 0
        %1922 = vperm.xlu0 %1921, %v1569
        %v1923 = vpop.permute.xlu0 %1922
        %1924 = vset.pattern.permute.xlu0 0
        %1925 = vperm.xlu0 %1924, %v1570
        %v1926 = vpop.permute.xlu0 %1925
        %1927 = vset.pattern.permute.xlu0 0
        %1928 = vperm.xlu0 %1927, %v1571
        %v1929 = vpop.permute.xlu0 %1928
        %1930 = vset.pattern.permute.xlu0 0
        %1931 = vperm.xlu0 %1930, %v1572
        %v1932 = vpop.permute.xlu0 %1931
        %1933 = vset.pattern.permute.xlu0 0
        %1934 = vperm.xlu0 %1933, %v1573
        %v1935 = vpop.permute.xlu0 %1934
        %1936 = vset.pattern.permute.xlu0 0
        %1937 = vperm.xlu0 %1936, %v1574
        %v1938 = vpop.permute.xlu0 %1937
        %1939 = vset.pattern.permute.xlu0 0
        %1940 = vperm.xlu0 %1939, %v1575
        %v1941 = vpop.permute.xlu0 %1940
        %1942 = vset.pattern.permute.xlu0 0
        %1943 = vperm.xlu0 %1942, %v1576
        %v1944 = vpop.permute.xlu0 %1943
        %1945 = vset.pattern.permute.xlu0 0
        %1946 = vperm.xlu0 %1945, %v1577
        %v1947 = vpop.permute.xlu0 %1946
        %1948 = vset.pattern.permute.xlu0 0
        %1949 = vperm.xlu0 %1948, %v1578
        %v1950 = vpop.permute.xlu0 %1949
        %1951 = vset.pattern.permute.xlu0 0
        %1952 = vperm.xlu0 %1951, %v1579
        %v1953 = vpop.permute.xlu0 %1952
        %1954 = vset.pattern.permute.xlu0 0
        %1955 = vperm.xlu0 %1954, %v1580
        %v1956 = vpop.permute.xlu0 %1955
        %1957 = vset.pattern.permute.xlu0 0
        %1958 = vperm.xlu0 %1957, %v1581
        %v1959 = vpop.permute.xlu0 %1958
        %1960 = vset.pattern.permute.xlu0 0
        %1961 = vperm.xlu0 %1960, %v1582
        %v1962 = vpop.permute.xlu0 %1961
        %1963 = vset.pattern.permute.xlu0 0
        %1964 = vperm.xlu0 %1963, %v1583
        %v1965 = vpop.permute.xlu0 %1964
        %1966 = vset.pattern.permute.xlu0 0
        %1967 = vperm.xlu0 %1966, %v1584
        %v1968 = vpop.permute.xlu0 %1967
        %1969 = vset.pattern.permute.xlu0 0
        %1970 = vperm.xlu0 %1969, %v1585
        %v1971 = vpop.permute.xlu0 %1970
        %1972 = vset.pattern.permute.xlu0 0
        %1973 = vperm.xlu0 %1972, %v1586
        %v1974 = vpop.permute.xlu0 %1973
        %1975 = vset.pattern.permute.xlu0 0
        %1976 = vperm.xlu0 %1975, %v1587
        %v1977 = vpop.permute.xlu0 %1976
        %1978 = vset.pattern.permute.xlu0 0
        %1979 = vperm.xlu0 %1978, %v1588
        %v1980 = vpop.permute.xlu0 %1979
        %1981 = vset.pattern.permute.xlu0 0
        %1982 = vperm.xlu0 %1981, %v1589
        %v1983 = vpop.permute.xlu0 %1982
        %1984 = vset.pattern.permute.xlu0 0
        %1985 = vperm.xlu0 %1984, %v1590
        %v1986 = vpop.permute.xlu0 %1985
        %1987 = vset.pattern.permute.xlu0 0
        %1988 = vperm.xlu0 %1987, %v1591
        %v1989 = vpop.permute.xlu0 %1988
        %1990 = vset.pattern.permute.xlu0 0
        %1991 = vperm.xlu0 %1990, %v1592
        %v1992 = vpop.permute.xlu0 %1991
        %1993 = vset.pattern.permute.xlu0 0
        %1994 = vperm.xlu0 %1993, %v1593
        %v1995 = vpop.permute.xlu0 %1994
        %1996 = vset.pattern.permute.xlu0 0
        %1997 = vperm.xlu0 %1996, %v1594
        %v1998 = vpop.permute.xlu0 %1997
        %1999 = vset.pattern.permute.xlu0 0
        %2000 = vperm.xlu0 %1999, %v1595
        %v2001 = vpop.permute.xlu0 %2000
        %2002 = vset.pattern.permute.xlu0 0
        %2003 = vperm.xlu0 %2002, %v1596
        %v2004 = vpop.permute.xlu0 %2003
        %2005 = vset.pattern.permute.xlu0 0
        %2006 = vperm.xlu0 %2005, %v1597
        %v2007 = vpop.permute.xlu0 %2006
        %2008 = vset.pattern.permute.xlu0 0
        %2009 = vperm.xlu0 %2008, %v1598
        %v2010 = vpop.permute.xlu0 %2009
        %2011 = vset.pattern.permute.xlu0 0
        %2012 = vperm.xlu0 %2011, %v1599
        %v2013 = vpop.permute.xlu0 %2012
        %2014 = vset.pattern.permute.xlu0 0
        %2015 = vperm.xlu0 %2014, %v1600
        %v2016 = vpop.permute.xlu0 %2015
        %2017 = vset.pattern.permute.xlu0 0
        %2018 = vperm.xlu0 %2017, %v1601
        %v2019 = vpop.permute.xlu0 %2018
        %2020 = vset.pattern.permute.xlu0 0
        %2021 = vperm.xlu0 %2020, %v1602
        %v2022 = vpop.permute.xlu0 %2021
        %2023 = vset.pattern.permute.xlu0 0
        %2024 = vperm.xlu0 %2023, %v1603
        %v2025 = vpop.permute.xlu0 %2024
        %2026 = vset.pattern.permute.xlu0 0
        %2027 = vperm.xlu0 %2026, %v1604
        %v2028 = vpop.permute.xlu0 %2027
        %2029 = vset.pattern.permute.xlu0 0
        %2030 = vperm.xlu0 %2029, %v1605
        %v2031 = vpop.permute.xlu0 %2030
        %2032 = vset.pattern.permute.xlu0 0
        %2033 = vperm.xlu0 %2032, %v1606
        %v2034 = vpop.permute.xlu0 %2033
        %2035 = vset.pattern.permute.xlu0 0
        %2036 = vperm.xlu0 %2035, %v1607
        %v2037 = vpop.permute.xlu0 %2036
        %2038 = vset.pattern.permute.xlu0 0
        %2039 = vperm.xlu0 %2038, %v1608
        %v2040 = vpop.permute.xlu0 %2039
        %2041 = vset.pattern.permute.xlu0 0
        %2042 = vperm.xlu0 %2041, %v1609
        %v2043 = vpop.permute.xlu0 %2042
        %2044 = vset.pattern.permute.xlu0 0
        %2045 = vperm.xlu0 %2044, %v1610
        %v2046 = vpop.permute.xlu0 %2045
        %2047 = vset.pattern.permute.xlu0 0
        %2048 = vperm.xlu0 %2047, %v1611
        %v2049 = vpop.permute.xlu0 %2048
        %2050 = vset.pattern.permute.xlu0 0
        %2051 = vperm.xlu0 %2050, %v1612
        %v2052 = vpop.permute.xlu0 %2051
        %2053 = vset.pattern.permute.xlu0 0
        %2054 = vperm.xlu0 %2053, %v1613
        %v2055 = vpop.permute.xlu0 %2054
        %2056 = vset.pattern.permute.xlu0 0
        %2057 = vperm.xlu0 %2056, %v1614
        %v2058 = vpop.permute.xlu0 %2057
        %2059 = vset.pattern.permute.xlu0 0
        %2060 = vperm.xlu0 %2059, %v1615
        %v2061 = vpop.permute.xlu0 %2060
        %2062 = vset.pattern.permute.xlu0 0
        %2063 = vperm.xlu0 %2062, %v1616
        %v2064 = vpop.permute.xlu0 %2063
        %2065 = vset.pattern.permute.xlu0 0
        %2066 = vperm.xlu0 %2065, %v1617
        %v2067 = vpop.permute.xlu0 %2066
        %2068 = vset.pattern.permute.xlu0 0
        %2069 = vperm.xlu0 %2068, %v1618
        %v2070 = vpop.permute.xlu0 %2069
        %2071 = vset.pattern.permute.xlu0 0
        %2072 = vperm.xlu0 %2071, %v1619
        %v2073 = vpop.permute.xlu0 %2072
        %2074 = vset.pattern.permute.xlu0 0
        %2075 = vperm.xlu0 %2074, %v1620
        %v2076 = vpop.permute.xlu0 %2075
        %2077 = vset.pattern.permute.xlu0 0
        %2078 = vperm.xlu0 %2077, %v1621
        %v2079 = vpop.permute.xlu0 %2078
        %2080 = vset.pattern.permute.xlu0 0
        %2081 = vperm.xlu0 %2080, %v1622
        %v2082 = vpop.permute.xlu0 %2081
        %2083 = vset.pattern.permute.xlu0 0
        %2084 = vperm.xlu0 %2083, %v1623
        %v2085 = vpop.permute.xlu0 %2084
        %2086 = vset.pattern.permute.xlu0 0
        %2087 = vperm.xlu0 %2086, %v1624
        %v2088 = vpop.permute.xlu0 %2087
        %2089 = vset.pattern.permute.xlu0 0
        %2090 = vperm.xlu0 %2089, %v1625
        %v2091 = vpop.permute.xlu0 %2090
        %2092 = vset.pattern.permute.xlu0 0
        %2093 = vperm.xlu0 %2092, %v1626
        %v2094 = vpop.permute.xlu0 %2093
        %2095 = vset.pattern.permute.xlu0 0
        %2096 = vperm.xlu0 %2095, %v1627
        %v2097 = vpop.permute.xlu0 %2096
        %2098 = vset.pattern.permute.xlu0 0
        %2099 = vperm.xlu0 %2098, %v1628
        %v2100 = vpop.permute.xlu0 %2099
        %2101 = vset.pattern.permute.xlu0 0
        %2102 = vperm.xlu0 %2101, %v1629
        %v2103 = vpop.permute.xlu0 %2102
        %2104 = vset.pattern.permute.xlu0 0
        %2105 = vperm.xlu0 %2104, %v1630
        %v2106 = vpop.permute.xlu0 %2105
        %2107 = vset.pattern.permute.xlu0 0
        %2108 = vperm.xlu0 %2107, %v1631
        %v2109 = vpop.permute.xlu0 %2108
        %2110 = vset.pattern.permute.xlu0 0
        %2111 = vperm.xlu0 %2110, %v1632
        %v2112 = vpop.permute.xlu0 %2111
        %2113 = vset.pattern.permute.xlu0 0
        %2114 = vperm.xlu0 %2113, %v1633
        %v2115 = vpop.permute.xlu0 %2114
        %2116 = vset.pattern.permute.xlu0 0
        %2117 = vperm.xlu0 %2116, %v1634
        %v2118 = vpop.permute.xlu0 %2117
        %2119 = vset.pattern.permute.xlu0 0
        %2120 = vperm.xlu0 %2119, %v1635
        %v2121 = vpop.permute.xlu0 %2120
        %2122 = vset.pattern.permute.xlu0 0
        %2123 = vperm.xlu0 %2122, %v1636
        %v2124 = vpop.permute.xlu0 %2123
        %2125 = vset.pattern.permute.xlu0 0
        %2126 = vperm.xlu0 %2125, %v1637
        %v2127 = vpop.permute.xlu0 %2126
        %2128 = vset.pattern.permute.xlu0 0
        %2129 = vperm.xlu0 %2128, %v1638
        %v2130 = vpop.permute.xlu0 %2129
        %2131 = vset.pattern.permute.xlu0 0
        %2132 = vperm.xlu0 %2131, %v1639
        %v2133 = vpop.permute.xlu0 %2132
        %2134 = vset.pattern.permute.xlu0 0
        %2135 = vperm.xlu0 %2134, %v1640
        %v2136 = vpop.permute.xlu0 %2135
        %2137 = vset.pattern.permute.xlu0 0
        %2138 = vperm.xlu0 %2137, %v1641
        %v2139 = vpop.permute.xlu0 %2138
        %2140 = vset.pattern.permute.xlu0 0
        %2141 = vperm.xlu0 %2140, %v1642
        %v2142 = vpop.permute.xlu0 %2141
        %2143 = vset.pattern.permute.xlu0 0
        %2144 = vperm.xlu0 %2143, %v1643
        %v2145 = vpop.permute.xlu0 %2144
        %2146 = vset.pattern.permute.xlu0 0
        %2147 = vperm.xlu0 %2146, %v1644
        %v2148 = vpop.permute.xlu0 %2147
        %2149 = vset.pattern.permute.xlu0 0
        %2150 = vperm.xlu0 %2149, %v1645
        %v2151 = vpop.permute.xlu0 %2150
        %2152 = vset.pattern.permute.xlu0 0
        %2153 = vperm.xlu0 %2152, %v1646
        %v2154 = vpop.permute.xlu0 %2153
        %2155 = vset.pattern.permute.xlu0 0
        %2156 = vperm.xlu0 %2155, %v1647
        %v2157 = vpop.permute.xlu0 %2156
        %2158 = vset.pattern.permute.xlu0 0
        %2159 = vperm.xlu0 %2158, %v1648
        %v2160 = vpop.permute.xlu0 %2159
        %v2161 = vlaneseq
        %v2162 = vand.u32 %v2161, 127
        %v2163 = vlaneseq
        %v2164 = vshrl.u32 %v2163, 7
        %v2165 = vsub.s32 %v2162, %v2164
        %v2166 = vrot.slane %v1779, %v2165
        %v2167 = vadd.s32 %v2162, 4294967288
        %v2168 = vlaneseq
        %v2169 = vshrl.u32 %v2168, 7
        %v2170 = vsub.s32 %v2167, %v2169
        %v2171 = vrot.slane %v1782, %v2170
        %vm2172 = vcmask 130112
        %v2173 = vsel %vm2172, %v2171, %v2166
        %v2174 = vadd.s32 %v2162, 4294967280
        %v2175 = vlaneseq
        %v2176 = vshrl.u32 %v2175, 7
        %v2177 = vsub.s32 %v2174, %v2176
        %v2178 = vrot.slane %v1785, %v2177
        %vm2179 = vcmask 195712
        %v2180 = vsel %vm2179, %v2178, %v2173
        %v2181 = vadd.s32 %v2162, 4294967272
        %v2182 = vlaneseq
        %v2183 = vshrl.u32 %v2182, 7
        %v2184 = vsub.s32 %v2181, %v2183
        %v2185 = vrot.slane %v1788, %v2184
        %vm2186 = vcmask 261312
        %v2187 = vsel %vm2186, %v2185, %v2180
        %v2188 = vadd.s32 %v2162, 4294967264
        %v2189 = vlaneseq
        %v2190 = vshrl.u32 %v2189, 7
        %v2191 = vsub.s32 %v2188, %v2190
        %v2192 = vrot.slane %v1791, %v2191
        %vm2193 = vcmask 326912
        %v2194 = vsel %vm2193, %v2192, %v2187
        %v2195 = vadd.s32 %v2162, 4294967256
        %v2196 = vlaneseq
        %v2197 = vshrl.u32 %v2196, 7
        %v2198 = vsub.s32 %v2195, %v2197
        %v2199 = vrot.slane %v1794, %v2198
        %vm2200 = vcmask 392512
        %v2201 = vsel %vm2200, %v2199, %v2194
        %v2202 = vadd.s32 %v2162, 4294967248
        %v2203 = vlaneseq
        %v2204 = vshrl.u32 %v2203, 7
        %v2205 = vsub.s32 %v2202, %v2204
        %v2206 = vrot.slane %v1797, %v2205
        %vm2207 = vcmask 458112
        %v2208 = vsel %vm2207, %v2206, %v2201
        %v2209 = vadd.s32 %v2162, 4294967240
        %v2210 = vlaneseq
        %v2211 = vshrl.u32 %v2210, 7
        %v2212 = vsub.s32 %v2209, %v2211
        %v2213 = vrot.slane %v1800, %v2212
        %vm2214 = vcmask 523712
        %v2215 = vsel %vm2214, %v2213, %v2208
        %v2216 = vadd.s32 %v2162, 4294967232
        %v2217 = vlaneseq
        %v2218 = vshrl.u32 %v2217, 7
        %v2219 = vsub.s32 %v2216, %v2218
        %v2220 = vrot.slane %v1803, %v2219
        %vm2221 = vcmask 589312
        %v2222 = vsel %vm2221, %v2220, %v2215
        %v2223 = vadd.s32 %v2162, 4294967224
        %v2224 = vlaneseq
        %v2225 = vshrl.u32 %v2224, 7
        %v2226 = vsub.s32 %v2223, %v2225
        %v2227 = vrot.slane %v1806, %v2226
        %vm2228 = vcmask 654912
        %v2229 = vsel %vm2228, %v2227, %v2222
        %v2230 = vadd.s32 %v2162, 4294967216
        %v2231 = vlaneseq
        %v2232 = vshrl.u32 %v2231, 7
        %v2233 = vsub.s32 %v2230, %v2232
        %v2234 = vrot.slane %v1809, %v2233
        %vm2235 = vcmask 720512
        %v2236 = vsel %vm2235, %v2234, %v2229
        %v2237 = vadd.s32 %v2162, 4294967208
        %v2238 = vlaneseq
        %v2239 = vshrl.u32 %v2238, 7
        %v2240 = vsub.s32 %v2237, %v2239
        %v2241 = vrot.slane %v1812, %v2240
        %vm2242 = vcmask 786112
        %v2243 = vsel %vm2242, %v2241, %v2236
        %v2244 = vadd.s32 %v2162, 4294967200
        %v2245 = vlaneseq
        %v2246 = vshrl.u32 %v2245, 7
        %v2247 = vsub.s32 %v2244, %v2246
        %v2248 = vrot.slane %v1815, %v2247
        %vm2249 = vcmask 851712
        %v2250 = vsel %vm2249, %v2248, %v2243
        %v2251 = vadd.s32 %v2162, 4294967192
        %v2252 = vlaneseq
        %v2253 = vshrl.u32 %v2252, 7
        %v2254 = vsub.s32 %v2251, %v2253
        %v2255 = vrot.slane %v1818, %v2254
        %vm2256 = vcmask 917312
        %v2257 = vsel %vm2256, %v2255, %v2250
        %v2258 = vadd.s32 %v2162, 4294967184
        %v2259 = vlaneseq
        %v2260 = vshrl.u32 %v2259, 7
        %v2261 = vsub.s32 %v2258, %v2260
        %v2262 = vrot.slane %v1821, %v2261
        %vm2263 = vcmask 982912
        %v2264 = vsel %vm2263, %v2262, %v2257
        %v2265 = vadd.s32 %v2162, 4294967176
        %v2266 = vlaneseq
        %v2267 = vshrl.u32 %v2266, 7
        %v2268 = vsub.s32 %v2265, %v2267
        %v2269 = vrot.slane %v1824, %v2268
        %vm2270 = vcmask 1048512
        %v2271 = vsel %vm2270, %v2269, %v2264
        %v2272 = vlaneseq
        %v2273 = vshrl.u32 %v2272, 7
        %v2274 = vsub.s32 %v2162, %v2273
        %v2275 = vrot.slane %v1827, %v2274
        %v2276 = vlaneseq
        %v2277 = vshrl.u32 %v2276, 7
        %v2278 = vsub.s32 %v2167, %v2277
        %v2279 = vrot.slane %v1830, %v2278
        %v2280 = vsel %vm2172, %v2279, %v2275
        %v2281 = vlaneseq
        %v2282 = vshrl.u32 %v2281, 7
        %v2283 = vsub.s32 %v2174, %v2282
        %v2284 = vrot.slane %v1833, %v2283
        %v2285 = vsel %vm2179, %v2284, %v2280
        %v2286 = vlaneseq
        %v2287 = vshrl.u32 %v2286, 7
        %v2288 = vsub.s32 %v2181, %v2287
        %v2289 = vrot.slane %v1836, %v2288
        %v2290 = vsel %vm2186, %v2289, %v2285
        %v2291 = vlaneseq
        %v2292 = vshrl.u32 %v2291, 7
        %v2293 = vsub.s32 %v2188, %v2292
        %v2294 = vrot.slane %v1839, %v2293
        %v2295 = vsel %vm2193, %v2294, %v2290
        %v2296 = vlaneseq
        %v2297 = vshrl.u32 %v2296, 7
        %v2298 = vsub.s32 %v2195, %v2297
        %v2299 = vrot.slane %v1842, %v2298
        %v2300 = vsel %vm2200, %v2299, %v2295
        %v2301 = vlaneseq
        %v2302 = vshrl.u32 %v2301, 7
        %v2303 = vsub.s32 %v2202, %v2302
        %v2304 = vrot.slane %v1845, %v2303
        %v2305 = vsel %vm2207, %v2304, %v2300
        %v2306 = vlaneseq
        %v2307 = vshrl.u32 %v2306, 7
        %v2308 = vsub.s32 %v2209, %v2307
        %v2309 = vrot.slane %v1848, %v2308
        %v2310 = vsel %vm2214, %v2309, %v2305
        %v2311 = vlaneseq
        %v2312 = vshrl.u32 %v2311, 7
        %v2313 = vsub.s32 %v2216, %v2312
        %v2314 = vrot.slane %v1851, %v2313
        %v2315 = vsel %vm2221, %v2314, %v2310
        %v2316 = vlaneseq
        %v2317 = vshrl.u32 %v2316, 7
        %v2318 = vsub.s32 %v2223, %v2317
        %v2319 = vrot.slane %v1854, %v2318
        %v2320 = vsel %vm2228, %v2319, %v2315
        %v2321 = vlaneseq
        %v2322 = vshrl.u32 %v2321, 7
        %v2323 = vsub.s32 %v2230, %v2322
        %v2324 = vrot.slane %v1857, %v2323
        %v2325 = vsel %vm2235, %v2324, %v2320
        %v2326 = vlaneseq
        %v2327 = vshrl.u32 %v2326, 7
        %v2328 = vsub.s32 %v2237, %v2327
        %v2329 = vrot.slane %v1860, %v2328
        %v2330 = vsel %vm2242, %v2329, %v2325
        %v2331 = vlaneseq
        %v2332 = vshrl.u32 %v2331, 7
        %v2333 = vsub.s32 %v2244, %v2332
        %v2334 = vrot.slane %v1863, %v2333
        %v2335 = vsel %vm2249, %v2334, %v2330
        %v2336 = vlaneseq
        %v2337 = vshrl.u32 %v2336, 7
        %v2338 = vsub.s32 %v2251, %v2337
        %v2339 = vrot.slane %v1866, %v2338
        %v2340 = vsel %vm2256, %v2339, %v2335
        %v2341 = vlaneseq
        %v2342 = vshrl.u32 %v2341, 7
        %v2343 = vsub.s32 %v2258, %v2342
        %v2344 = vrot.slane %v1869, %v2343
        %v2345 = vsel %vm2263, %v2344, %v2340
        %v2346 = vlaneseq
        %v2347 = vshrl.u32 %v2346, 7
        %v2348 = vsub.s32 %v2265, %v2347
        %v2349 = vrot.slane %v1872, %v2348
        %v2350 = vsel %vm2270, %v2349, %v2345
        %v2351 = vlaneseq
        %v2352 = vshrl.u32 %v2351, 7
        %v2353 = vsub.s32 %v2162, %v2352
        %v2354 = vrot.slane %v1875, %v2353
        %v2355 = vlaneseq
        %v2356 = vshrl.u32 %v2355, 7
        %v2357 = vsub.s32 %v2167, %v2356
        %v2358 = vrot.slane %v1878, %v2357
        %v2359 = vsel %vm2172, %v2358, %v2354
        %v2360 = vlaneseq
        %v2361 = vshrl.u32 %v2360, 7
        %v2362 = vsub.s32 %v2174, %v2361
        %v2363 = vrot.slane %v1881, %v2362
        %v2364 = vsel %vm2179, %v2363, %v2359
        %v2365 = vlaneseq
        %v2366 = vshrl.u32 %v2365, 7
        %v2367 = vsub.s32 %v2181, %v2366
        %v2368 = vrot.slane %v1884, %v2367
        %v2369 = vsel %vm2186, %v2368, %v2364
        %v2370 = vlaneseq
        %v2371 = vshrl.u32 %v2370, 7
        %v2372 = vsub.s32 %v2188, %v2371
        %v2373 = vrot.slane %v1887, %v2372
        %v2374 = vsel %vm2193, %v2373, %v2369
        %v2375 = vlaneseq
        %v2376 = vshrl.u32 %v2375, 7
        %v2377 = vsub.s32 %v2195, %v2376
        %v2378 = vrot.slane %v1890, %v2377
        %v2379 = vsel %vm2200, %v2378, %v2374
        %v2380 = vlaneseq
        %v2381 = vshrl.u32 %v2380, 7
        %v2382 = vsub.s32 %v2202, %v2381
        %v2383 = vrot.slane %v1893, %v2382
        %v2384 = vsel %vm2207, %v2383, %v2379
        %v2385 = vlaneseq
        %v2386 = vshrl.u32 %v2385, 7
        %v2387 = vsub.s32 %v2209, %v2386
        %v2388 = vrot.slane %v1896, %v2387
        %v2389 = vsel %vm2214, %v2388, %v2384
        %v2390 = vlaneseq
        %v2391 = vshrl.u32 %v2390, 7
        %v2392 = vsub.s32 %v2216, %v2391
        %v2393 = vrot.slane %v1899, %v2392
        %v2394 = vsel %vm2221, %v2393, %v2389
        %v2395 = vlaneseq
        %v2396 = vshrl.u32 %v2395, 7
        %v2397 = vsub.s32 %v2223, %v2396
        %v2398 = vrot.slane %v1902, %v2397
        %v2399 = vsel %vm2228, %v2398, %v2394
        %v2400 = vlaneseq
        %v2401 = vshrl.u32 %v2400, 7
        %v2402 = vsub.s32 %v2230, %v2401
        %v2403 = vrot.slane %v1905, %v2402
        %v2404 = vsel %vm2235, %v2403, %v2399
        %v2405 = vlaneseq
        %v2406 = vshrl.u32 %v2405, 7
        %v2407 = vsub.s32 %v2237, %v2406
        %v2408 = vrot.slane %v1908, %v2407
        %v2409 = vsel %vm2242, %v2408, %v2404
        %v2410 = vlaneseq
        %v2411 = vshrl.u32 %v2410, 7
        %v2412 = vsub.s32 %v2244, %v2411
        %v2413 = vrot.slane %v1911, %v2412
        %v2414 = vsel %vm2249, %v2413, %v2409
        %v2415 = vlaneseq
        %v2416 = vshrl.u32 %v2415, 7
        %v2417 = vsub.s32 %v2251, %v2416
        %v2418 = vrot.slane %v1914, %v2417
        %v2419 = vsel %vm2256, %v2418, %v2414
        %v2420 = vlaneseq
        %v2421 = vshrl.u32 %v2420, 7
        %v2422 = vsub.s32 %v2258, %v2421
        %v2423 = vrot.slane %v1917, %v2422
        %v2424 = vsel %vm2263, %v2423, %v2419
        %v2425 = vlaneseq
        %v2426 = vshrl.u32 %v2425, 7
        %v2427 = vsub.s32 %v2265, %v2426
        %v2428 = vrot.slane %v1920, %v2427
        %v2429 = vsel %vm2270, %v2428, %v2424
        %v2430 = vlaneseq
        %v2431 = vshrl.u32 %v2430, 7
        %v2432 = vsub.s32 %v2162, %v2431
        %v2433 = vrot.slane %v1923, %v2432
        %v2434 = vlaneseq
        %v2435 = vshrl.u32 %v2434, 7
        %v2436 = vsub.s32 %v2167, %v2435
        %v2437 = vrot.slane %v1926, %v2436
        %v2438 = vsel %vm2172, %v2437, %v2433
        %v2439 = vlaneseq
        %v2440 = vshrl.u32 %v2439, 7
        %v2441 = vsub.s32 %v2174, %v2440
        %v2442 = vrot.slane %v1929, %v2441
        %v2443 = vsel %vm2179, %v2442, %v2438
        %v2444 = vlaneseq
        %v2445 = vshrl.u32 %v2444, 7
        %v2446 = vsub.s32 %v2181, %v2445
        %v2447 = vrot.slane %v1932, %v2446
        %v2448 = vsel %vm2186, %v2447, %v2443
        %v2449 = vlaneseq
        %v2450 = vshrl.u32 %v2449, 7
        %v2451 = vsub.s32 %v2188, %v2450
        %v2452 = vrot.slane %v1935, %v2451
        %v2453 = vsel %vm2193, %v2452, %v2448
        %v2454 = vlaneseq
        %v2455 = vshrl.u32 %v2454, 7
        %v2456 = vsub.s32 %v2195, %v2455
        %v2457 = vrot.slane %v1938, %v2456
        %v2458 = vsel %vm2200, %v2457, %v2453
        %v2459 = vlaneseq
        %v2460 = vshrl.u32 %v2459, 7
        %v2461 = vsub.s32 %v2202, %v2460
        %v2462 = vrot.slane %v1941, %v2461
        %v2463 = vsel %vm2207, %v2462, %v2458
        %v2464 = vlaneseq
        %v2465 = vshrl.u32 %v2464, 7
        %v2466 = vsub.s32 %v2209, %v2465
        %v2467 = vrot.slane %v1944, %v2466
        %v2468 = vsel %vm2214, %v2467, %v2463
        %v2469 = vlaneseq
        %v2470 = vshrl.u32 %v2469, 7
        %v2471 = vsub.s32 %v2216, %v2470
        %v2472 = vrot.slane %v1947, %v2471
        %v2473 = vsel %vm2221, %v2472, %v2468
        %v2474 = vlaneseq
        %v2475 = vshrl.u32 %v2474, 7
        %v2476 = vsub.s32 %v2223, %v2475
        %v2477 = vrot.slane %v1950, %v2476
        %v2478 = vsel %vm2228, %v2477, %v2473
        %v2479 = vlaneseq
        %v2480 = vshrl.u32 %v2479, 7
        %v2481 = vsub.s32 %v2230, %v2480
        %v2482 = vrot.slane %v1953, %v2481
        %v2483 = vsel %vm2235, %v2482, %v2478
        %v2484 = vlaneseq
        %v2485 = vshrl.u32 %v2484, 7
        %v2486 = vsub.s32 %v2237, %v2485
        %v2487 = vrot.slane %v1956, %v2486
        %v2488 = vsel %vm2242, %v2487, %v2483
        %v2489 = vlaneseq
        %v2490 = vshrl.u32 %v2489, 7
        %v2491 = vsub.s32 %v2244, %v2490
        %v2492 = vrot.slane %v1959, %v2491
        %v2493 = vsel %vm2249, %v2492, %v2488
        %v2494 = vlaneseq
        %v2495 = vshrl.u32 %v2494, 7
        %v2496 = vsub.s32 %v2251, %v2495
        %v2497 = vrot.slane %v1962, %v2496
        %v2498 = vsel %vm2256, %v2497, %v2493
        %v2499 = vlaneseq
        %v2500 = vshrl.u32 %v2499, 7
        %v2501 = vsub.s32 %v2258, %v2500
        %v2502 = vrot.slane %v1965, %v2501
        %v2503 = vsel %vm2263, %v2502, %v2498
        %v2504 = vlaneseq
        %v2505 = vshrl.u32 %v2504, 7
        %v2506 = vsub.s32 %v2265, %v2505
        %v2507 = vrot.slane %v1968, %v2506
        %v2508 = vsel %vm2270, %v2507, %v2503
        %v2509 = vlaneseq
        %v2510 = vshrl.u32 %v2509, 7
        %v2511 = vsub.s32 %v2162, %v2510
        %v2512 = vrot.slane %v1971, %v2511
        %v2513 = vlaneseq
        %v2514 = vshrl.u32 %v2513, 7
        %v2515 = vsub.s32 %v2167, %v2514
        %v2516 = vrot.slane %v1974, %v2515
        %v2517 = vsel %vm2172, %v2516, %v2512
        %v2518 = vlaneseq
        %v2519 = vshrl.u32 %v2518, 7
        %v2520 = vsub.s32 %v2174, %v2519
        %v2521 = vrot.slane %v1977, %v2520
        %v2522 = vsel %vm2179, %v2521, %v2517
        %v2523 = vlaneseq
        %v2524 = vshrl.u32 %v2523, 7
        %v2525 = vsub.s32 %v2181, %v2524
        %v2526 = vrot.slane %v1980, %v2525
        %v2527 = vsel %vm2186, %v2526, %v2522
        %v2528 = vlaneseq
        %v2529 = vshrl.u32 %v2528, 7
        %v2530 = vsub.s32 %v2188, %v2529
        %v2531 = vrot.slane %v1983, %v2530
        %v2532 = vsel %vm2193, %v2531, %v2527
        %v2533 = vlaneseq
        %v2534 = vshrl.u32 %v2533, 7
        %v2535 = vsub.s32 %v2195, %v2534
        %v2536 = vrot.slane %v1986, %v2535
        %v2537 = vsel %vm2200, %v2536, %v2532
        %v2538 = vlaneseq
        %v2539 = vshrl.u32 %v2538, 7
        %v2540 = vsub.s32 %v2202, %v2539
        %v2541 = vrot.slane %v1989, %v2540
        %v2542 = vsel %vm2207, %v2541, %v2537
        %v2543 = vlaneseq
        %v2544 = vshrl.u32 %v2543, 7
        %v2545 = vsub.s32 %v2209, %v2544
        %v2546 = vrot.slane %v1992, %v2545
        %v2547 = vsel %vm2214, %v2546, %v2542
        %v2548 = vlaneseq
        %v2549 = vshrl.u32 %v2548, 7
        %v2550 = vsub.s32 %v2216, %v2549
        %v2551 = vrot.slane %v1995, %v2550
        %v2552 = vsel %vm2221, %v2551, %v2547
        %v2553 = vlaneseq
        %v2554 = vshrl.u32 %v2553, 7
        %v2555 = vsub.s32 %v2223, %v2554
        %v2556 = vrot.slane %v1998, %v2555
        %v2557 = vsel %vm2228, %v2556, %v2552
        %v2558 = vlaneseq
        %v2559 = vshrl.u32 %v2558, 7
        %v2560 = vsub.s32 %v2230, %v2559
        %v2561 = vrot.slane %v2001, %v2560
        %v2562 = vsel %vm2235, %v2561, %v2557
        %v2563 = vlaneseq
        %v2564 = vshrl.u32 %v2563, 7
        %v2565 = vsub.s32 %v2237, %v2564
        %v2566 = vrot.slane %v2004, %v2565
        %v2567 = vsel %vm2242, %v2566, %v2562
        %v2568 = vlaneseq
        %v2569 = vshrl.u32 %v2568, 7
        %v2570 = vsub.s32 %v2244, %v2569
        %v2571 = vrot.slane %v2007, %v2570
        %v2572 = vsel %vm2249, %v2571, %v2567
        %v2573 = vlaneseq
        %v2574 = vshrl.u32 %v2573, 7
        %v2575 = vsub.s32 %v2251, %v2574
        %v2576 = vrot.slane %v2010, %v2575
        %v2577 = vsel %vm2256, %v2576, %v2572
        %v2578 = vlaneseq
        %v2579 = vshrl.u32 %v2578, 7
        %v2580 = vsub.s32 %v2258, %v2579
        %v2581 = vrot.slane %v2013, %v2580
        %v2582 = vsel %vm2263, %v2581, %v2577
        %v2583 = vlaneseq
        %v2584 = vshrl.u32 %v2583, 7
        %v2585 = vsub.s32 %v2265, %v2584
        %v2586 = vrot.slane %v2016, %v2585
        %v2587 = vsel %vm2270, %v2586, %v2582
        %v2588 = vlaneseq
        %v2589 = vshrl.u32 %v2588, 7
        %v2590 = vsub.s32 %v2162, %v2589
        %v2591 = vrot.slane %v2019, %v2590
        %v2592 = vlaneseq
        %v2593 = vshrl.u32 %v2592, 7
        %v2594 = vsub.s32 %v2167, %v2593
        %v2595 = vrot.slane %v2022, %v2594
        %v2596 = vsel %vm2172, %v2595, %v2591
        %v2597 = vlaneseq
        %v2598 = vshrl.u32 %v2597, 7
        %v2599 = vsub.s32 %v2174, %v2598
        %v2600 = vrot.slane %v2025, %v2599
        %v2601 = vsel %vm2179, %v2600, %v2596
        %v2602 = vlaneseq
        %v2603 = vshrl.u32 %v2602, 7
        %v2604 = vsub.s32 %v2181, %v2603
        %v2605 = vrot.slane %v2028, %v2604
        %v2606 = vsel %vm2186, %v2605, %v2601
        %v2607 = vlaneseq
        %v2608 = vshrl.u32 %v2607, 7
        %v2609 = vsub.s32 %v2188, %v2608
        %v2610 = vrot.slane %v2031, %v2609
        %v2611 = vsel %vm2193, %v2610, %v2606
        %v2612 = vlaneseq
        %v2613 = vshrl.u32 %v2612, 7
        %v2614 = vsub.s32 %v2195, %v2613
        %v2615 = vrot.slane %v2034, %v2614
        %v2616 = vsel %vm2200, %v2615, %v2611
        %v2617 = vlaneseq
        %v2618 = vshrl.u32 %v2617, 7
        %v2619 = vsub.s32 %v2202, %v2618
        %v2620 = vrot.slane %v2037, %v2619
        %v2621 = vsel %vm2207, %v2620, %v2616
        %v2622 = vlaneseq
        %v2623 = vshrl.u32 %v2622, 7
        %v2624 = vsub.s32 %v2209, %v2623
        %v2625 = vrot.slane %v2040, %v2624
        %v2626 = vsel %vm2214, %v2625, %v2621
        %v2627 = vlaneseq
        %v2628 = vshrl.u32 %v2627, 7
        %v2629 = vsub.s32 %v2216, %v2628
        %v2630 = vrot.slane %v2043, %v2629
        %v2631 = vsel %vm2221, %v2630, %v2626
        %v2632 = vlaneseq
        %v2633 = vshrl.u32 %v2632, 7
        %v2634 = vsub.s32 %v2223, %v2633
        %v2635 = vrot.slane %v2046, %v2634
        %v2636 = vsel %vm2228, %v2635, %v2631
        %v2637 = vlaneseq
        %v2638 = vshrl.u32 %v2637, 7
        %v2639 = vsub.s32 %v2230, %v2638
        %v2640 = vrot.slane %v2049, %v2639
        %v2641 = vsel %vm2235, %v2640, %v2636
        %v2642 = vlaneseq
        %v2643 = vshrl.u32 %v2642, 7
        %v2644 = vsub.s32 %v2237, %v2643
        %v2645 = vrot.slane %v2052, %v2644
        %v2646 = vsel %vm2242, %v2645, %v2641
        %v2647 = vlaneseq
        %v2648 = vshrl.u32 %v2647, 7
        %v2649 = vsub.s32 %v2244, %v2648
        %v2650 = vrot.slane %v2055, %v2649
        %v2651 = vsel %vm2249, %v2650, %v2646
        %v2652 = vlaneseq
        %v2653 = vshrl.u32 %v2652, 7
        %v2654 = vsub.s32 %v2251, %v2653
        %v2655 = vrot.slane %v2058, %v2654
        %v2656 = vsel %vm2256, %v2655, %v2651
        %v2657 = vlaneseq
        %v2658 = vshrl.u32 %v2657, 7
        %v2659 = vsub.s32 %v2258, %v2658
        %v2660 = vrot.slane %v2061, %v2659
        %v2661 = vsel %vm2263, %v2660, %v2656
        %v2662 = vlaneseq
        %v2663 = vshrl.u32 %v2662, 7
        %v2664 = vsub.s32 %v2265, %v2663
        %v2665 = vrot.slane %v2064, %v2664
        %v2666 = vsel %vm2270, %v2665, %v2661
        %v2667 = vlaneseq
        %v2668 = vshrl.u32 %v2667, 7
        %v2669 = vsub.s32 %v2162, %v2668
        %v2670 = vrot.slane %v2067, %v2669
        %v2671 = vlaneseq
        %v2672 = vshrl.u32 %v2671, 7
        %v2673 = vsub.s32 %v2167, %v2672
        %v2674 = vrot.slane %v2070, %v2673
        %v2675 = vsel %vm2172, %v2674, %v2670
        %v2676 = vlaneseq
        %v2677 = vshrl.u32 %v2676, 7
        %v2678 = vsub.s32 %v2174, %v2677
        %v2679 = vrot.slane %v2073, %v2678
        %v2680 = vsel %vm2179, %v2679, %v2675
        %v2681 = vlaneseq
        %v2682 = vshrl.u32 %v2681, 7
        %v2683 = vsub.s32 %v2181, %v2682
        %v2684 = vrot.slane %v2076, %v2683
        %v2685 = vsel %vm2186, %v2684, %v2680
        %v2686 = vlaneseq
        %v2687 = vshrl.u32 %v2686, 7
        %v2688 = vsub.s32 %v2188, %v2687
        %v2689 = vrot.slane %v2079, %v2688
        %v2690 = vsel %vm2193, %v2689, %v2685
        %v2691 = vlaneseq
        %v2692 = vshrl.u32 %v2691, 7
        %v2693 = vsub.s32 %v2195, %v2692
        %v2694 = vrot.slane %v2082, %v2693
        %v2695 = vsel %vm2200, %v2694, %v2690
        %v2696 = vlaneseq
        %v2697 = vshrl.u32 %v2696, 7
        %v2698 = vsub.s32 %v2202, %v2697
        %v2699 = vrot.slane %v2085, %v2698
        %v2700 = vsel %vm2207, %v2699, %v2695
        %v2701 = vlaneseq
        %v2702 = vshrl.u32 %v2701, 7
        %v2703 = vsub.s32 %v2209, %v2702
        %v2704 = vrot.slane %v2088, %v2703
        %v2705 = vsel %vm2214, %v2704, %v2700
        %v2706 = vlaneseq
        %v2707 = vshrl.u32 %v2706, 7
        %v2708 = vsub.s32 %v2216, %v2707
        %v2709 = vrot.slane %v2091, %v2708
        %v2710 = vsel %vm2221, %v2709, %v2705
        %v2711 = vlaneseq
        %v2712 = vshrl.u32 %v2711, 7
        %v2713 = vsub.s32 %v2223, %v2712
        %v2714 = vrot.slane %v2094, %v2713
        %v2715 = vsel %vm2228, %v2714, %v2710
        %v2716 = vlaneseq
        %v2717 = vshrl.u32 %v2716, 7
        %v2718 = vsub.s32 %v2230, %v2717
        %v2719 = vrot.slane %v2097, %v2718
        %v2720 = vsel %vm2235, %v2719, %v2715
        %v2721 = vlaneseq
        %v2722 = vshrl.u32 %v2721, 7
        %v2723 = vsub.s32 %v2237, %v2722
        %v2724 = vrot.slane %v2100, %v2723
        %v2725 = vsel %vm2242, %v2724, %v2720
        %v2726 = vlaneseq
        %v2727 = vshrl.u32 %v2726, 7
        %v2728 = vsub.s32 %v2244, %v2727
        %v2729 = vrot.slane %v2103, %v2728
        %v2730 = vsel %vm2249, %v2729, %v2725
        %v2731 = vlaneseq
        %v2732 = vshrl.u32 %v2731, 7
        %v2733 = vsub.s32 %v2251, %v2732
        %v2734 = vrot.slane %v2106, %v2733
        %v2735 = vsel %vm2256, %v2734, %v2730
        %v2736 = vlaneseq
        %v2737 = vshrl.u32 %v2736, 7
        %v2738 = vsub.s32 %v2258, %v2737
        %v2739 = vrot.slane %v2109, %v2738
        %v2740 = vsel %vm2263, %v2739, %v2735
        %v2741 = vlaneseq
        %v2742 = vshrl.u32 %v2741, 7
        %v2743 = vsub.s32 %v2265, %v2742
        %v2744 = vrot.slane %v2112, %v2743
        %v2745 = vsel %vm2270, %v2744, %v2740
        %v2746 = vlaneseq
        %v2747 = vshrl.u32 %v2746, 7
        %v2748 = vsub.s32 %v2162, %v2747
        %v2749 = vrot.slane %v2115, %v2748
        %v2750 = vlaneseq
        %v2751 = vshrl.u32 %v2750, 7
        %v2752 = vsub.s32 %v2167, %v2751
        %v2753 = vrot.slane %v2118, %v2752
        %v2754 = vsel %vm2172, %v2753, %v2749
        %v2755 = vlaneseq
        %v2756 = vshrl.u32 %v2755, 7
        %v2757 = vsub.s32 %v2174, %v2756
        %v2758 = vrot.slane %v2121, %v2757
        %v2759 = vsel %vm2179, %v2758, %v2754
        %v2760 = vlaneseq
        %v2761 = vshrl.u32 %v2760, 7
        %v2762 = vsub.s32 %v2181, %v2761
        %v2763 = vrot.slane %v2124, %v2762
        %v2764 = vsel %vm2186, %v2763, %v2759
        %v2765 = vlaneseq
        %v2766 = vshrl.u32 %v2765, 7
        %v2767 = vsub.s32 %v2188, %v2766
        %v2768 = vrot.slane %v2127, %v2767
        %v2769 = vsel %vm2193, %v2768, %v2764
        %v2770 = vlaneseq
        %v2771 = vshrl.u32 %v2770, 7
        %v2772 = vsub.s32 %v2195, %v2771
        %v2773 = vrot.slane %v2130, %v2772
        %v2774 = vsel %vm2200, %v2773, %v2769
        %v2775 = vlaneseq
        %v2776 = vshrl.u32 %v2775, 7
        %v2777 = vsub.s32 %v2202, %v2776
        %v2778 = vrot.slane %v2133, %v2777
        %v2779 = vsel %vm2207, %v2778, %v2774
        %v2780 = vlaneseq
        %v2781 = vshrl.u32 %v2780, 7
        %v2782 = vsub.s32 %v2209, %v2781
        %v2783 = vrot.slane %v2136, %v2782
        %v2784 = vsel %vm2214, %v2783, %v2779
        %v2785 = vlaneseq
        %v2786 = vshrl.u32 %v2785, 7
        %v2787 = vsub.s32 %v2216, %v2786
        %v2788 = vrot.slane %v2139, %v2787
        %v2789 = vsel %vm2221, %v2788, %v2784
        %v2790 = vlaneseq
        %v2791 = vshrl.u32 %v2790, 7
        %v2792 = vsub.s32 %v2223, %v2791
        %v2793 = vrot.slane %v2142, %v2792
        %v2794 = vsel %vm2228, %v2793, %v2789
        %v2795 = vlaneseq
        %v2796 = vshrl.u32 %v2795, 7
        %v2797 = vsub.s32 %v2230, %v2796
        %v2798 = vrot.slane %v2145, %v2797
        %v2799 = vsel %vm2235, %v2798, %v2794
        %v2800 = vlaneseq
        %v2801 = vshrl.u32 %v2800, 7
        %v2802 = vsub.s32 %v2237, %v2801
        %v2803 = vrot.slane %v2148, %v2802
        %v2804 = vsel %vm2242, %v2803, %v2799
        %v2805 = vlaneseq
        %v2806 = vshrl.u32 %v2805, 7
        %v2807 = vsub.s32 %v2244, %v2806
        %v2808 = vrot.slane %v2151, %v2807
        %v2809 = vsel %vm2249, %v2808, %v2804
        %v2810 = vlaneseq
        %v2811 = vshrl.u32 %v2810, 7
        %v2812 = vsub.s32 %v2251, %v2811
        %v2813 = vrot.slane %v2154, %v2812
        %v2814 = vsel %vm2256, %v2813, %v2809
        %v2815 = vlaneseq
        %v2816 = vshrl.u32 %v2815, 7
        %v2817 = vsub.s32 %v2258, %v2816
        %v2818 = vrot.slane %v2157, %v2817
        %v2819 = vsel %vm2263, %v2818, %v2814
        %v2820 = vlaneseq
        %v2821 = vshrl.u32 %v2820, 7
        %v2822 = vsub.s32 %v2265, %v2821
        %v2823 = vrot.slane %v2160, %v2822
        %v2824 = vsel %vm2270, %v2823, %v2819
        %vm2825 = vcmask 1041409
        %v2826 = vsel %vm2825, %v2350, %v2271
        %vm2827 = vcmask 1042434
        %v2828 = vsel %vm2827, %v2429, %v2826
        %vm2829 = vcmask 1043459
        %v2830 = vsel %vm2829, %v2508, %v2828
        %vm2831 = vcmask 1044484
        %v2832 = vsel %vm2831, %v2587, %v2830
        %vm2833 = vcmask 1045509
        %v2834 = vsel %vm2833, %v2666, %v2832
        %vm2835 = vcmask 1046534
        %v2836 = vsel %vm2835, %v2745, %v2834
        %vm2837 = vcmask 1047559
        %v2838 = vsel %vm2837, %v2824, %v2836
        %2840 = vmax.xlane.f32.xlu0 %v2838
        %v2841 = vpop.xlane.xlu0 %2840
        %v2843 = vlaneseq
        %v2844 = vshrl.u32 %v2843, 7
        %v2845 = vsub.s32 0, %v2844
        %v2846 = vrot.slane %v2841, %v2845
        %v2847 = vlaneseq
        %v2848 = vshrl.u32 %v2847, 7
        %v2849 = vsub.s32 1, %v2848
        %v2850 = vrot.slane %v2841, %v2849
        %v2851 = vlaneseq
        %v2852 = vshrl.u32 %v2851, 7
        %v2853 = vsub.s32 2, %v2852
        %v2854 = vrot.slane %v2841, %v2853
        %v2855 = vlaneseq
        %v2856 = vshrl.u32 %v2855, 7
        %v2857 = vsub.s32 3, %v2856
        %v2858 = vrot.slane %v2841, %v2857
        %v2859 = vlaneseq
        %v2860 = vshrl.u32 %v2859, 7
        %v2861 = vsub.s32 4, %v2860
        %v2862 = vrot.slane %v2841, %v2861
        %v2863 = vlaneseq
        %v2864 = vshrl.u32 %v2863, 7
        %v2865 = vsub.s32 5, %v2864
        %v2866 = vrot.slane %v2841, %v2865
        %v2867 = vlaneseq
        %v2868 = vshrl.u32 %v2867, 7
        %v2869 = vsub.s32 6, %v2868
        %v2870 = vrot.slane %v2841, %v2869
        %v2871 = vlaneseq
        %v2872 = vshrl.u32 %v2871, 7
        %v2873 = vsub.s32 7, %v2872
        %v2874 = vrot.slane %v2841, %v2873
        %v2883 = vsub.f32 %v1521, %v2846
        %v2884 = vsub.f32 %v1522, %v2846
        %v2885 = vsub.f32 %v1523, %v2846
        %v2886 = vsub.f32 %v1524, %v2846
        %v2887 = vsub.f32 %v1525, %v2846
        %v2888 = vsub.f32 %v1526, %v2846
        %v2889 = vsub.f32 %v1527, %v2846
        %v2890 = vsub.f32 %v1528, %v2846
        %v2891 = vsub.f32 %v1529, %v2846
        %v2892 = vsub.f32 %v1530, %v2846
        %v2893 = vsub.f32 %v1531, %v2846
        %v2894 = vsub.f32 %v1532, %v2846
        %v2895 = vsub.f32 %v1533, %v2846
        %v2896 = vsub.f32 %v1534, %v2846
        %v2897 = vsub.f32 %v1535, %v2846
        %v2898 = vsub.f32 %v1536, %v2846
        %v2899 = vsub.f32 %v1537, %v2850
        %v2900 = vsub.f32 %v1538, %v2850
        %v2901 = vsub.f32 %v1539, %v2850
        %v2902 = vsub.f32 %v1540, %v2850
        %v2903 = vsub.f32 %v1541, %v2850
        %v2904 = vsub.f32 %v1542, %v2850
        %v2905 = vsub.f32 %v1543, %v2850
        %v2906 = vsub.f32 %v1544, %v2850
        %v2907 = vsub.f32 %v1545, %v2850
        %v2908 = vsub.f32 %v1546, %v2850
        %v2909 = vsub.f32 %v1547, %v2850
        %v2910 = vsub.f32 %v1548, %v2850
        %v2911 = vsub.f32 %v1549, %v2850
        %v2912 = vsub.f32 %v1550, %v2850
        %v2913 = vsub.f32 %v1551, %v2850
        %v2914 = vsub.f32 %v1552, %v2850
        %v2915 = vsub.f32 %v1553, %v2854
        %v2916 = vsub.f32 %v1554, %v2854
        %v2917 = vsub.f32 %v1555, %v2854
        %v2918 = vsub.f32 %v1556, %v2854
        %v2919 = vsub.f32 %v1557, %v2854
        %v2920 = vsub.f32 %v1558, %v2854
        %v2921 = vsub.f32 %v1559, %v2854
        %v2922 = vsub.f32 %v1560, %v2854
        %v2923 = vsub.f32 %v1561, %v2854
        %v2924 = vsub.f32 %v1562, %v2854
        %v2925 = vsub.f32 %v1563, %v2854
        %v2926 = vsub.f32 %v1564, %v2854
        %v2927 = vsub.f32 %v1565, %v2854
        %v2928 = vsub.f32 %v1566, %v2854
        %v2929 = vsub.f32 %v1567, %v2854
        %v2930 = vsub.f32 %v1568, %v2854
        %v2931 = vsub.f32 %v1569, %v2858
        %v2932 = vsub.f32 %v1570, %v2858
        %v2933 = vsub.f32 %v1571, %v2858
        %v2934 = vsub.f32 %v1572, %v2858
        %v2935 = vsub.f32 %v1573, %v2858
        %v2936 = vsub.f32 %v1574, %v2858
        %v2937 = vsub.f32 %v1575, %v2858
        %v2938 = vsub.f32 %v1576, %v2858
        %v2939 = vsub.f32 %v1577, %v2858
        %v2940 = vsub.f32 %v1578, %v2858
        %v2941 = vsub.f32 %v1579, %v2858
        %v2942 = vsub.f32 %v1580, %v2858
        %v2943 = vsub.f32 %v1581, %v2858
        %v2944 = vsub.f32 %v1582, %v2858
        %v2945 = vsub.f32 %v1583, %v2858
        %v2946 = vsub.f32 %v1584, %v2858
        %v2947 = vsub.f32 %v1585, %v2862
        %v2948 = vsub.f32 %v1586, %v2862
        %v2949 = vsub.f32 %v1587, %v2862
        %v2950 = vsub.f32 %v1588, %v2862
        %v2951 = vsub.f32 %v1589, %v2862
        %v2952 = vsub.f32 %v1590, %v2862
        %v2953 = vsub.f32 %v1591, %v2862
        %v2954 = vsub.f32 %v1592, %v2862
        %v2955 = vsub.f32 %v1593, %v2862
        %v2956 = vsub.f32 %v1594, %v2862
        %v2957 = vsub.f32 %v1595, %v2862
        %v2958 = vsub.f32 %v1596, %v2862
        %v2959 = vsub.f32 %v1597, %v2862
        %v2960 = vsub.f32 %v1598, %v2862
        %v2961 = vsub.f32 %v1599, %v2862
        %v2962 = vsub.f32 %v1600, %v2862
        %v2963 = vsub.f32 %v1601, %v2866
        %v2964 = vsub.f32 %v1602, %v2866
        %v2965 = vsub.f32 %v1603, %v2866
        %v2966 = vsub.f32 %v1604, %v2866
        %v2967 = vsub.f32 %v1605, %v2866
        %v2968 = vsub.f32 %v1606, %v2866
        %v2969 = vsub.f32 %v1607, %v2866
        %v2970 = vsub.f32 %v1608, %v2866
        %v2971 = vsub.f32 %v1609, %v2866
        %v2972 = vsub.f32 %v1610, %v2866
        %v2973 = vsub.f32 %v1611, %v2866
        %v2974 = vsub.f32 %v1612, %v2866
        %v2975 = vsub.f32 %v1613, %v2866
        %v2976 = vsub.f32 %v1614, %v2866
        %v2977 = vsub.f32 %v1615, %v2866
        %v2978 = vsub.f32 %v1616, %v2866
        %v2979 = vsub.f32 %v1617, %v2870
        %v2980 = vsub.f32 %v1618, %v2870
        %v2981 = vsub.f32 %v1619, %v2870
        %v2982 = vsub.f32 %v1620, %v2870
        %v2983 = vsub.f32 %v1621, %v2870
        %v2984 = vsub.f32 %v1622, %v2870
        %v2985 = vsub.f32 %v1623, %v2870
        %v2986 = vsub.f32 %v1624, %v2870
        %v2987 = vsub.f32 %v1625, %v2870
        %v2988 = vsub.f32 %v1626, %v2870
        %v2989 = vsub.f32 %v1627, %v2870
        %v2990 = vsub.f32 %v1628, %v2870
        %v2991 = vsub.f32 %v1629, %v2870
        %v2992 = vsub.f32 %v1630, %v2870
        %v2993 = vsub.f32 %v1631, %v2870
        %v2994 = vsub.f32 %v1632, %v2870
        %v2995 = vsub.f32 %v1633, %v2874
        %v2996 = vsub.f32 %v1634, %v2874
        %v2997 = vsub.f32 %v1635, %v2874
        %v2998 = vsub.f32 %v1636, %v2874
        %v2999 = vsub.f32 %v1637, %v2874
        %v3000 = vsub.f32 %v1638, %v2874
        %v3001 = vsub.f32 %v1639, %v2874
        %v3002 = vsub.f32 %v1640, %v2874
        %v3003 = vsub.f32 %v1641, %v2874
        %v3004 = vsub.f32 %v1642, %v2874
        %v3005 = vsub.f32 %v1643, %v2874
        %v3006 = vsub.f32 %v1644, %v2874
        %v3007 = vsub.f32 %v1645, %v2874
        %v3008 = vsub.f32 %v1646, %v2874
        %v3009 = vsub.f32 %v1647, %v2874
        %v3010 = vsub.f32 %v1648, %v2874
        %v3011 = vmul.f32 %v2883, 1.442695
        %v3012 = vpow.pop %v3011
        %v3013 = vmul.f32 %v2884, 1.442695
        %v3014 = vpow.pop %v3013
        %v3015 = vmul.f32 %v2885, 1.442695
        %v3016 = vpow.pop %v3015
        %v3017 = vmul.f32 %v2886, 1.442695
        %v3018 = vpow.pop %v3017
        %v3019 = vmul.f32 %v2887, 1.442695
        %v3020 = vpow.pop %v3019
        %v3021 = vmul.f32 %v2888, 1.442695
        %v3022 = vpow.pop %v3021
        %v3023 = vmul.f32 %v2889, 1.442695
        %v3024 = vpow.pop %v3023
        %v3025 = vmul.f32 %v2890, 1.442695
        %v3026 = vpow.pop %v3025
        %v3027 = vmul.f32 %v2891, 1.442695
        %v3028 = vpow.pop %v3027
        %v3029 = vmul.f32 %v2892, 1.442695
        %v3030 = vpow.pop %v3029
        %v3031 = vmul.f32 %v2893, 1.442695
        %v3032 = vpow.pop %v3031
        %v3033 = vmul.f32 %v2894, 1.442695
        %v3034 = vpow.pop %v3033
        %v3035 = vmul.f32 %v2895, 1.442695
        %v3036 = vpow.pop %v3035
        %v3037 = vmul.f32 %v2896, 1.442695
        %v3038 = vpow.pop %v3037
        %v3039 = vmul.f32 %v2897, 1.442695
        %v3040 = vpow.pop %v3039
        %v3041 = vmul.f32 %v2898, 1.442695
        %v3042 = vpow.pop %v3041
        %v3043 = vmul.f32 %v2899, 1.442695
        %v3044 = vpow.pop %v3043
        %v3045 = vmul.f32 %v2900, 1.442695
        %v3046 = vpow.pop %v3045
        %v3047 = vmul.f32 %v2901, 1.442695
        %v3048 = vpow.pop %v3047
        %v3049 = vmul.f32 %v2902, 1.442695
        %v3050 = vpow.pop %v3049
        %v3051 = vmul.f32 %v2903, 1.442695
        %v3052 = vpow.pop %v3051
        %v3053 = vmul.f32 %v2904, 1.442695
        %v3054 = vpow.pop %v3053
        %v3055 = vmul.f32 %v2905, 1.442695
        %v3056 = vpow.pop %v3055
        %v3057 = vmul.f32 %v2906, 1.442695
        %v3058 = vpow.pop %v3057
        %v3059 = vmul.f32 %v2907, 1.442695
        %v3060 = vpow.pop %v3059
        %v3061 = vmul.f32 %v2908, 1.442695
        %v3062 = vpow.pop %v3061
        %v3063 = vmul.f32 %v2909, 1.442695
        %v3064 = vpow.pop %v3063
        %v3065 = vmul.f32 %v2910, 1.442695
        %v3066 = vpow.pop %v3065
        %v3067 = vmul.f32 %v2911, 1.442695
        %v3068 = vpow.pop %v3067
        %v3069 = vmul.f32 %v2912, 1.442695
        %v3070 = vpow.pop %v3069
        %v3071 = vmul.f32 %v2913, 1.442695
        %v3072 = vpow.pop %v3071
        %v3073 = vmul.f32 %v2914, 1.442695
        %v3074 = vpow.pop %v3073
        %v3075 = vmul.f32 %v2915, 1.442695
        %v3076 = vpow.pop %v3075
        %v3077 = vmul.f32 %v2916, 1.442695
        %v3078 = vpow.pop %v3077
        %v3079 = vmul.f32 %v2917, 1.442695
        %v3080 = vpow.pop %v3079
        %v3081 = vmul.f32 %v2918, 1.442695
        %v3082 = vpow.pop %v3081
        %v3083 = vmul.f32 %v2919, 1.442695
        %v3084 = vpow.pop %v3083
        %v3085 = vmul.f32 %v2920, 1.442695
        %v3086 = vpow.pop %v3085
        %v3087 = vmul.f32 %v2921, 1.442695
        %v3088 = vpow.pop %v3087
        %v3089 = vmul.f32 %v2922, 1.442695
        %v3090 = vpow.pop %v3089
        %v3091 = vmul.f32 %v2923, 1.442695
        %v3092 = vpow.pop %v3091
        %v3093 = vmul.f32 %v2924, 1.442695
        %v3094 = vpow.pop %v3093
        %v3095 = vmul.f32 %v2925, 1.442695
        %v3096 = vpow.pop %v3095
        %v3097 = vmul.f32 %v2926, 1.442695
        %v3098 = vpow.pop %v3097
        %v3099 = vmul.f32 %v2927, 1.442695
        %v3100 = vpow.pop %v3099
        %v3101 = vmul.f32 %v2928, 1.442695
        %v3102 = vpow.pop %v3101
        %v3103 = vmul.f32 %v2929, 1.442695
        %v3104 = vpow.pop %v3103
        %v3105 = vmul.f32 %v2930, 1.442695
        %v3106 = vpow.pop %v3105
        %v3107 = vmul.f32 %v2931, 1.442695
        %v3108 = vpow.pop %v3107
        %v3109 = vmul.f32 %v2932, 1.442695
        %v3110 = vpow.pop %v3109
        %v3111 = vmul.f32 %v2933, 1.442695
        %v3112 = vpow.pop %v3111
        %v3113 = vmul.f32 %v2934, 1.442695
        %v3114 = vpow.pop %v3113
        %v3115 = vmul.f32 %v2935, 1.442695
        %v3116 = vpow.pop %v3115
        %v3117 = vmul.f32 %v2936, 1.442695
        %v3118 = vpow.pop %v3117
        %v3119 = vmul.f32 %v2937, 1.442695
        %v3120 = vpow.pop %v3119
        %v3121 = vmul.f32 %v2938, 1.442695
        %v3122 = vpow.pop %v3121
        %v3123 = vmul.f32 %v2939, 1.442695
        %v3124 = vpow.pop %v3123
        %v3125 = vmul.f32 %v2940, 1.442695
        %v3126 = vpow.pop %v3125
        %v3127 = vmul.f32 %v2941, 1.442695
        %v3128 = vpow.pop %v3127
        %v3129 = vmul.f32 %v2942, 1.442695
        %v3130 = vpow.pop %v3129
        %v3131 = vmul.f32 %v2943, 1.442695
        %v3132 = vpow.pop %v3131
        %v3133 = vmul.f32 %v2944, 1.442695
        %v3134 = vpow.pop %v3133
        %v3135 = vmul.f32 %v2945, 1.442695
        %v3136 = vpow.pop %v3135
        %v3137 = vmul.f32 %v2946, 1.442695
        %v3138 = vpow.pop %v3137
        %v3139 = vmul.f32 %v2947, 1.442695
        %v3140 = vpow.pop %v3139
        %v3141 = vmul.f32 %v2948, 1.442695
        %v3142 = vpow.pop %v3141
        %v3143 = vmul.f32 %v2949, 1.442695
        %v3144 = vpow.pop %v3143
        %v3145 = vmul.f32 %v2950, 1.442695
        %v3146 = vpow.pop %v3145
        %v3147 = vmul.f32 %v2951, 1.442695
        %v3148 = vpow.pop %v3147
        %v3149 = vmul.f32 %v2952, 1.442695
        %v3150 = vpow.pop %v3149
        %v3151 = vmul.f32 %v2953, 1.442695
        %v3152 = vpow.pop %v3151
        %v3153 = vmul.f32 %v2954, 1.442695
        %v3154 = vpow.pop %v3153
        %v3155 = vmul.f32 %v2955, 1.442695
        %v3156 = vpow.pop %v3155
        %v3157 = vmul.f32 %v2956, 1.442695
        %v3158 = vpow.pop %v3157
        %v3159 = vmul.f32 %v2957, 1.442695
        %v3160 = vpow.pop %v3159
        %v3161 = vmul.f32 %v2958, 1.442695
        %v3162 = vpow.pop %v3161
        %v3163 = vmul.f32 %v2959, 1.442695
        %v3164 = vpow.pop %v3163
        %v3165 = vmul.f32 %v2960, 1.442695
        %v3166 = vpow.pop %v3165
        %v3167 = vmul.f32 %v2961, 1.442695
        %v3168 = vpow.pop %v3167
        %v3169 = vmul.f32 %v2962, 1.442695
        %v3170 = vpow.pop %v3169
        %v3171 = vmul.f32 %v2963, 1.442695
        %v3172 = vpow.pop %v3171
        %v3173 = vmul.f32 %v2964, 1.442695
        %v3174 = vpow.pop %v3173
        %v3175 = vmul.f32 %v2965, 1.442695
        %v3176 = vpow.pop %v3175
        %v3177 = vmul.f32 %v2966, 1.442695
        %v3178 = vpow.pop %v3177
        %v3179 = vmul.f32 %v2967, 1.442695
        %v3180 = vpow.pop %v3179
        %v3181 = vmul.f32 %v2968, 1.442695
        %v3182 = vpow.pop %v3181
        %v3183 = vmul.f32 %v2969, 1.442695
        %v3184 = vpow.pop %v3183
        %v3185 = vmul.f32 %v2970, 1.442695
        %v3186 = vpow.pop %v3185
        %v3187 = vmul.f32 %v2971, 1.442695
        %v3188 = vpow.pop %v3187
        %v3189 = vmul.f32 %v2972, 1.442695
        %v3190 = vpow.pop %v3189
        %v3191 = vmul.f32 %v2973, 1.442695
        %v3192 = vpow.pop %v3191
        %v3193 = vmul.f32 %v2974, 1.442695
        %v3194 = vpow.pop %v3193
        %v3195 = vmul.f32 %v2975, 1.442695
        %v3196 = vpow.pop %v3195
        %v3197 = vmul.f32 %v2976, 1.442695
        %v3198 = vpow.pop %v3197
        %v3199 = vmul.f32 %v2977, 1.442695
        %v3200 = vpow.pop %v3199
        %v3201 = vmul.f32 %v2978, 1.442695
        %v3202 = vpow.pop %v3201
        %v3203 = vmul.f32 %v2979, 1.442695
        %v3204 = vpow.pop %v3203
        %v3205 = vmul.f32 %v2980, 1.442695
        %v3206 = vpow.pop %v3205
        %v3207 = vmul.f32 %v2981, 1.442695
        %v3208 = vpow.pop %v3207
        %v3209 = vmul.f32 %v2982, 1.442695
        %v3210 = vpow.pop %v3209
        %v3211 = vmul.f32 %v2983, 1.442695
        %v3212 = vpow.pop %v3211
        %v3213 = vmul.f32 %v2984, 1.442695
        %v3214 = vpow.pop %v3213
        %v3215 = vmul.f32 %v2985, 1.442695
        %v3216 = vpow.pop %v3215
        %v3217 = vmul.f32 %v2986, 1.442695
        %v3218 = vpow.pop %v3217
        %v3219 = vmul.f32 %v2987, 1.442695
        %v3220 = vpow.pop %v3219
        %v3221 = vmul.f32 %v2988, 1.442695
        %v3222 = vpow.pop %v3221
        %v3223 = vmul.f32 %v2989, 1.442695
        %v3224 = vpow.pop %v3223
        %v3225 = vmul.f32 %v2990, 1.442695
        %v3226 = vpow.pop %v3225
        %v3227 = vmul.f32 %v2991, 1.442695
        %v3228 = vpow.pop %v3227
        %v3229 = vmul.f32 %v2992, 1.442695
        %v3230 = vpow.pop %v3229
        %v3231 = vmul.f32 %v2993, 1.442695
        %v3232 = vpow.pop %v3231
        %v3233 = vmul.f32 %v2994, 1.442695
        %v3234 = vpow.pop %v3233
        %v3235 = vmul.f32 %v2995, 1.442695
        %v3236 = vpow.pop %v3235
        %v3237 = vmul.f32 %v2996, 1.442695
        %v3238 = vpow.pop %v3237
        %v3239 = vmul.f32 %v2997, 1.442695
        %v3240 = vpow.pop %v3239
        %v3241 = vmul.f32 %v2998, 1.442695
        %v3242 = vpow.pop %v3241
        %v3243 = vmul.f32 %v2999, 1.442695
        %v3244 = vpow.pop %v3243
        %v3245 = vmul.f32 %v3000, 1.442695
        %v3246 = vpow.pop %v3245
        %v3247 = vmul.f32 %v3001, 1.442695
        %v3248 = vpow.pop %v3247
        %v3249 = vmul.f32 %v3002, 1.442695
        %v3250 = vpow.pop %v3249
        %v3251 = vmul.f32 %v3003, 1.442695
        %v3252 = vpow.pop %v3251
        %v3253 = vmul.f32 %v3004, 1.442695
        %v3254 = vpow.pop %v3253
        %v3255 = vmul.f32 %v3005, 1.442695
        %v3256 = vpow.pop %v3255
        %v3257 = vmul.f32 %v3006, 1.442695
        %v3258 = vpow.pop %v3257
        %v3259 = vmul.f32 %v3007, 1.442695
        %v3260 = vpow.pop %v3259
        %v3261 = vmul.f32 %v3008, 1.442695
        %v3262 = vpow.pop %v3261
        %v3263 = vmul.f32 %v3009, 1.442695
        %v3264 = vpow.pop %v3263
        %v3265 = vmul.f32 %v3010, 1.442695
        %v3266 = vpow.pop %v3265
        %3395 = vset.pattern.permute.xlu0 0
        %3396 = vperm.xlu0 %3395, %v3012
        %v3397 = vpop.permute.xlu0 %3396
        %3398 = vset.pattern.permute.xlu0 0
        %3399 = vperm.xlu0 %3398, %v3014
        %v3400 = vpop.permute.xlu0 %3399
        %3401 = vset.pattern.permute.xlu0 0
        %3402 = vperm.xlu0 %3401, %v3016
        %v3403 = vpop.permute.xlu0 %3402
        %3404 = vset.pattern.permute.xlu0 0
        %3405 = vperm.xlu0 %3404, %v3018
        %v3406 = vpop.permute.xlu0 %3405
        %3407 = vset.pattern.permute.xlu0 0
        %3408 = vperm.xlu0 %3407, %v3020
        %v3409 = vpop.permute.xlu0 %3408
        %3410 = vset.pattern.permute.xlu0 0
        %3411 = vperm.xlu0 %3410, %v3022
        %v3412 = vpop.permute.xlu0 %3411
        %3413 = vset.pattern.permute.xlu0 0
        %3414 = vperm.xlu0 %3413, %v3024
        %v3415 = vpop.permute.xlu0 %3414
        %3416 = vset.pattern.permute.xlu0 0
        %3417 = vperm.xlu0 %3416, %v3026
        %v3418 = vpop.permute.xlu0 %3417
        %3419 = vset.pattern.permute.xlu0 0
        %3420 = vperm.xlu0 %3419, %v3028
        %v3421 = vpop.permute.xlu0 %3420
        %3422 = vset.pattern.permute.xlu0 0
        %3423 = vperm.xlu0 %3422, %v3030
        %v3424 = vpop.permute.xlu0 %3423
        %3425 = vset.pattern.permute.xlu0 0
        %3426 = vperm.xlu0 %3425, %v3032
        %v3427 = vpop.permute.xlu0 %3426
        %3428 = vset.pattern.permute.xlu0 0
        %3429 = vperm.xlu0 %3428, %v3034
        %v3430 = vpop.permute.xlu0 %3429
        %3431 = vset.pattern.permute.xlu0 0
        %3432 = vperm.xlu0 %3431, %v3036
        %v3433 = vpop.permute.xlu0 %3432
        %3434 = vset.pattern.permute.xlu0 0
        %3435 = vperm.xlu0 %3434, %v3038
        %v3436 = vpop.permute.xlu0 %3435
        %3437 = vset.pattern.permute.xlu0 0
        %3438 = vperm.xlu0 %3437, %v3040
        %v3439 = vpop.permute.xlu0 %3438
        %3440 = vset.pattern.permute.xlu0 0
        %3441 = vperm.xlu0 %3440, %v3042
        %v3442 = vpop.permute.xlu0 %3441
        %3443 = vset.pattern.permute.xlu0 0
        %3444 = vperm.xlu0 %3443, %v3044
        %v3445 = vpop.permute.xlu0 %3444
        %3446 = vset.pattern.permute.xlu0 0
        %3447 = vperm.xlu0 %3446, %v3046
        %v3448 = vpop.permute.xlu0 %3447
        %3449 = vset.pattern.permute.xlu0 0
        %3450 = vperm.xlu0 %3449, %v3048
        %v3451 = vpop.permute.xlu0 %3450
        %3452 = vset.pattern.permute.xlu0 0
        %3453 = vperm.xlu0 %3452, %v3050
        %v3454 = vpop.permute.xlu0 %3453
        %3455 = vset.pattern.permute.xlu0 0
        %3456 = vperm.xlu0 %3455, %v3052
        %v3457 = vpop.permute.xlu0 %3456
        %3458 = vset.pattern.permute.xlu0 0
        %3459 = vperm.xlu0 %3458, %v3054
        %v3460 = vpop.permute.xlu0 %3459
        %3461 = vset.pattern.permute.xlu0 0
        %3462 = vperm.xlu0 %3461, %v3056
        %v3463 = vpop.permute.xlu0 %3462
        %3464 = vset.pattern.permute.xlu0 0
        %3465 = vperm.xlu0 %3464, %v3058
        %v3466 = vpop.permute.xlu0 %3465
        %3467 = vset.pattern.permute.xlu0 0
        %3468 = vperm.xlu0 %3467, %v3060
        %v3469 = vpop.permute.xlu0 %3468
        %3470 = vset.pattern.permute.xlu0 0
        %3471 = vperm.xlu0 %3470, %v3062
        %v3472 = vpop.permute.xlu0 %3471
        %3473 = vset.pattern.permute.xlu0 0
        %3474 = vperm.xlu0 %3473, %v3064
        %v3475 = vpop.permute.xlu0 %3474
        %3476 = vset.pattern.permute.xlu0 0
        %3477 = vperm.xlu0 %3476, %v3066
        %v3478 = vpop.permute.xlu0 %3477
        %3479 = vset.pattern.permute.xlu0 0
        %3480 = vperm.xlu0 %3479, %v3068
        %v3481 = vpop.permute.xlu0 %3480
        %3482 = vset.pattern.permute.xlu0 0
        %3483 = vperm.xlu0 %3482, %v3070
        %v3484 = vpop.permute.xlu0 %3483
        %3485 = vset.pattern.permute.xlu0 0
        %3486 = vperm.xlu0 %3485, %v3072
        %v3487 = vpop.permute.xlu0 %3486
        %3488 = vset.pattern.permute.xlu0 0
        %3489 = vperm.xlu0 %3488, %v3074
        %v3490 = vpop.permute.xlu0 %3489
        %3491 = vset.pattern.permute.xlu0 0
        %3492 = vperm.xlu0 %3491, %v3076
        %v3493 = vpop.permute.xlu0 %3492
        %3494 = vset.pattern.permute.xlu0 0
        %3495 = vperm.xlu0 %3494, %v3078
        %v3496 = vpop.permute.xlu0 %3495
        %3497 = vset.pattern.permute.xlu0 0
        %3498 = vperm.xlu0 %3497, %v3080
        %v3499 = vpop.permute.xlu0 %3498
        %3500 = vset.pattern.permute.xlu0 0
        %3501 = vperm.xlu0 %3500, %v3082
        %v3502 = vpop.permute.xlu0 %3501
        %3503 = vset.pattern.permute.xlu0 0
        %3504 = vperm.xlu0 %3503, %v3084
        %v3505 = vpop.permute.xlu0 %3504
        %3506 = vset.pattern.permute.xlu0 0
        %3507 = vperm.xlu0 %3506, %v3086
        %v3508 = vpop.permute.xlu0 %3507
        %3509 = vset.pattern.permute.xlu0 0
        %3510 = vperm.xlu0 %3509, %v3088
        %v3511 = vpop.permute.xlu0 %3510
        %3512 = vset.pattern.permute.xlu0 0
        %3513 = vperm.xlu0 %3512, %v3090
        %v3514 = vpop.permute.xlu0 %3513
        %3515 = vset.pattern.permute.xlu0 0
        %3516 = vperm.xlu0 %3515, %v3092
        %v3517 = vpop.permute.xlu0 %3516
        %3518 = vset.pattern.permute.xlu0 0
        %3519 = vperm.xlu0 %3518, %v3094
        %v3520 = vpop.permute.xlu0 %3519
        %3521 = vset.pattern.permute.xlu0 0
        %3522 = vperm.xlu0 %3521, %v3096
        %v3523 = vpop.permute.xlu0 %3522
        %3524 = vset.pattern.permute.xlu0 0
        %3525 = vperm.xlu0 %3524, %v3098
        %v3526 = vpop.permute.xlu0 %3525
        %3527 = vset.pattern.permute.xlu0 0
        %3528 = vperm.xlu0 %3527, %v3100
        %v3529 = vpop.permute.xlu0 %3528
        %3530 = vset.pattern.permute.xlu0 0
        %3531 = vperm.xlu0 %3530, %v3102
        %v3532 = vpop.permute.xlu0 %3531
        %3533 = vset.pattern.permute.xlu0 0
        %3534 = vperm.xlu0 %3533, %v3104
        %v3535 = vpop.permute.xlu0 %3534
        %3536 = vset.pattern.permute.xlu0 0
        %3537 = vperm.xlu0 %3536, %v3106
        %v3538 = vpop.permute.xlu0 %3537
        %3539 = vset.pattern.permute.xlu0 0
        %3540 = vperm.xlu0 %3539, %v3108
        %v3541 = vpop.permute.xlu0 %3540
        %3542 = vset.pattern.permute.xlu0 0
        %3543 = vperm.xlu0 %3542, %v3110
        %v3544 = vpop.permute.xlu0 %3543
        %3545 = vset.pattern.permute.xlu0 0
        %3546 = vperm.xlu0 %3545, %v3112
        %v3547 = vpop.permute.xlu0 %3546
        %3548 = vset.pattern.permute.xlu0 0
        %3549 = vperm.xlu0 %3548, %v3114
        %v3550 = vpop.permute.xlu0 %3549
        %3551 = vset.pattern.permute.xlu0 0
        %3552 = vperm.xlu0 %3551, %v3116
        %v3553 = vpop.permute.xlu0 %3552
        %3554 = vset.pattern.permute.xlu0 0
        %3555 = vperm.xlu0 %3554, %v3118
        %v3556 = vpop.permute.xlu0 %3555
        %3557 = vset.pattern.permute.xlu0 0
        %3558 = vperm.xlu0 %3557, %v3120
        %v3559 = vpop.permute.xlu0 %3558
        %3560 = vset.pattern.permute.xlu0 0
        %3561 = vperm.xlu0 %3560, %v3122
        %v3562 = vpop.permute.xlu0 %3561
        %3563 = vset.pattern.permute.xlu0 0
        %3564 = vperm.xlu0 %3563, %v3124
        %v3565 = vpop.permute.xlu0 %3564
        %3566 = vset.pattern.permute.xlu0 0
        %3567 = vperm.xlu0 %3566, %v3126
        %v3568 = vpop.permute.xlu0 %3567
        %3569 = vset.pattern.permute.xlu0 0
        %3570 = vperm.xlu0 %3569, %v3128
        %v3571 = vpop.permute.xlu0 %3570
        %3572 = vset.pattern.permute.xlu0 0
        %3573 = vperm.xlu0 %3572, %v3130
        %v3574 = vpop.permute.xlu0 %3573
        %3575 = vset.pattern.permute.xlu0 0
        %3576 = vperm.xlu0 %3575, %v3132
        %v3577 = vpop.permute.xlu0 %3576
        %3578 = vset.pattern.permute.xlu0 0
        %3579 = vperm.xlu0 %3578, %v3134
        %v3580 = vpop.permute.xlu0 %3579
        %3581 = vset.pattern.permute.xlu0 0
        %3582 = vperm.xlu0 %3581, %v3136
        %v3583 = vpop.permute.xlu0 %3582
        %3584 = vset.pattern.permute.xlu0 0
        %3585 = vperm.xlu0 %3584, %v3138
        %v3586 = vpop.permute.xlu0 %3585
        %3587 = vset.pattern.permute.xlu0 0
        %3588 = vperm.xlu0 %3587, %v3140
        %v3589 = vpop.permute.xlu0 %3588
        %3590 = vset.pattern.permute.xlu0 0
        %3591 = vperm.xlu0 %3590, %v3142
        %v3592 = vpop.permute.xlu0 %3591
        %3593 = vset.pattern.permute.xlu0 0
        %3594 = vperm.xlu0 %3593, %v3144
        %v3595 = vpop.permute.xlu0 %3594
        %3596 = vset.pattern.permute.xlu0 0
        %3597 = vperm.xlu0 %3596, %v3146
        %v3598 = vpop.permute.xlu0 %3597
        %3599 = vset.pattern.permute.xlu0 0
        %3600 = vperm.xlu0 %3599, %v3148
        %v3601 = vpop.permute.xlu0 %3600
        %3602 = vset.pattern.permute.xlu0 0
        %3603 = vperm.xlu0 %3602, %v3150
        %v3604 = vpop.permute.xlu0 %3603
        %3605 = vset.pattern.permute.xlu0 0
        %3606 = vperm.xlu0 %3605, %v3152
        %v3607 = vpop.permute.xlu0 %3606
        %3608 = vset.pattern.permute.xlu0 0
        %3609 = vperm.xlu0 %3608, %v3154
        %v3610 = vpop.permute.xlu0 %3609
        %3611 = vset.pattern.permute.xlu0 0
        %3612 = vperm.xlu0 %3611, %v3156
        %v3613 = vpop.permute.xlu0 %3612
        %3614 = vset.pattern.permute.xlu0 0
        %3615 = vperm.xlu0 %3614, %v3158
        %v3616 = vpop.permute.xlu0 %3615
        %3617 = vset.pattern.permute.xlu0 0
        %3618 = vperm.xlu0 %3617, %v3160
        %v3619 = vpop.permute.xlu0 %3618
        %3620 = vset.pattern.permute.xlu0 0
        %3621 = vperm.xlu0 %3620, %v3162
        %v3622 = vpop.permute.xlu0 %3621
        %3623 = vset.pattern.permute.xlu0 0
        %3624 = vperm.xlu0 %3623, %v3164
        %v3625 = vpop.permute.xlu0 %3624
        %3626 = vset.pattern.permute.xlu0 0
        %3627 = vperm.xlu0 %3626, %v3166
        %v3628 = vpop.permute.xlu0 %3627
        %3629 = vset.pattern.permute.xlu0 0
        %3630 = vperm.xlu0 %3629, %v3168
        %v3631 = vpop.permute.xlu0 %3630
        %3632 = vset.pattern.permute.xlu0 0
        %3633 = vperm.xlu0 %3632, %v3170
        %v3634 = vpop.permute.xlu0 %3633
        %3635 = vset.pattern.permute.xlu0 0
        %3636 = vperm.xlu0 %3635, %v3172
        %v3637 = vpop.permute.xlu0 %3636
        %3638 = vset.pattern.permute.xlu0 0
        %3639 = vperm.xlu0 %3638, %v3174
        %v3640 = vpop.permute.xlu0 %3639
        %3641 = vset.pattern.permute.xlu0 0
        %3642 = vperm.xlu0 %3641, %v3176
        %v3643 = vpop.permute.xlu0 %3642
        %3644 = vset.pattern.permute.xlu0 0
        %3645 = vperm.xlu0 %3644, %v3178
        %v3646 = vpop.permute.xlu0 %3645
        %3647 = vset.pattern.permute.xlu0 0
        %3648 = vperm.xlu0 %3647, %v3180
        %v3649 = vpop.permute.xlu0 %3648
        %3650 = vset.pattern.permute.xlu0 0
        %3651 = vperm.xlu0 %3650, %v3182
        %v3652 = vpop.permute.xlu0 %3651
        %3653 = vset.pattern.permute.xlu0 0
        %3654 = vperm.xlu0 %3653, %v3184
        %v3655 = vpop.permute.xlu0 %3654
        %3656 = vset.pattern.permute.xlu0 0
        %3657 = vperm.xlu0 %3656, %v3186
        %v3658 = vpop.permute.xlu0 %3657
        %3659 = vset.pattern.permute.xlu0 0
        %3660 = vperm.xlu0 %3659, %v3188
        %v3661 = vpop.permute.xlu0 %3660
        %3662 = vset.pattern.permute.xlu0 0
        %3663 = vperm.xlu0 %3662, %v3190
        %v3664 = vpop.permute.xlu0 %3663
        %3665 = vset.pattern.permute.xlu0 0
        %3666 = vperm.xlu0 %3665, %v3192
        %v3667 = vpop.permute.xlu0 %3666
        %3668 = vset.pattern.permute.xlu0 0
        %3669 = vperm.xlu0 %3668, %v3194
        %v3670 = vpop.permute.xlu0 %3669
        %3671 = vset.pattern.permute.xlu0 0
        %3672 = vperm.xlu0 %3671, %v3196
        %v3673 = vpop.permute.xlu0 %3672
        %3674 = vset.pattern.permute.xlu0 0
        %3675 = vperm.xlu0 %3674, %v3198
        %v3676 = vpop.permute.xlu0 %3675
        %3677 = vset.pattern.permute.xlu0 0
        %3678 = vperm.xlu0 %3677, %v3200
        %v3679 = vpop.permute.xlu0 %3678
        %3680 = vset.pattern.permute.xlu0 0
        %3681 = vperm.xlu0 %3680, %v3202
        %v3682 = vpop.permute.xlu0 %3681
        %3683 = vset.pattern.permute.xlu0 0
        %3684 = vperm.xlu0 %3683, %v3204
        %v3685 = vpop.permute.xlu0 %3684
        %3686 = vset.pattern.permute.xlu0 0
        %3687 = vperm.xlu0 %3686, %v3206
        %v3688 = vpop.permute.xlu0 %3687
        %3689 = vset.pattern.permute.xlu0 0
        %3690 = vperm.xlu0 %3689, %v3208
        %v3691 = vpop.permute.xlu0 %3690
        %3692 = vset.pattern.permute.xlu0 0
        %3693 = vperm.xlu0 %3692, %v3210
        %v3694 = vpop.permute.xlu0 %3693
        %3695 = vset.pattern.permute.xlu0 0
        %3696 = vperm.xlu0 %3695, %v3212
        %v3697 = vpop.permute.xlu0 %3696
        %3698 = vset.pattern.permute.xlu0 0
        %3699 = vperm.xlu0 %3698, %v3214
        %v3700 = vpop.permute.xlu0 %3699
        %3701 = vset.pattern.permute.xlu0 0
        %3702 = vperm.xlu0 %3701, %v3216
        %v3703 = vpop.permute.xlu0 %3702
        %3704 = vset.pattern.permute.xlu0 0
        %3705 = vperm.xlu0 %3704, %v3218
        %v3706 = vpop.permute.xlu0 %3705
        %3707 = vset.pattern.permute.xlu0 0
        %3708 = vperm.xlu0 %3707, %v3220
        %v3709 = vpop.permute.xlu0 %3708
        %3710 = vset.pattern.permute.xlu0 0
        %3711 = vperm.xlu0 %3710, %v3222
        %v3712 = vpop.permute.xlu0 %3711
        %3713 = vset.pattern.permute.xlu0 0
        %3714 = vperm.xlu0 %3713, %v3224
        %v3715 = vpop.permute.xlu0 %3714
        %3716 = vset.pattern.permute.xlu0 0
        %3717 = vperm.xlu0 %3716, %v3226
        %v3718 = vpop.permute.xlu0 %3717
        %3719 = vset.pattern.permute.xlu0 0
        %3720 = vperm.xlu0 %3719, %v3228
        %v3721 = vpop.permute.xlu0 %3720
        %3722 = vset.pattern.permute.xlu0 0
        %3723 = vperm.xlu0 %3722, %v3230
        %v3724 = vpop.permute.xlu0 %3723
        %3725 = vset.pattern.permute.xlu0 0
        %3726 = vperm.xlu0 %3725, %v3232
        %v3727 = vpop.permute.xlu0 %3726
        %3728 = vset.pattern.permute.xlu0 0
        %3729 = vperm.xlu0 %3728, %v3234
        %v3730 = vpop.permute.xlu0 %3729
        %3731 = vset.pattern.permute.xlu0 0
        %3732 = vperm.xlu0 %3731, %v3236
        %v3733 = vpop.permute.xlu0 %3732
        %3734 = vset.pattern.permute.xlu0 0
        %3735 = vperm.xlu0 %3734, %v3238
        %v3736 = vpop.permute.xlu0 %3735
        %3737 = vset.pattern.permute.xlu0 0
        %3738 = vperm.xlu0 %3737, %v3240
        %v3739 = vpop.permute.xlu0 %3738
        %3740 = vset.pattern.permute.xlu0 0
        %3741 = vperm.xlu0 %3740, %v3242
        %v3742 = vpop.permute.xlu0 %3741
        %3743 = vset.pattern.permute.xlu0 0
        %3744 = vperm.xlu0 %3743, %v3244
        %v3745 = vpop.permute.xlu0 %3744
        %3746 = vset.pattern.permute.xlu0 0
        %3747 = vperm.xlu0 %3746, %v3246
        %v3748 = vpop.permute.xlu0 %3747
        %3749 = vset.pattern.permute.xlu0 0
        %3750 = vperm.xlu0 %3749, %v3248
        %v3751 = vpop.permute.xlu0 %3750
        %3752 = vset.pattern.permute.xlu0 0
        %3753 = vperm.xlu0 %3752, %v3250
        %v3754 = vpop.permute.xlu0 %3753
        %3755 = vset.pattern.permute.xlu0 0
        %3756 = vperm.xlu0 %3755, %v3252
        %v3757 = vpop.permute.xlu0 %3756
        %3758 = vset.pattern.permute.xlu0 0
        %3759 = vperm.xlu0 %3758, %v3254
        %v3760 = vpop.permute.xlu0 %3759
        %3761 = vset.pattern.permute.xlu0 0
        %3762 = vperm.xlu0 %3761, %v3256
        %v3763 = vpop.permute.xlu0 %3762
        %3764 = vset.pattern.permute.xlu0 0
        %3765 = vperm.xlu0 %3764, %v3258
        %v3766 = vpop.permute.xlu0 %3765
        %3767 = vset.pattern.permute.xlu0 0
        %3768 = vperm.xlu0 %3767, %v3260
        %v3769 = vpop.permute.xlu0 %3768
        %3770 = vset.pattern.permute.xlu0 0
        %3771 = vperm.xlu0 %3770, %v3262
        %v3772 = vpop.permute.xlu0 %3771
        %3773 = vset.pattern.permute.xlu0 0
        %3774 = vperm.xlu0 %3773, %v3264
        %v3775 = vpop.permute.xlu0 %3774
        %3776 = vset.pattern.permute.xlu0 0
        %3777 = vperm.xlu0 %3776, %v3266
        %v3778 = vpop.permute.xlu0 %3777
        %v3779 = vlaneseq
        %v3780 = vshrl.u32 %v3779, 7
        %v3781 = vsub.s32 %v2162, %v3780
        %v3782 = vrot.slane %v3397, %v3781
        %v3783 = vlaneseq
        %v3784 = vshrl.u32 %v3783, 7
        %v3785 = vsub.s32 %v2167, %v3784
        %v3786 = vrot.slane %v3400, %v3785
        %v3787 = vsel %vm2172, %v3786, %v3782
        %v3788 = vlaneseq
        %v3789 = vshrl.u32 %v3788, 7
        %v3790 = vsub.s32 %v2174, %v3789
        %v3791 = vrot.slane %v3403, %v3790
        %v3792 = vsel %vm2179, %v3791, %v3787
        %v3793 = vlaneseq
        %v3794 = vshrl.u32 %v3793, 7
        %v3795 = vsub.s32 %v2181, %v3794
        %v3796 = vrot.slane %v3406, %v3795
        %v3797 = vsel %vm2186, %v3796, %v3792
        %v3798 = vlaneseq
        %v3799 = vshrl.u32 %v3798, 7
        %v3800 = vsub.s32 %v2188, %v3799
        %v3801 = vrot.slane %v3409, %v3800
        %v3802 = vsel %vm2193, %v3801, %v3797
        %v3803 = vlaneseq
        %v3804 = vshrl.u32 %v3803, 7
        %v3805 = vsub.s32 %v2195, %v3804
        %v3806 = vrot.slane %v3412, %v3805
        %v3807 = vsel %vm2200, %v3806, %v3802
        %v3808 = vlaneseq
        %v3809 = vshrl.u32 %v3808, 7
        %v3810 = vsub.s32 %v2202, %v3809
        %v3811 = vrot.slane %v3415, %v3810
        %v3812 = vsel %vm2207, %v3811, %v3807
        %v3813 = vlaneseq
        %v3814 = vshrl.u32 %v3813, 7
        %v3815 = vsub.s32 %v2209, %v3814
        %v3816 = vrot.slane %v3418, %v3815
        %v3817 = vsel %vm2214, %v3816, %v3812
        %v3818 = vlaneseq
        %v3819 = vshrl.u32 %v3818, 7
        %v3820 = vsub.s32 %v2216, %v3819
        %v3821 = vrot.slane %v3421, %v3820
        %v3822 = vsel %vm2221, %v3821, %v3817
        %v3823 = vlaneseq
        %v3824 = vshrl.u32 %v3823, 7
        %v3825 = vsub.s32 %v2223, %v3824
        %v3826 = vrot.slane %v3424, %v3825
        %v3827 = vsel %vm2228, %v3826, %v3822
        %v3828 = vlaneseq
        %v3829 = vshrl.u32 %v3828, 7
        %v3830 = vsub.s32 %v2230, %v3829
        %v3831 = vrot.slane %v3427, %v3830
        %v3832 = vsel %vm2235, %v3831, %v3827
        %v3833 = vlaneseq
        %v3834 = vshrl.u32 %v3833, 7
        %v3835 = vsub.s32 %v2237, %v3834
        %v3836 = vrot.slane %v3430, %v3835
        %v3837 = vsel %vm2242, %v3836, %v3832
        %v3838 = vlaneseq
        %v3839 = vshrl.u32 %v3838, 7
        %v3840 = vsub.s32 %v2244, %v3839
        %v3841 = vrot.slane %v3433, %v3840
        %v3842 = vsel %vm2249, %v3841, %v3837
        %v3843 = vlaneseq
        %v3844 = vshrl.u32 %v3843, 7
        %v3845 = vsub.s32 %v2251, %v3844
        %v3846 = vrot.slane %v3436, %v3845
        %v3847 = vsel %vm2256, %v3846, %v3842
        %v3848 = vlaneseq
        %v3849 = vshrl.u32 %v3848, 7
        %v3850 = vsub.s32 %v2258, %v3849
        %v3851 = vrot.slane %v3439, %v3850
        %v3852 = vsel %vm2263, %v3851, %v3847
        %v3853 = vlaneseq
        %v3854 = vshrl.u32 %v3853, 7
        %v3855 = vsub.s32 %v2265, %v3854
        %v3856 = vrot.slane %v3442, %v3855
        %v3857 = vsel %vm2270, %v3856, %v3852
        %v3858 = vlaneseq
        %v3859 = vshrl.u32 %v3858, 7
        %v3860 = vsub.s32 %v2162, %v3859
        %v3861 = vrot.slane %v3445, %v3860
        %v3862 = vlaneseq
        %v3863 = vshrl.u32 %v3862, 7
        %v3864 = vsub.s32 %v2167, %v3863
        %v3865 = vrot.slane %v3448, %v3864
        %v3866 = vsel %vm2172, %v3865, %v3861
        %v3867 = vlaneseq
        %v3868 = vshrl.u32 %v3867, 7
        %v3869 = vsub.s32 %v2174, %v3868
        %v3870 = vrot.slane %v3451, %v3869
        %v3871 = vsel %vm2179, %v3870, %v3866
        %v3872 = vlaneseq
        %v3873 = vshrl.u32 %v3872, 7
        %v3874 = vsub.s32 %v2181, %v3873
        %v3875 = vrot.slane %v3454, %v3874
        %v3876 = vsel %vm2186, %v3875, %v3871
        %v3877 = vlaneseq
        %v3878 = vshrl.u32 %v3877, 7
        %v3879 = vsub.s32 %v2188, %v3878
        %v3880 = vrot.slane %v3457, %v3879
        %v3881 = vsel %vm2193, %v3880, %v3876
        %v3882 = vlaneseq
        %v3883 = vshrl.u32 %v3882, 7
        %v3884 = vsub.s32 %v2195, %v3883
        %v3885 = vrot.slane %v3460, %v3884
        %v3886 = vsel %vm2200, %v3885, %v3881
        %v3887 = vlaneseq
        %v3888 = vshrl.u32 %v3887, 7
        %v3889 = vsub.s32 %v2202, %v3888
        %v3890 = vrot.slane %v3463, %v3889
        %v3891 = vsel %vm2207, %v3890, %v3886
        %v3892 = vlaneseq
        %v3893 = vshrl.u32 %v3892, 7
        %v3894 = vsub.s32 %v2209, %v3893
        %v3895 = vrot.slane %v3466, %v3894
        %v3896 = vsel %vm2214, %v3895, %v3891
        %v3897 = vlaneseq
        %v3898 = vshrl.u32 %v3897, 7
        %v3899 = vsub.s32 %v2216, %v3898
        %v3900 = vrot.slane %v3469, %v3899
        %v3901 = vsel %vm2221, %v3900, %v3896
        %v3902 = vlaneseq
        %v3903 = vshrl.u32 %v3902, 7
        %v3904 = vsub.s32 %v2223, %v3903
        %v3905 = vrot.slane %v3472, %v3904
        %v3906 = vsel %vm2228, %v3905, %v3901
        %v3907 = vlaneseq
        %v3908 = vshrl.u32 %v3907, 7
        %v3909 = vsub.s32 %v2230, %v3908
        %v3910 = vrot.slane %v3475, %v3909
        %v3911 = vsel %vm2235, %v3910, %v3906
        %v3912 = vlaneseq
        %v3913 = vshrl.u32 %v3912, 7
        %v3914 = vsub.s32 %v2237, %v3913
        %v3915 = vrot.slane %v3478, %v3914
        %v3916 = vsel %vm2242, %v3915, %v3911
        %v3917 = vlaneseq
        %v3918 = vshrl.u32 %v3917, 7
        %v3919 = vsub.s32 %v2244, %v3918
        %v3920 = vrot.slane %v3481, %v3919
        %v3921 = vsel %vm2249, %v3920, %v3916
        %v3922 = vlaneseq
        %v3923 = vshrl.u32 %v3922, 7
        %v3924 = vsub.s32 %v2251, %v3923
        %v3925 = vrot.slane %v3484, %v3924
        %v3926 = vsel %vm2256, %v3925, %v3921
        %v3927 = vlaneseq
        %v3928 = vshrl.u32 %v3927, 7
        %v3929 = vsub.s32 %v2258, %v3928
        %v3930 = vrot.slane %v3487, %v3929
        %v3931 = vsel %vm2263, %v3930, %v3926
        %v3932 = vlaneseq
        %v3933 = vshrl.u32 %v3932, 7
        %v3934 = vsub.s32 %v2265, %v3933
        %v3935 = vrot.slane %v3490, %v3934
        %v3936 = vsel %vm2270, %v3935, %v3931
        %v3937 = vlaneseq
        %v3938 = vshrl.u32 %v3937, 7
        %v3939 = vsub.s32 %v2162, %v3938
        %v3940 = vrot.slane %v3493, %v3939
        %v3941 = vlaneseq
        %v3942 = vshrl.u32 %v3941, 7
        %v3943 = vsub.s32 %v2167, %v3942
        %v3944 = vrot.slane %v3496, %v3943
        %v3945 = vsel %vm2172, %v3944, %v3940
        %v3946 = vlaneseq
        %v3947 = vshrl.u32 %v3946, 7
        %v3948 = vsub.s32 %v2174, %v3947
        %v3949 = vrot.slane %v3499, %v3948
        %v3950 = vsel %vm2179, %v3949, %v3945
        %v3951 = vlaneseq
        %v3952 = vshrl.u32 %v3951, 7
        %v3953 = vsub.s32 %v2181, %v3952
        %v3954 = vrot.slane %v3502, %v3953
        %v3955 = vsel %vm2186, %v3954, %v3950
        %v3956 = vlaneseq
        %v3957 = vshrl.u32 %v3956, 7
        %v3958 = vsub.s32 %v2188, %v3957
        %v3959 = vrot.slane %v3505, %v3958
        %v3960 = vsel %vm2193, %v3959, %v3955
        %v3961 = vlaneseq
        %v3962 = vshrl.u32 %v3961, 7
        %v3963 = vsub.s32 %v2195, %v3962
        %v3964 = vrot.slane %v3508, %v3963
        %v3965 = vsel %vm2200, %v3964, %v3960
        %v3966 = vlaneseq
        %v3967 = vshrl.u32 %v3966, 7
        %v3968 = vsub.s32 %v2202, %v3967
        %v3969 = vrot.slane %v3511, %v3968
        %v3970 = vsel %vm2207, %v3969, %v3965
        %v3971 = vlaneseq
        %v3972 = vshrl.u32 %v3971, 7
        %v3973 = vsub.s32 %v2209, %v3972
        %v3974 = vrot.slane %v3514, %v3973
        %v3975 = vsel %vm2214, %v3974, %v3970
        %v3976 = vlaneseq
        %v3977 = vshrl.u32 %v3976, 7
        %v3978 = vsub.s32 %v2216, %v3977
        %v3979 = vrot.slane %v3517, %v3978
        %v3980 = vsel %vm2221, %v3979, %v3975
        %v3981 = vlaneseq
        %v3982 = vshrl.u32 %v3981, 7
        %v3983 = vsub.s32 %v2223, %v3982
        %v3984 = vrot.slane %v3520, %v3983
        %v3985 = vsel %vm2228, %v3984, %v3980
        %v3986 = vlaneseq
        %v3987 = vshrl.u32 %v3986, 7
        %v3988 = vsub.s32 %v2230, %v3987
        %v3989 = vrot.slane %v3523, %v3988
        %v3990 = vsel %vm2235, %v3989, %v3985
        %v3991 = vlaneseq
        %v3992 = vshrl.u32 %v3991, 7
        %v3993 = vsub.s32 %v2237, %v3992
        %v3994 = vrot.slane %v3526, %v3993
        %v3995 = vsel %vm2242, %v3994, %v3990
        %v3996 = vlaneseq
        %v3997 = vshrl.u32 %v3996, 7
        %v3998 = vsub.s32 %v2244, %v3997
        %v3999 = vrot.slane %v3529, %v3998
        %v4000 = vsel %vm2249, %v3999, %v3995
        %v4001 = vlaneseq
        %v4002 = vshrl.u32 %v4001, 7
        %v4003 = vsub.s32 %v2251, %v4002
        %v4004 = vrot.slane %v3532, %v4003
        %v4005 = vsel %vm2256, %v4004, %v4000
        %v4006 = vlaneseq
        %v4007 = vshrl.u32 %v4006, 7
        %v4008 = vsub.s32 %v2258, %v4007
        %v4009 = vrot.slane %v3535, %v4008
        %v4010 = vsel %vm2263, %v4009, %v4005
        %v4011 = vlaneseq
        %v4012 = vshrl.u32 %v4011, 7
        %v4013 = vsub.s32 %v2265, %v4012
        %v4014 = vrot.slane %v3538, %v4013
        %v4015 = vsel %vm2270, %v4014, %v4010
        %v4016 = vlaneseq
        %v4017 = vshrl.u32 %v4016, 7
        %v4018 = vsub.s32 %v2162, %v4017
        %v4019 = vrot.slane %v3541, %v4018
        %v4020 = vlaneseq
        %v4021 = vshrl.u32 %v4020, 7
        %v4022 = vsub.s32 %v2167, %v4021
        %v4023 = vrot.slane %v3544, %v4022
        %v4024 = vsel %vm2172, %v4023, %v4019
        %v4025 = vlaneseq
        %v4026 = vshrl.u32 %v4025, 7
        %v4027 = vsub.s32 %v2174, %v4026
        %v4028 = vrot.slane %v3547, %v4027
        %v4029 = vsel %vm2179, %v4028, %v4024
        %v4030 = vlaneseq
        %v4031 = vshrl.u32 %v4030, 7
        %v4032 = vsub.s32 %v2181, %v4031
        %v4033 = vrot.slane %v3550, %v4032
        %v4034 = vsel %vm2186, %v4033, %v4029
        %v4035 = vlaneseq
        %v4036 = vshrl.u32 %v4035, 7
        %v4037 = vsub.s32 %v2188, %v4036
        %v4038 = vrot.slane %v3553, %v4037
        %v4039 = vsel %vm2193, %v4038, %v4034
        %v4040 = vlaneseq
        %v4041 = vshrl.u32 %v4040, 7
        %v4042 = vsub.s32 %v2195, %v4041
        %v4043 = vrot.slane %v3556, %v4042
        %v4044 = vsel %vm2200, %v4043, %v4039
        %v4045 = vlaneseq
        %v4046 = vshrl.u32 %v4045, 7
        %v4047 = vsub.s32 %v2202, %v4046
        %v4048 = vrot.slane %v3559, %v4047
        %v4049 = vsel %vm2207, %v4048, %v4044
        %v4050 = vlaneseq
        %v4051 = vshrl.u32 %v4050, 7
        %v4052 = vsub.s32 %v2209, %v4051
        %v4053 = vrot.slane %v3562, %v4052
        %v4054 = vsel %vm2214, %v4053, %v4049
        %v4055 = vlaneseq
        %v4056 = vshrl.u32 %v4055, 7
        %v4057 = vsub.s32 %v2216, %v4056
        %v4058 = vrot.slane %v3565, %v4057
        %v4059 = vsel %vm2221, %v4058, %v4054
        %v4060 = vlaneseq
        %v4061 = vshrl.u32 %v4060, 7
        %v4062 = vsub.s32 %v2223, %v4061
        %v4063 = vrot.slane %v3568, %v4062
        %v4064 = vsel %vm2228, %v4063, %v4059
        %v4065 = vlaneseq
        %v4066 = vshrl.u32 %v4065, 7
        %v4067 = vsub.s32 %v2230, %v4066
        %v4068 = vrot.slane %v3571, %v4067
        %v4069 = vsel %vm2235, %v4068, %v4064
        %v4070 = vlaneseq
        %v4071 = vshrl.u32 %v4070, 7
        %v4072 = vsub.s32 %v2237, %v4071
        %v4073 = vrot.slane %v3574, %v4072
        %v4074 = vsel %vm2242, %v4073, %v4069
        %v4075 = vlaneseq
        %v4076 = vshrl.u32 %v4075, 7
        %v4077 = vsub.s32 %v2244, %v4076
        %v4078 = vrot.slane %v3577, %v4077
        %v4079 = vsel %vm2249, %v4078, %v4074
        %v4080 = vlaneseq
        %v4081 = vshrl.u32 %v4080, 7
        %v4082 = vsub.s32 %v2251, %v4081
        %v4083 = vrot.slane %v3580, %v4082
        %v4084 = vsel %vm2256, %v4083, %v4079
        %v4085 = vlaneseq
        %v4086 = vshrl.u32 %v4085, 7
        %v4087 = vsub.s32 %v2258, %v4086
        %v4088 = vrot.slane %v3583, %v4087
        %v4089 = vsel %vm2263, %v4088, %v4084
        %v4090 = vlaneseq
        %v4091 = vshrl.u32 %v4090, 7
        %v4092 = vsub.s32 %v2265, %v4091
        %v4093 = vrot.slane %v3586, %v4092
        %v4094 = vsel %vm2270, %v4093, %v4089
        %v4095 = vlaneseq
        %v4096 = vshrl.u32 %v4095, 7
        %v4097 = vsub.s32 %v2162, %v4096
        %v4098 = vrot.slane %v3589, %v4097
        %v4099 = vlaneseq
        %v4100 = vshrl.u32 %v4099, 7
        %v4101 = vsub.s32 %v2167, %v4100
        %v4102 = vrot.slane %v3592, %v4101
        %v4103 = vsel %vm2172, %v4102, %v4098
        %v4104 = vlaneseq
        %v4105 = vshrl.u32 %v4104, 7
        %v4106 = vsub.s32 %v2174, %v4105
        %v4107 = vrot.slane %v3595, %v4106
        %v4108 = vsel %vm2179, %v4107, %v4103
        %v4109 = vlaneseq
        %v4110 = vshrl.u32 %v4109, 7
        %v4111 = vsub.s32 %v2181, %v4110
        %v4112 = vrot.slane %v3598, %v4111
        %v4113 = vsel %vm2186, %v4112, %v4108
        %v4114 = vlaneseq
        %v4115 = vshrl.u32 %v4114, 7
        %v4116 = vsub.s32 %v2188, %v4115
        %v4117 = vrot.slane %v3601, %v4116
        %v4118 = vsel %vm2193, %v4117, %v4113
        %v4119 = vlaneseq
        %v4120 = vshrl.u32 %v4119, 7
        %v4121 = vsub.s32 %v2195, %v4120
        %v4122 = vrot.slane %v3604, %v4121
        %v4123 = vsel %vm2200, %v4122, %v4118
        %v4124 = vlaneseq
        %v4125 = vshrl.u32 %v4124, 7
        %v4126 = vsub.s32 %v2202, %v4125
        %v4127 = vrot.slane %v3607, %v4126
        %v4128 = vsel %vm2207, %v4127, %v4123
        %v4129 = vlaneseq
        %v4130 = vshrl.u32 %v4129, 7
        %v4131 = vsub.s32 %v2209, %v4130
        %v4132 = vrot.slane %v3610, %v4131
        %v4133 = vsel %vm2214, %v4132, %v4128
        %v4134 = vlaneseq
        %v4135 = vshrl.u32 %v4134, 7
        %v4136 = vsub.s32 %v2216, %v4135
        %v4137 = vrot.slane %v3613, %v4136
        %v4138 = vsel %vm2221, %v4137, %v4133
        %v4139 = vlaneseq
        %v4140 = vshrl.u32 %v4139, 7
        %v4141 = vsub.s32 %v2223, %v4140
        %v4142 = vrot.slane %v3616, %v4141
        %v4143 = vsel %vm2228, %v4142, %v4138
        %v4144 = vlaneseq
        %v4145 = vshrl.u32 %v4144, 7
        %v4146 = vsub.s32 %v2230, %v4145
        %v4147 = vrot.slane %v3619, %v4146
        %v4148 = vsel %vm2235, %v4147, %v4143
        %v4149 = vlaneseq
        %v4150 = vshrl.u32 %v4149, 7
        %v4151 = vsub.s32 %v2237, %v4150
        %v4152 = vrot.slane %v3622, %v4151
        %v4153 = vsel %vm2242, %v4152, %v4148
        %v4154 = vlaneseq
        %v4155 = vshrl.u32 %v4154, 7
        %v4156 = vsub.s32 %v2244, %v4155
        %v4157 = vrot.slane %v3625, %v4156
        %v4158 = vsel %vm2249, %v4157, %v4153
        %v4159 = vlaneseq
        %v4160 = vshrl.u32 %v4159, 7
        %v4161 = vsub.s32 %v2251, %v4160
        %v4162 = vrot.slane %v3628, %v4161
        %v4163 = vsel %vm2256, %v4162, %v4158
        %v4164 = vlaneseq
        %v4165 = vshrl.u32 %v4164, 7
        %v4166 = vsub.s32 %v2258, %v4165
        %v4167 = vrot.slane %v3631, %v4166
        %v4168 = vsel %vm2263, %v4167, %v4163
        %v4169 = vlaneseq
        %v4170 = vshrl.u32 %v4169, 7
        %v4171 = vsub.s32 %v2265, %v4170
        %v4172 = vrot.slane %v3634, %v4171
        %v4173 = vsel %vm2270, %v4172, %v4168
        %v4174 = vlaneseq
        %v4175 = vshrl.u32 %v4174, 7
        %v4176 = vsub.s32 %v2162, %v4175
        %v4177 = vrot.slane %v3637, %v4176
        %v4178 = vlaneseq
        %v4179 = vshrl.u32 %v4178, 7
        %v4180 = vsub.s32 %v2167, %v4179
        %v4181 = vrot.slane %v3640, %v4180
        %v4182 = vsel %vm2172, %v4181, %v4177
        %v4183 = vlaneseq
        %v4184 = vshrl.u32 %v4183, 7
        %v4185 = vsub.s32 %v2174, %v4184
        %v4186 = vrot.slane %v3643, %v4185
        %v4187 = vsel %vm2179, %v4186, %v4182
        %v4188 = vlaneseq
        %v4189 = vshrl.u32 %v4188, 7
        %v4190 = vsub.s32 %v2181, %v4189
        %v4191 = vrot.slane %v3646, %v4190
        %v4192 = vsel %vm2186, %v4191, %v4187
        %v4193 = vlaneseq
        %v4194 = vshrl.u32 %v4193, 7
        %v4195 = vsub.s32 %v2188, %v4194
        %v4196 = vrot.slane %v3649, %v4195
        %v4197 = vsel %vm2193, %v4196, %v4192
        %v4198 = vlaneseq
        %v4199 = vshrl.u32 %v4198, 7
        %v4200 = vsub.s32 %v2195, %v4199
        %v4201 = vrot.slane %v3652, %v4200
        %v4202 = vsel %vm2200, %v4201, %v4197
        %v4203 = vlaneseq
        %v4204 = vshrl.u32 %v4203, 7
        %v4205 = vsub.s32 %v2202, %v4204
        %v4206 = vrot.slane %v3655, %v4205
        %v4207 = vsel %vm2207, %v4206, %v4202
        %v4208 = vlaneseq
        %v4209 = vshrl.u32 %v4208, 7
        %v4210 = vsub.s32 %v2209, %v4209
        %v4211 = vrot.slane %v3658, %v4210
        %v4212 = vsel %vm2214, %v4211, %v4207
        %v4213 = vlaneseq
        %v4214 = vshrl.u32 %v4213, 7
        %v4215 = vsub.s32 %v2216, %v4214
        %v4216 = vrot.slane %v3661, %v4215
        %v4217 = vsel %vm2221, %v4216, %v4212
        %v4218 = vlaneseq
        %v4219 = vshrl.u32 %v4218, 7
        %v4220 = vsub.s32 %v2223, %v4219
        %v4221 = vrot.slane %v3664, %v4220
        %v4222 = vsel %vm2228, %v4221, %v4217
        %v4223 = vlaneseq
        %v4224 = vshrl.u32 %v4223, 7
        %v4225 = vsub.s32 %v2230, %v4224
        %v4226 = vrot.slane %v3667, %v4225
        %v4227 = vsel %vm2235, %v4226, %v4222
        %v4228 = vlaneseq
        %v4229 = vshrl.u32 %v4228, 7
        %v4230 = vsub.s32 %v2237, %v4229
        %v4231 = vrot.slane %v3670, %v4230
        %v4232 = vsel %vm2242, %v4231, %v4227
        %v4233 = vlaneseq
        %v4234 = vshrl.u32 %v4233, 7
        %v4235 = vsub.s32 %v2244, %v4234
        %v4236 = vrot.slane %v3673, %v4235
        %v4237 = vsel %vm2249, %v4236, %v4232
        %v4238 = vlaneseq
        %v4239 = vshrl.u32 %v4238, 7
        %v4240 = vsub.s32 %v2251, %v4239
        %v4241 = vrot.slane %v3676, %v4240
        %v4242 = vsel %vm2256, %v4241, %v4237
        %v4243 = vlaneseq
        %v4244 = vshrl.u32 %v4243, 7
        %v4245 = vsub.s32 %v2258, %v4244
        %v4246 = vrot.slane %v3679, %v4245
        %v4247 = vsel %vm2263, %v4246, %v4242
        %v4248 = vlaneseq
        %v4249 = vshrl.u32 %v4248, 7
        %v4250 = vsub.s32 %v2265, %v4249
        %v4251 = vrot.slane %v3682, %v4250
        %v4252 = vsel %vm2270, %v4251, %v4247
        %v4253 = vlaneseq
        %v4254 = vshrl.u32 %v4253, 7
        %v4255 = vsub.s32 %v2162, %v4254
        %v4256 = vrot.slane %v3685, %v4255
        %v4257 = vlaneseq
        %v4258 = vshrl.u32 %v4257, 7
        %v4259 = vsub.s32 %v2167, %v4258
        %v4260 = vrot.slane %v3688, %v4259
        %v4261 = vsel %vm2172, %v4260, %v4256
        %v4262 = vlaneseq
        %v4263 = vshrl.u32 %v4262, 7
        %v4264 = vsub.s32 %v2174, %v4263
        %v4265 = vrot.slane %v3691, %v4264
        %v4266 = vsel %vm2179, %v4265, %v4261
        %v4267 = vlaneseq
        %v4268 = vshrl.u32 %v4267, 7
        %v4269 = vsub.s32 %v2181, %v4268
        %v4270 = vrot.slane %v3694, %v4269
        %v4271 = vsel %vm2186, %v4270, %v4266
        %v4272 = vlaneseq
        %v4273 = vshrl.u32 %v4272, 7
        %v4274 = vsub.s32 %v2188, %v4273
        %v4275 = vrot.slane %v3697, %v4274
        %v4276 = vsel %vm2193, %v4275, %v4271
        %v4277 = vlaneseq
        %v4278 = vshrl.u32 %v4277, 7
        %v4279 = vsub.s32 %v2195, %v4278
        %v4280 = vrot.slane %v3700, %v4279
        %v4281 = vsel %vm2200, %v4280, %v4276
        %v4282 = vlaneseq
        %v4283 = vshrl.u32 %v4282, 7
        %v4284 = vsub.s32 %v2202, %v4283
        %v4285 = vrot.slane %v3703, %v4284
        %v4286 = vsel %vm2207, %v4285, %v4281
        %v4287 = vlaneseq
        %v4288 = vshrl.u32 %v4287, 7
        %v4289 = vsub.s32 %v2209, %v4288
        %v4290 = vrot.slane %v3706, %v4289
        %v4291 = vsel %vm2214, %v4290, %v4286
        %v4292 = vlaneseq
        %v4293 = vshrl.u32 %v4292, 7
        %v4294 = vsub.s32 %v2216, %v4293
        %v4295 = vrot.slane %v3709, %v4294
        %v4296 = vsel %vm2221, %v4295, %v4291
        %v4297 = vlaneseq
        %v4298 = vshrl.u32 %v4297, 7
        %v4299 = vsub.s32 %v2223, %v4298
        %v4300 = vrot.slane %v3712, %v4299
        %v4301 = vsel %vm2228, %v4300, %v4296
        %v4302 = vlaneseq
        %v4303 = vshrl.u32 %v4302, 7
        %v4304 = vsub.s32 %v2230, %v4303
        %v4305 = vrot.slane %v3715, %v4304
        %v4306 = vsel %vm2235, %v4305, %v4301
        %v4307 = vlaneseq
        %v4308 = vshrl.u32 %v4307, 7
        %v4309 = vsub.s32 %v2237, %v4308
        %v4310 = vrot.slane %v3718, %v4309
        %v4311 = vsel %vm2242, %v4310, %v4306
        %v4312 = vlaneseq
        %v4313 = vshrl.u32 %v4312, 7
        %v4314 = vsub.s32 %v2244, %v4313
        %v4315 = vrot.slane %v3721, %v4314
        %v4316 = vsel %vm2249, %v4315, %v4311
        %v4317 = vlaneseq
        %v4318 = vshrl.u32 %v4317, 7
        %v4319 = vsub.s32 %v2251, %v4318
        %v4320 = vrot.slane %v3724, %v4319
        %v4321 = vsel %vm2256, %v4320, %v4316
        %v4322 = vlaneseq
        %v4323 = vshrl.u32 %v4322, 7
        %v4324 = vsub.s32 %v2258, %v4323
        %v4325 = vrot.slane %v3727, %v4324
        %v4326 = vsel %vm2263, %v4325, %v4321
        %v4327 = vlaneseq
        %v4328 = vshrl.u32 %v4327, 7
        %v4329 = vsub.s32 %v2265, %v4328
        %v4330 = vrot.slane %v3730, %v4329
        %v4331 = vsel %vm2270, %v4330, %v4326
        %v4332 = vlaneseq
        %v4333 = vshrl.u32 %v4332, 7
        %v4334 = vsub.s32 %v2162, %v4333
        %v4335 = vrot.slane %v3733, %v4334
        %v4336 = vlaneseq
        %v4337 = vshrl.u32 %v4336, 7
        %v4338 = vsub.s32 %v2167, %v4337
        %v4339 = vrot.slane %v3736, %v4338
        %v4340 = vsel %vm2172, %v4339, %v4335
        %v4341 = vlaneseq
        %v4342 = vshrl.u32 %v4341, 7
        %v4343 = vsub.s32 %v2174, %v4342
        %v4344 = vrot.slane %v3739, %v4343
        %v4345 = vsel %vm2179, %v4344, %v4340
        %v4346 = vlaneseq
        %v4347 = vshrl.u32 %v4346, 7
        %v4348 = vsub.s32 %v2181, %v4347
        %v4349 = vrot.slane %v3742, %v4348
        %v4350 = vsel %vm2186, %v4349, %v4345
        %v4351 = vlaneseq
        %v4352 = vshrl.u32 %v4351, 7
        %v4353 = vsub.s32 %v2188, %v4352
        %v4354 = vrot.slane %v3745, %v4353
        %v4355 = vsel %vm2193, %v4354, %v4350
        %v4356 = vlaneseq
        %v4357 = vshrl.u32 %v4356, 7
        %v4358 = vsub.s32 %v2195, %v4357
        %v4359 = vrot.slane %v3748, %v4358
        %v4360 = vsel %vm2200, %v4359, %v4355
        %v4361 = vlaneseq
        %v4362 = vshrl.u32 %v4361, 7
        %v4363 = vsub.s32 %v2202, %v4362
        %v4364 = vrot.slane %v3751, %v4363
        %v4365 = vsel %vm2207, %v4364, %v4360
        %v4366 = vlaneseq
        %v4367 = vshrl.u32 %v4366, 7
        %v4368 = vsub.s32 %v2209, %v4367
        %v4369 = vrot.slane %v3754, %v4368
        %v4370 = vsel %vm2214, %v4369, %v4365
        %v4371 = vlaneseq
        %v4372 = vshrl.u32 %v4371, 7
        %v4373 = vsub.s32 %v2216, %v4372
        %v4374 = vrot.slane %v3757, %v4373
        %v4375 = vsel %vm2221, %v4374, %v4370
        %v4376 = vlaneseq
        %v4377 = vshrl.u32 %v4376, 7
        %v4378 = vsub.s32 %v2223, %v4377
        %v4379 = vrot.slane %v3760, %v4378
        %v4380 = vsel %vm2228, %v4379, %v4375
        %v4381 = vlaneseq
        %v4382 = vshrl.u32 %v4381, 7
        %v4383 = vsub.s32 %v2230, %v4382
        %v4384 = vrot.slane %v3763, %v4383
        %v4385 = vsel %vm2235, %v4384, %v4380
        %v4386 = vlaneseq
        %v4387 = vshrl.u32 %v4386, 7
        %v4388 = vsub.s32 %v2237, %v4387
        %v4389 = vrot.slane %v3766, %v4388
        %v4390 = vsel %vm2242, %v4389, %v4385
        %v4391 = vlaneseq
        %v4392 = vshrl.u32 %v4391, 7
        %v4393 = vsub.s32 %v2244, %v4392
        %v4394 = vrot.slane %v3769, %v4393
        %v4395 = vsel %vm2249, %v4394, %v4390
        %v4396 = vlaneseq
        %v4397 = vshrl.u32 %v4396, 7
        %v4398 = vsub.s32 %v2251, %v4397
        %v4399 = vrot.slane %v3772, %v4398
        %v4400 = vsel %vm2256, %v4399, %v4395
        %v4401 = vlaneseq
        %v4402 = vshrl.u32 %v4401, 7
        %v4403 = vsub.s32 %v2258, %v4402
        %v4404 = vrot.slane %v3775, %v4403
        %v4405 = vsel %vm2263, %v4404, %v4400
        %v4406 = vlaneseq
        %v4407 = vshrl.u32 %v4406, 7
        %v4408 = vsub.s32 %v2265, %v4407
        %v4409 = vrot.slane %v3778, %v4408
        %v4410 = vsel %vm2270, %v4409, %v4405
        %v4411 = vsel %vm2825, %v3936, %v3857
        %v4412 = vsel %vm2827, %v4015, %v4411
        %v4413 = vsel %vm2829, %v4094, %v4412
        %v4414 = vsel %vm2831, %v4173, %v4413
        %v4415 = vsel %vm2833, %v4252, %v4414
        %v4416 = vsel %vm2835, %v4331, %v4415
        %v4417 = vsel %vm2837, %v4410, %v4416
        %4419 = vadd.xlane.f32.xlu0 %v4417
        %v4420 = vpop.xlane.xlu0 %4419
        %v4421 = vrcp.pop %v4420
        %v4423 = vlaneseq
        %v4424 = vshrl.u32 %v4423, 7
        %v4425 = vsub.s32 0, %v4424
        %v4426 = vrot.slane %v4421, %v4425
        %v4427 = vlaneseq
        %v4428 = vshrl.u32 %v4427, 7
        %v4429 = vsub.s32 1, %v4428
        %v4430 = vrot.slane %v4421, %v4429
        %v4431 = vlaneseq
        %v4432 = vshrl.u32 %v4431, 7
        %v4433 = vsub.s32 2, %v4432
        %v4434 = vrot.slane %v4421, %v4433
        %v4435 = vlaneseq
        %v4436 = vshrl.u32 %v4435, 7
        %v4437 = vsub.s32 3, %v4436
        %v4438 = vrot.slane %v4421, %v4437
        %v4439 = vlaneseq
        %v4440 = vshrl.u32 %v4439, 7
        %v4441 = vsub.s32 4, %v4440
        %v4442 = vrot.slane %v4421, %v4441
        %v4443 = vlaneseq
        %v4444 = vshrl.u32 %v4443, 7
        %v4445 = vsub.s32 5, %v4444
        %v4446 = vrot.slane %v4421, %v4445
        %v4447 = vlaneseq
        %v4448 = vshrl.u32 %v4447, 7
        %v4449 = vsub.s32 6, %v4448
        %v4450 = vrot.slane %v4421, %v4449
        %v4451 = vlaneseq
        %v4452 = vshrl.u32 %v4451, 7
        %v4453 = vsub.s32 7, %v4452
        %v4454 = vrot.slane %v4421, %v4453
        %v4463 = vmul.f32 %v3012, %v4426
        %v4464 = vmul.f32 %v3014, %v4426
        %v4465 = vmul.f32 %v3016, %v4426
        %v4466 = vmul.f32 %v3018, %v4426
        %v4467 = vmul.f32 %v3020, %v4426
        %v4468 = vmul.f32 %v3022, %v4426
        %v4469 = vmul.f32 %v3024, %v4426
        %v4470 = vmul.f32 %v3026, %v4426
        %v4471 = vmul.f32 %v3028, %v4426
        %v4472 = vmul.f32 %v3030, %v4426
        %v4473 = vmul.f32 %v3032, %v4426
        %v4474 = vmul.f32 %v3034, %v4426
        %v4475 = vmul.f32 %v3036, %v4426
        %v4476 = vmul.f32 %v3038, %v4426
        %v4477 = vmul.f32 %v3040, %v4426
        %v4478 = vmul.f32 %v3042, %v4426
        %v4479 = vmul.f32 %v3044, %v4430
        %v4480 = vmul.f32 %v3046, %v4430
        %v4481 = vmul.f32 %v3048, %v4430
        %v4482 = vmul.f32 %v3050, %v4430
        %v4483 = vmul.f32 %v3052, %v4430
        %v4484 = vmul.f32 %v3054, %v4430
        %v4485 = vmul.f32 %v3056, %v4430
        %v4486 = vmul.f32 %v3058, %v4430
        %v4487 = vmul.f32 %v3060, %v4430
        %v4488 = vmul.f32 %v3062, %v4430
        %v4489 = vmul.f32 %v3064, %v4430
        %v4490 = vmul.f32 %v3066, %v4430
        %v4491 = vmul.f32 %v3068, %v4430
        %v4492 = vmul.f32 %v3070, %v4430
        %v4493 = vmul.f32 %v3072, %v4430
        %v4494 = vmul.f32 %v3074, %v4430
        %v4495 = vmul.f32 %v3076, %v4434
        %v4496 = vmul.f32 %v3078, %v4434
        %v4497 = vmul.f32 %v3080, %v4434
        %v4498 = vmul.f32 %v3082, %v4434
        %v4499 = vmul.f32 %v3084, %v4434
        %v4500 = vmul.f32 %v3086, %v4434
        %v4501 = vmul.f32 %v3088, %v4434
        %v4502 = vmul.f32 %v3090, %v4434
        %v4503 = vmul.f32 %v3092, %v4434
        %v4504 = vmul.f32 %v3094, %v4434
        %v4505 = vmul.f32 %v3096, %v4434
        %v4506 = vmul.f32 %v3098, %v4434
        %v4507 = vmul.f32 %v3100, %v4434
        %v4508 = vmul.f32 %v3102, %v4434
        %v4509 = vmul.f32 %v3104, %v4434
        %v4510 = vmul.f32 %v3106, %v4434
        %v4511 = vmul.f32 %v3108, %v4438
        %v4512 = vmul.f32 %v3110, %v4438
        %v4513 = vmul.f32 %v3112, %v4438
        %v4514 = vmul.f32 %v3114, %v4438
        %v4515 = vmul.f32 %v3116, %v4438
        %v4516 = vmul.f32 %v3118, %v4438
        %v4517 = vmul.f32 %v3120, %v4438
        %v4518 = vmul.f32 %v3122, %v4438
        %v4519 = vmul.f32 %v3124, %v4438
        %v4520 = vmul.f32 %v3126, %v4438
        %v4521 = vmul.f32 %v3128, %v4438
        %v4522 = vmul.f32 %v3130, %v4438
        %v4523 = vmul.f32 %v3132, %v4438
        %v4524 = vmul.f32 %v3134, %v4438
        %v4525 = vmul.f32 %v3136, %v4438
        %v4526 = vmul.f32 %v3138, %v4438
        %v4527 = vmul.f32 %v3140, %v4442
        %v4528 = vmul.f32 %v3142, %v4442
        %v4529 = vmul.f32 %v3144, %v4442
        %v4530 = vmul.f32 %v3146, %v4442
        %v4531 = vmul.f32 %v3148, %v4442
        %v4532 = vmul.f32 %v3150, %v4442
        %v4533 = vmul.f32 %v3152, %v4442
        %v4534 = vmul.f32 %v3154, %v4442
        %v4535 = vmul.f32 %v3156, %v4442
        %v4536 = vmul.f32 %v3158, %v4442
        %v4537 = vmul.f32 %v3160, %v4442
        %v4538 = vmul.f32 %v3162, %v4442
        %v4539 = vmul.f32 %v3164, %v4442
        %v4540 = vmul.f32 %v3166, %v4442
        %v4541 = vmul.f32 %v3168, %v4442
        %v4542 = vmul.f32 %v3170, %v4442
        %v4543 = vmul.f32 %v3172, %v4446
        %v4544 = vmul.f32 %v3174, %v4446
        %v4545 = vmul.f32 %v3176, %v4446
        %v4546 = vmul.f32 %v3178, %v4446
        %v4547 = vmul.f32 %v3180, %v4446
        %v4548 = vmul.f32 %v3182, %v4446
        %v4549 = vmul.f32 %v3184, %v4446
        %v4550 = vmul.f32 %v3186, %v4446
        %v4551 = vmul.f32 %v3188, %v4446
        %v4552 = vmul.f32 %v3190, %v4446
        %v4553 = vmul.f32 %v3192, %v4446
        %v4554 = vmul.f32 %v3194, %v4446
        %v4555 = vmul.f32 %v3196, %v4446
        %v4556 = vmul.f32 %v3198, %v4446
        %v4557 = vmul.f32 %v3200, %v4446
        %v4558 = vmul.f32 %v3202, %v4446
        %v4559 = vmul.f32 %v3204, %v4450
        %v4560 = vmul.f32 %v3206, %v4450
        %v4561 = vmul.f32 %v3208, %v4450
        %v4562 = vmul.f32 %v3210, %v4450
        %v4563 = vmul.f32 %v3212, %v4450
        %v4564 = vmul.f32 %v3214, %v4450
        %v4565 = vmul.f32 %v3216, %v4450
        %v4566 = vmul.f32 %v3218, %v4450
        %v4567 = vmul.f32 %v3220, %v4450
        %v4568 = vmul.f32 %v3222, %v4450
        %v4569 = vmul.f32 %v3224, %v4450
        %v4570 = vmul.f32 %v3226, %v4450
        %v4571 = vmul.f32 %v3228, %v4450
        %v4572 = vmul.f32 %v3230, %v4450
        %v4573 = vmul.f32 %v3232, %v4450
        %v4574 = vmul.f32 %v3234, %v4450
        %v4575 = vmul.f32 %v3236, %v4454
        %v4576 = vmul.f32 %v3238, %v4454
        %v4577 = vmul.f32 %v3240, %v4454
        %v4578 = vmul.f32 %v3242, %v4454
        %v4579 = vmul.f32 %v3244, %v4454
        %v4580 = vmul.f32 %v3246, %v4454
        %v4581 = vmul.f32 %v3248, %v4454
        %v4582 = vmul.f32 %v3250, %v4454
        %v4583 = vmul.f32 %v3252, %v4454
        %v4584 = vmul.f32 %v3254, %v4454
        %v4585 = vmul.f32 %v3256, %v4454
        %v4586 = vmul.f32 %v3258, %v4454
        %v4587 = vmul.f32 %v3260, %v4454
        %v4588 = vmul.f32 %v3262, %v4454
        %v4589 = vmul.f32 %v3264, %v4454
        %v4590 = vmul.f32 %v3266, %v4454
        %4719 = vset.pattern.permute.xlu0 0
        %4720 = vperm.xlu0 %4719, %v4463
        %v4721 = vpop.permute.xlu0 %4720
        %4722 = vset.pattern.permute.xlu0 0
        %4723 = vperm.xlu0 %4722, %v4464
        %v4724 = vpop.permute.xlu0 %4723
        %4725 = vset.pattern.permute.xlu0 0
        %4726 = vperm.xlu0 %4725, %v4465
        %v4727 = vpop.permute.xlu0 %4726
        %4728 = vset.pattern.permute.xlu0 0
        %4729 = vperm.xlu0 %4728, %v4466
        %v4730 = vpop.permute.xlu0 %4729
        %4731 = vset.pattern.permute.xlu0 0
        %4732 = vperm.xlu0 %4731, %v4467
        %v4733 = vpop.permute.xlu0 %4732
        %4734 = vset.pattern.permute.xlu0 0
        %4735 = vperm.xlu0 %4734, %v4468
        %v4736 = vpop.permute.xlu0 %4735
        %4737 = vset.pattern.permute.xlu0 0
        %4738 = vperm.xlu0 %4737, %v4469
        %v4739 = vpop.permute.xlu0 %4738
        %4740 = vset.pattern.permute.xlu0 0
        %4741 = vperm.xlu0 %4740, %v4470
        %v4742 = vpop.permute.xlu0 %4741
        %4743 = vset.pattern.permute.xlu0 0
        %4744 = vperm.xlu0 %4743, %v4471
        %v4745 = vpop.permute.xlu0 %4744
        %4746 = vset.pattern.permute.xlu0 0
        %4747 = vperm.xlu0 %4746, %v4472
        %v4748 = vpop.permute.xlu0 %4747
        %4749 = vset.pattern.permute.xlu0 0
        %4750 = vperm.xlu0 %4749, %v4473
        %v4751 = vpop.permute.xlu0 %4750
        %4752 = vset.pattern.permute.xlu0 0
        %4753 = vperm.xlu0 %4752, %v4474
        %v4754 = vpop.permute.xlu0 %4753
        %4755 = vset.pattern.permute.xlu0 0
        %4756 = vperm.xlu0 %4755, %v4475
        %v4757 = vpop.permute.xlu0 %4756
        %4758 = vset.pattern.permute.xlu0 0
        %4759 = vperm.xlu0 %4758, %v4476
        %v4760 = vpop.permute.xlu0 %4759
        %4761 = vset.pattern.permute.xlu0 0
        %4762 = vperm.xlu0 %4761, %v4477
        %v4763 = vpop.permute.xlu0 %4762
        %4764 = vset.pattern.permute.xlu0 0
        %4765 = vperm.xlu0 %4764, %v4478
        %v4766 = vpop.permute.xlu0 %4765
        %4767 = vset.pattern.permute.xlu0 0
        %4768 = vperm.xlu0 %4767, %v4479
        %v4769 = vpop.permute.xlu0 %4768
        %4770 = vset.pattern.permute.xlu0 0
        %4771 = vperm.xlu0 %4770, %v4480
        %v4772 = vpop.permute.xlu0 %4771
        %4773 = vset.pattern.permute.xlu0 0
        %4774 = vperm.xlu0 %4773, %v4481
        %v4775 = vpop.permute.xlu0 %4774
        %4776 = vset.pattern.permute.xlu0 0
        %4777 = vperm.xlu0 %4776, %v4482
        %v4778 = vpop.permute.xlu0 %4777
        %4779 = vset.pattern.permute.xlu0 0
        %4780 = vperm.xlu0 %4779, %v4483
        %v4781 = vpop.permute.xlu0 %4780
        %4782 = vset.pattern.permute.xlu0 0
        %4783 = vperm.xlu0 %4782, %v4484
        %v4784 = vpop.permute.xlu0 %4783
        %4785 = vset.pattern.permute.xlu0 0
        %4786 = vperm.xlu0 %4785, %v4485
        %v4787 = vpop.permute.xlu0 %4786
        %4788 = vset.pattern.permute.xlu0 0
        %4789 = vperm.xlu0 %4788, %v4486
        %v4790 = vpop.permute.xlu0 %4789
        %4791 = vset.pattern.permute.xlu0 0
        %4792 = vperm.xlu0 %4791, %v4487
        %v4793 = vpop.permute.xlu0 %4792
        %4794 = vset.pattern.permute.xlu0 0
        %4795 = vperm.xlu0 %4794, %v4488
        %v4796 = vpop.permute.xlu0 %4795
        %4797 = vset.pattern.permute.xlu0 0
        %4798 = vperm.xlu0 %4797, %v4489
        %v4799 = vpop.permute.xlu0 %4798
        %4800 = vset.pattern.permute.xlu0 0
        %4801 = vperm.xlu0 %4800, %v4490
        %v4802 = vpop.permute.xlu0 %4801
        %4803 = vset.pattern.permute.xlu0 0
        %4804 = vperm.xlu0 %4803, %v4491
        %v4805 = vpop.permute.xlu0 %4804
        %4806 = vset.pattern.permute.xlu0 0
        %4807 = vperm.xlu0 %4806, %v4492
        %v4808 = vpop.permute.xlu0 %4807
        %4809 = vset.pattern.permute.xlu0 0
        %4810 = vperm.xlu0 %4809, %v4493
        %v4811 = vpop.permute.xlu0 %4810
        %4812 = vset.pattern.permute.xlu0 0
        %4813 = vperm.xlu0 %4812, %v4494
        %v4814 = vpop.permute.xlu0 %4813
        %4815 = vset.pattern.permute.xlu0 0
        %4816 = vperm.xlu0 %4815, %v4495
        %v4817 = vpop.permute.xlu0 %4816
        %4818 = vset.pattern.permute.xlu0 0
        %4819 = vperm.xlu0 %4818, %v4496
        %v4820 = vpop.permute.xlu0 %4819
        %4821 = vset.pattern.permute.xlu0 0
        %4822 = vperm.xlu0 %4821, %v4497
        %v4823 = vpop.permute.xlu0 %4822
        %4824 = vset.pattern.permute.xlu0 0
        %4825 = vperm.xlu0 %4824, %v4498
        %v4826 = vpop.permute.xlu0 %4825
        %4827 = vset.pattern.permute.xlu0 0
        %4828 = vperm.xlu0 %4827, %v4499
        %v4829 = vpop.permute.xlu0 %4828
        %4830 = vset.pattern.permute.xlu0 0
        %4831 = vperm.xlu0 %4830, %v4500
        %v4832 = vpop.permute.xlu0 %4831
        %4833 = vset.pattern.permute.xlu0 0
        %4834 = vperm.xlu0 %4833, %v4501
        %v4835 = vpop.permute.xlu0 %4834
        %4836 = vset.pattern.permute.xlu0 0
        %4837 = vperm.xlu0 %4836, %v4502
        %v4838 = vpop.permute.xlu0 %4837
        %4839 = vset.pattern.permute.xlu0 0
        %4840 = vperm.xlu0 %4839, %v4503
        %v4841 = vpop.permute.xlu0 %4840
        %4842 = vset.pattern.permute.xlu0 0
        %4843 = vperm.xlu0 %4842, %v4504
        %v4844 = vpop.permute.xlu0 %4843
        %4845 = vset.pattern.permute.xlu0 0
        %4846 = vperm.xlu0 %4845, %v4505
        %v4847 = vpop.permute.xlu0 %4846
        %4848 = vset.pattern.permute.xlu0 0
        %4849 = vperm.xlu0 %4848, %v4506
        %v4850 = vpop.permute.xlu0 %4849
        %4851 = vset.pattern.permute.xlu0 0
        %4852 = vperm.xlu0 %4851, %v4507
        %v4853 = vpop.permute.xlu0 %4852
        %4854 = vset.pattern.permute.xlu0 0
        %4855 = vperm.xlu0 %4854, %v4508
        %v4856 = vpop.permute.xlu0 %4855
        %4857 = vset.pattern.permute.xlu0 0
        %4858 = vperm.xlu0 %4857, %v4509
        %v4859 = vpop.permute.xlu0 %4858
        %4860 = vset.pattern.permute.xlu0 0
        %4861 = vperm.xlu0 %4860, %v4510
        %v4862 = vpop.permute.xlu0 %4861
        %4863 = vset.pattern.permute.xlu0 0
        %4864 = vperm.xlu0 %4863, %v4511
        %v4865 = vpop.permute.xlu0 %4864
        %4866 = vset.pattern.permute.xlu0 0
        %4867 = vperm.xlu0 %4866, %v4512
        %v4868 = vpop.permute.xlu0 %4867
        %4869 = vset.pattern.permute.xlu0 0
        %4870 = vperm.xlu0 %4869, %v4513
        %v4871 = vpop.permute.xlu0 %4870
        %4872 = vset.pattern.permute.xlu0 0
        %4873 = vperm.xlu0 %4872, %v4514
        %v4874 = vpop.permute.xlu0 %4873
        %4875 = vset.pattern.permute.xlu0 0
        %4876 = vperm.xlu0 %4875, %v4515
        %v4877 = vpop.permute.xlu0 %4876
        %4878 = vset.pattern.permute.xlu0 0
        %4879 = vperm.xlu0 %4878, %v4516
        %v4880 = vpop.permute.xlu0 %4879
        %4881 = vset.pattern.permute.xlu0 0
        %4882 = vperm.xlu0 %4881, %v4517
        %v4883 = vpop.permute.xlu0 %4882
        %4884 = vset.pattern.permute.xlu0 0
        %4885 = vperm.xlu0 %4884, %v4518
        %v4886 = vpop.permute.xlu0 %4885
        %4887 = vset.pattern.permute.xlu0 0
        %4888 = vperm.xlu0 %4887, %v4519
        %v4889 = vpop.permute.xlu0 %4888
        %4890 = vset.pattern.permute.xlu0 0
        %4891 = vperm.xlu0 %4890, %v4520
        %v4892 = vpop.permute.xlu0 %4891
        %4893 = vset.pattern.permute.xlu0 0
        %4894 = vperm.xlu0 %4893, %v4521
        %v4895 = vpop.permute.xlu0 %4894
        %4896 = vset.pattern.permute.xlu0 0
        %4897 = vperm.xlu0 %4896, %v4522
        %v4898 = vpop.permute.xlu0 %4897
        %4899 = vset.pattern.permute.xlu0 0
        %4900 = vperm.xlu0 %4899, %v4523
        %v4901 = vpop.permute.xlu0 %4900
        %4902 = vset.pattern.permute.xlu0 0
        %4903 = vperm.xlu0 %4902, %v4524
        %v4904 = vpop.permute.xlu0 %4903
        %4905 = vset.pattern.permute.xlu0 0
        %4906 = vperm.xlu0 %4905, %v4525
        %v4907 = vpop.permute.xlu0 %4906
        %4908 = vset.pattern.permute.xlu0 0
        %4909 = vperm.xlu0 %4908, %v4526
        %v4910 = vpop.permute.xlu0 %4909
        %4911 = vset.pattern.permute.xlu0 0
        %4912 = vperm.xlu0 %4911, %v4527
        %v4913 = vpop.permute.xlu0 %4912
        %4914 = vset.pattern.permute.xlu0 0
        %4915 = vperm.xlu0 %4914, %v4528
        %v4916 = vpop.permute.xlu0 %4915
        %4917 = vset.pattern.permute.xlu0 0
        %4918 = vperm.xlu0 %4917, %v4529
        %v4919 = vpop.permute.xlu0 %4918
        %4920 = vset.pattern.permute.xlu0 0
        %4921 = vperm.xlu0 %4920, %v4530
        %v4922 = vpop.permute.xlu0 %4921
        %4923 = vset.pattern.permute.xlu0 0
        %4924 = vperm.xlu0 %4923, %v4531
        %v4925 = vpop.permute.xlu0 %4924
        %4926 = vset.pattern.permute.xlu0 0
        %4927 = vperm.xlu0 %4926, %v4532
        %v4928 = vpop.permute.xlu0 %4927
        %4929 = vset.pattern.permute.xlu0 0
        %4930 = vperm.xlu0 %4929, %v4533
        %v4931 = vpop.permute.xlu0 %4930
        %4932 = vset.pattern.permute.xlu0 0
        %4933 = vperm.xlu0 %4932, %v4534
        %v4934 = vpop.permute.xlu0 %4933
        %4935 = vset.pattern.permute.xlu0 0
        %4936 = vperm.xlu0 %4935, %v4535
        %v4937 = vpop.permute.xlu0 %4936
        %4938 = vset.pattern.permute.xlu0 0
        %4939 = vperm.xlu0 %4938, %v4536
        %v4940 = vpop.permute.xlu0 %4939
        %4941 = vset.pattern.permute.xlu0 0
        %4942 = vperm.xlu0 %4941, %v4537
        %v4943 = vpop.permute.xlu0 %4942
        %4944 = vset.pattern.permute.xlu0 0
        %4945 = vperm.xlu0 %4944, %v4538
        %v4946 = vpop.permute.xlu0 %4945
        %4947 = vset.pattern.permute.xlu0 0
        %4948 = vperm.xlu0 %4947, %v4539
        %v4949 = vpop.permute.xlu0 %4948
        %4950 = vset.pattern.permute.xlu0 0
        %4951 = vperm.xlu0 %4950, %v4540
        %v4952 = vpop.permute.xlu0 %4951
        %4953 = vset.pattern.permute.xlu0 0
        %4954 = vperm.xlu0 %4953, %v4541
        %v4955 = vpop.permute.xlu0 %4954
        %4956 = vset.pattern.permute.xlu0 0
        %4957 = vperm.xlu0 %4956, %v4542
        %v4958 = vpop.permute.xlu0 %4957
        %4959 = vset.pattern.permute.xlu0 0
        %4960 = vperm.xlu0 %4959, %v4543
        %v4961 = vpop.permute.xlu0 %4960
        %4962 = vset.pattern.permute.xlu0 0
        %4963 = vperm.xlu0 %4962, %v4544
        %v4964 = vpop.permute.xlu0 %4963
        %4965 = vset.pattern.permute.xlu0 0
        %4966 = vperm.xlu0 %4965, %v4545
        %v4967 = vpop.permute.xlu0 %4966
        %4968 = vset.pattern.permute.xlu0 0
        %4969 = vperm.xlu0 %4968, %v4546
        %v4970 = vpop.permute.xlu0 %4969
        %4971 = vset.pattern.permute.xlu0 0
        %4972 = vperm.xlu0 %4971, %v4547
        %v4973 = vpop.permute.xlu0 %4972
        %4974 = vset.pattern.permute.xlu0 0
        %4975 = vperm.xlu0 %4974, %v4548
        %v4976 = vpop.permute.xlu0 %4975
        %4977 = vset.pattern.permute.xlu0 0
        %4978 = vperm.xlu0 %4977, %v4549
        %v4979 = vpop.permute.xlu0 %4978
        %4980 = vset.pattern.permute.xlu0 0
        %4981 = vperm.xlu0 %4980, %v4550
        %v4982 = vpop.permute.xlu0 %4981
        %4983 = vset.pattern.permute.xlu0 0
        %4984 = vperm.xlu0 %4983, %v4551
        %v4985 = vpop.permute.xlu0 %4984
        %4986 = vset.pattern.permute.xlu0 0
        %4987 = vperm.xlu0 %4986, %v4552
        %v4988 = vpop.permute.xlu0 %4987
        %4989 = vset.pattern.permute.xlu0 0
        %4990 = vperm.xlu0 %4989, %v4553
        %v4991 = vpop.permute.xlu0 %4990
        %4992 = vset.pattern.permute.xlu0 0
        %4993 = vperm.xlu0 %4992, %v4554
        %v4994 = vpop.permute.xlu0 %4993
        %4995 = vset.pattern.permute.xlu0 0
        %4996 = vperm.xlu0 %4995, %v4555
        %v4997 = vpop.permute.xlu0 %4996
        %4998 = vset.pattern.permute.xlu0 0
        %4999 = vperm.xlu0 %4998, %v4556
        %v5000 = vpop.permute.xlu0 %4999
        %5001 = vset.pattern.permute.xlu0 0
        %5002 = vperm.xlu0 %5001, %v4557
        %v5003 = vpop.permute.xlu0 %5002
        %5004 = vset.pattern.permute.xlu0 0
        %5005 = vperm.xlu0 %5004, %v4558
        %v5006 = vpop.permute.xlu0 %5005
        %5007 = vset.pattern.permute.xlu0 0
        %5008 = vperm.xlu0 %5007, %v4559
        %v5009 = vpop.permute.xlu0 %5008
        %5010 = vset.pattern.permute.xlu0 0
        %5011 = vperm.xlu0 %5010, %v4560
        %v5012 = vpop.permute.xlu0 %5011
        %5013 = vset.pattern.permute.xlu0 0
        %5014 = vperm.xlu0 %5013, %v4561
        %v5015 = vpop.permute.xlu0 %5014
        %5016 = vset.pattern.permute.xlu0 0
        %5017 = vperm.xlu0 %5016, %v4562
        %v5018 = vpop.permute.xlu0 %5017
        %5019 = vset.pattern.permute.xlu0 0
        %5020 = vperm.xlu0 %5019, %v4563
        %v5021 = vpop.permute.xlu0 %5020
        %5022 = vset.pattern.permute.xlu0 0
        %5023 = vperm.xlu0 %5022, %v4564
        %v5024 = vpop.permute.xlu0 %5023
        %5025 = vset.pattern.permute.xlu0 0
        %5026 = vperm.xlu0 %5025, %v4565
        %v5027 = vpop.permute.xlu0 %5026
        %5028 = vset.pattern.permute.xlu0 0
        %5029 = vperm.xlu0 %5028, %v4566
        %v5030 = vpop.permute.xlu0 %5029
        %5031 = vset.pattern.permute.xlu0 0
        %5032 = vperm.xlu0 %5031, %v4567
        %v5033 = vpop.permute.xlu0 %5032
        %5034 = vset.pattern.permute.xlu0 0
        %5035 = vperm.xlu0 %5034, %v4568
        %v5036 = vpop.permute.xlu0 %5035
        %5037 = vset.pattern.permute.xlu0 0
        %5038 = vperm.xlu0 %5037, %v4569
        %v5039 = vpop.permute.xlu0 %5038
        %5040 = vset.pattern.permute.xlu0 0
        %5041 = vperm.xlu0 %5040, %v4570
        %v5042 = vpop.permute.xlu0 %5041
        %5043 = vset.pattern.permute.xlu0 0
        %5044 = vperm.xlu0 %5043, %v4571
        %v5045 = vpop.permute.xlu0 %5044
        %5046 = vset.pattern.permute.xlu0 0
        %5047 = vperm.xlu0 %5046, %v4572
        %v5048 = vpop.permute.xlu0 %5047
        %5049 = vset.pattern.permute.xlu0 0
        %5050 = vperm.xlu0 %5049, %v4573
        %v5051 = vpop.permute.xlu0 %5050
        %5052 = vset.pattern.permute.xlu0 0
        %5053 = vperm.xlu0 %5052, %v4574
        %v5054 = vpop.permute.xlu0 %5053
        %5055 = vset.pattern.permute.xlu0 0
        %5056 = vperm.xlu0 %5055, %v4575
        %v5057 = vpop.permute.xlu0 %5056
        %5058 = vset.pattern.permute.xlu0 0
        %5059 = vperm.xlu0 %5058, %v4576
        %v5060 = vpop.permute.xlu0 %5059
        %5061 = vset.pattern.permute.xlu0 0
        %5062 = vperm.xlu0 %5061, %v4577
        %v5063 = vpop.permute.xlu0 %5062
        %5064 = vset.pattern.permute.xlu0 0
        %5065 = vperm.xlu0 %5064, %v4578
        %v5066 = vpop.permute.xlu0 %5065
        %5067 = vset.pattern.permute.xlu0 0
        %5068 = vperm.xlu0 %5067, %v4579
        %v5069 = vpop.permute.xlu0 %5068
        %5070 = vset.pattern.permute.xlu0 0
        %5071 = vperm.xlu0 %5070, %v4580
        %v5072 = vpop.permute.xlu0 %5071
        %5073 = vset.pattern.permute.xlu0 0
        %5074 = vperm.xlu0 %5073, %v4581
        %v5075 = vpop.permute.xlu0 %5074
        %5076 = vset.pattern.permute.xlu0 0
        %5077 = vperm.xlu0 %5076, %v4582
        %v5078 = vpop.permute.xlu0 %5077
        %5079 = vset.pattern.permute.xlu0 0
        %5080 = vperm.xlu0 %5079, %v4583
        %v5081 = vpop.permute.xlu0 %5080
        %5082 = vset.pattern.permute.xlu0 0
        %5083 = vperm.xlu0 %5082, %v4584
        %v5084 = vpop.permute.xlu0 %5083
        %5085 = vset.pattern.permute.xlu0 0
        %5086 = vperm.xlu0 %5085, %v4585
        %v5087 = vpop.permute.xlu0 %5086
        %5088 = vset.pattern.permute.xlu0 0
        %5089 = vperm.xlu0 %5088, %v4586
        %v5090 = vpop.permute.xlu0 %5089
        %5091 = vset.pattern.permute.xlu0 0
        %5092 = vperm.xlu0 %5091, %v4587
        %v5093 = vpop.permute.xlu0 %5092
        %5094 = vset.pattern.permute.xlu0 0
        %5095 = vperm.xlu0 %5094, %v4588
        %v5096 = vpop.permute.xlu0 %5095
        %5097 = vset.pattern.permute.xlu0 0
        %5098 = vperm.xlu0 %5097, %v4589
        %v5099 = vpop.permute.xlu0 %5098
        %5100 = vset.pattern.permute.xlu0 0
        %5101 = vperm.xlu0 %5100, %v4590
        %v5102 = vpop.permute.xlu0 %5101
        %v5103 = vlaneseq
        %v5104 = vshrl.u32 %v5103, 7
        %v5105 = vsub.s32 %v2162, %v5104
        %v5106 = vrot.slane %v4721, %v5105
        %v5107 = vlaneseq
        %v5108 = vshrl.u32 %v5107, 7
        %v5109 = vsub.s32 %v2167, %v5108
        %v5110 = vrot.slane %v4724, %v5109
        %v5111 = vsel %vm2172, %v5110, %v5106
        %v5112 = vlaneseq
        %v5113 = vshrl.u32 %v5112, 7
        %v5114 = vsub.s32 %v2174, %v5113
        %v5115 = vrot.slane %v4727, %v5114
        %v5116 = vsel %vm2179, %v5115, %v5111
        %v5117 = vlaneseq
        %v5118 = vshrl.u32 %v5117, 7
        %v5119 = vsub.s32 %v2181, %v5118
        %v5120 = vrot.slane %v4730, %v5119
        %v5121 = vsel %vm2186, %v5120, %v5116
        %v5122 = vlaneseq
        %v5123 = vshrl.u32 %v5122, 7
        %v5124 = vsub.s32 %v2188, %v5123
        %v5125 = vrot.slane %v4733, %v5124
        %v5126 = vsel %vm2193, %v5125, %v5121
        %v5127 = vlaneseq
        %v5128 = vshrl.u32 %v5127, 7
        %v5129 = vsub.s32 %v2195, %v5128
        %v5130 = vrot.slane %v4736, %v5129
        %v5131 = vsel %vm2200, %v5130, %v5126
        %v5132 = vlaneseq
        %v5133 = vshrl.u32 %v5132, 7
        %v5134 = vsub.s32 %v2202, %v5133
        %v5135 = vrot.slane %v4739, %v5134
        %v5136 = vsel %vm2207, %v5135, %v5131
        %v5137 = vlaneseq
        %v5138 = vshrl.u32 %v5137, 7
        %v5139 = vsub.s32 %v2209, %v5138
        %v5140 = vrot.slane %v4742, %v5139
        %v5141 = vsel %vm2214, %v5140, %v5136
        %v5142 = vlaneseq
        %v5143 = vshrl.u32 %v5142, 7
        %v5144 = vsub.s32 %v2216, %v5143
        %v5145 = vrot.slane %v4745, %v5144
        %v5146 = vsel %vm2221, %v5145, %v5141
        %v5147 = vlaneseq
        %v5148 = vshrl.u32 %v5147, 7
        %v5149 = vsub.s32 %v2223, %v5148
        %v5150 = vrot.slane %v4748, %v5149
        %v5151 = vsel %vm2228, %v5150, %v5146
        %v5152 = vlaneseq
        %v5153 = vshrl.u32 %v5152, 7
        %v5154 = vsub.s32 %v2230, %v5153
        %v5155 = vrot.slane %v4751, %v5154
        %v5156 = vsel %vm2235, %v5155, %v5151
        %v5157 = vlaneseq
        %v5158 = vshrl.u32 %v5157, 7
        %v5159 = vsub.s32 %v2237, %v5158
        %v5160 = vrot.slane %v4754, %v5159
        %v5161 = vsel %vm2242, %v5160, %v5156
        %v5162 = vlaneseq
        %v5163 = vshrl.u32 %v5162, 7
        %v5164 = vsub.s32 %v2244, %v5163
        %v5165 = vrot.slane %v4757, %v5164
        %v5166 = vsel %vm2249, %v5165, %v5161
        %v5167 = vlaneseq
        %v5168 = vshrl.u32 %v5167, 7
        %v5169 = vsub.s32 %v2251, %v5168
        %v5170 = vrot.slane %v4760, %v5169
        %v5171 = vsel %vm2256, %v5170, %v5166
        %v5172 = vlaneseq
        %v5173 = vshrl.u32 %v5172, 7
        %v5174 = vsub.s32 %v2258, %v5173
        %v5175 = vrot.slane %v4763, %v5174
        %v5176 = vsel %vm2263, %v5175, %v5171
        %v5177 = vlaneseq
        %v5178 = vshrl.u32 %v5177, 7
        %v5179 = vsub.s32 %v2265, %v5178
        %v5180 = vrot.slane %v4766, %v5179
        %v5181 = vsel %vm2270, %v5180, %v5176
        %v5182 = vlaneseq
        %v5183 = vshrl.u32 %v5182, 7
        %v5184 = vsub.s32 %v2162, %v5183
        %v5185 = vrot.slane %v4769, %v5184
        %v5186 = vlaneseq
        %v5187 = vshrl.u32 %v5186, 7
        %v5188 = vsub.s32 %v2167, %v5187
        %v5189 = vrot.slane %v4772, %v5188
        %v5190 = vsel %vm2172, %v5189, %v5185
        %v5191 = vlaneseq
        %v5192 = vshrl.u32 %v5191, 7
        %v5193 = vsub.s32 %v2174, %v5192
        %v5194 = vrot.slane %v4775, %v5193
        %v5195 = vsel %vm2179, %v5194, %v5190
        %v5196 = vlaneseq
        %v5197 = vshrl.u32 %v5196, 7
        %v5198 = vsub.s32 %v2181, %v5197
        %v5199 = vrot.slane %v4778, %v5198
        %v5200 = vsel %vm2186, %v5199, %v5195
        %v5201 = vlaneseq
        %v5202 = vshrl.u32 %v5201, 7
        %v5203 = vsub.s32 %v2188, %v5202
        %v5204 = vrot.slane %v4781, %v5203
        %v5205 = vsel %vm2193, %v5204, %v5200
        %v5206 = vlaneseq
        %v5207 = vshrl.u32 %v5206, 7
        %v5208 = vsub.s32 %v2195, %v5207
        %v5209 = vrot.slane %v4784, %v5208
        %v5210 = vsel %vm2200, %v5209, %v5205
        %v5211 = vlaneseq
        %v5212 = vshrl.u32 %v5211, 7
        %v5213 = vsub.s32 %v2202, %v5212
        %v5214 = vrot.slane %v4787, %v5213
        %v5215 = vsel %vm2207, %v5214, %v5210
        %v5216 = vlaneseq
        %v5217 = vshrl.u32 %v5216, 7
        %v5218 = vsub.s32 %v2209, %v5217
        %v5219 = vrot.slane %v4790, %v5218
        %v5220 = vsel %vm2214, %v5219, %v5215
        %v5221 = vlaneseq
        %v5222 = vshrl.u32 %v5221, 7
        %v5223 = vsub.s32 %v2216, %v5222
        %v5224 = vrot.slane %v4793, %v5223
        %v5225 = vsel %vm2221, %v5224, %v5220
        %v5226 = vlaneseq
        %v5227 = vshrl.u32 %v5226, 7
        %v5228 = vsub.s32 %v2223, %v5227
        %v5229 = vrot.slane %v4796, %v5228
        %v5230 = vsel %vm2228, %v5229, %v5225
        %v5231 = vlaneseq
        %v5232 = vshrl.u32 %v5231, 7
        %v5233 = vsub.s32 %v2230, %v5232
        %v5234 = vrot.slane %v4799, %v5233
        %v5235 = vsel %vm2235, %v5234, %v5230
        %v5236 = vlaneseq
        %v5237 = vshrl.u32 %v5236, 7
        %v5238 = vsub.s32 %v2237, %v5237
        %v5239 = vrot.slane %v4802, %v5238
        %v5240 = vsel %vm2242, %v5239, %v5235
        %v5241 = vlaneseq
        %v5242 = vshrl.u32 %v5241, 7
        %v5243 = vsub.s32 %v2244, %v5242
        %v5244 = vrot.slane %v4805, %v5243
        %v5245 = vsel %vm2249, %v5244, %v5240
        %v5246 = vlaneseq
        %v5247 = vshrl.u32 %v5246, 7
        %v5248 = vsub.s32 %v2251, %v5247
        %v5249 = vrot.slane %v4808, %v5248
        %v5250 = vsel %vm2256, %v5249, %v5245
        %v5251 = vlaneseq
        %v5252 = vshrl.u32 %v5251, 7
        %v5253 = vsub.s32 %v2258, %v5252
        %v5254 = vrot.slane %v4811, %v5253
        %v5255 = vsel %vm2263, %v5254, %v5250
        %v5256 = vlaneseq
        %v5257 = vshrl.u32 %v5256, 7
        %v5258 = vsub.s32 %v2265, %v5257
        %v5259 = vrot.slane %v4814, %v5258
        %v5260 = vsel %vm2270, %v5259, %v5255
        %v5261 = vlaneseq
        %v5262 = vshrl.u32 %v5261, 7
        %v5263 = vsub.s32 %v2162, %v5262
        %v5264 = vrot.slane %v4817, %v5263
        %v5265 = vlaneseq
        %v5266 = vshrl.u32 %v5265, 7
        %v5267 = vsub.s32 %v2167, %v5266
        %v5268 = vrot.slane %v4820, %v5267
        %v5269 = vsel %vm2172, %v5268, %v5264
        %v5270 = vlaneseq
        %v5271 = vshrl.u32 %v5270, 7
        %v5272 = vsub.s32 %v2174, %v5271
        %v5273 = vrot.slane %v4823, %v5272
        %v5274 = vsel %vm2179, %v5273, %v5269
        %v5275 = vlaneseq
        %v5276 = vshrl.u32 %v5275, 7
        %v5277 = vsub.s32 %v2181, %v5276
        %v5278 = vrot.slane %v4826, %v5277
        %v5279 = vsel %vm2186, %v5278, %v5274
        %v5280 = vlaneseq
        %v5281 = vshrl.u32 %v5280, 7
        %v5282 = vsub.s32 %v2188, %v5281
        %v5283 = vrot.slane %v4829, %v5282
        %v5284 = vsel %vm2193, %v5283, %v5279
        %v5285 = vlaneseq
        %v5286 = vshrl.u32 %v5285, 7
        %v5287 = vsub.s32 %v2195, %v5286
        %v5288 = vrot.slane %v4832, %v5287
        %v5289 = vsel %vm2200, %v5288, %v5284
        %v5290 = vlaneseq
        %v5291 = vshrl.u32 %v5290, 7
        %v5292 = vsub.s32 %v2202, %v5291
        %v5293 = vrot.slane %v4835, %v5292
        %v5294 = vsel %vm2207, %v5293, %v5289
        %v5295 = vlaneseq
        %v5296 = vshrl.u32 %v5295, 7
        %v5297 = vsub.s32 %v2209, %v5296
        %v5298 = vrot.slane %v4838, %v5297
        %v5299 = vsel %vm2214, %v5298, %v5294
        %v5300 = vlaneseq
        %v5301 = vshrl.u32 %v5300, 7
        %v5302 = vsub.s32 %v2216, %v5301
        %v5303 = vrot.slane %v4841, %v5302
        %v5304 = vsel %vm2221, %v5303, %v5299
        %v5305 = vlaneseq
        %v5306 = vshrl.u32 %v5305, 7
        %v5307 = vsub.s32 %v2223, %v5306
        %v5308 = vrot.slane %v4844, %v5307
        %v5309 = vsel %vm2228, %v5308, %v5304
        %v5310 = vlaneseq
        %v5311 = vshrl.u32 %v5310, 7
        %v5312 = vsub.s32 %v2230, %v5311
        %v5313 = vrot.slane %v4847, %v5312
        %v5314 = vsel %vm2235, %v5313, %v5309
        %v5315 = vlaneseq
        %v5316 = vshrl.u32 %v5315, 7
        %v5317 = vsub.s32 %v2237, %v5316
        %v5318 = vrot.slane %v4850, %v5317
        %v5319 = vsel %vm2242, %v5318, %v5314
        %v5320 = vlaneseq
        %v5321 = vshrl.u32 %v5320, 7
        %v5322 = vsub.s32 %v2244, %v5321
        %v5323 = vrot.slane %v4853, %v5322
        %v5324 = vsel %vm2249, %v5323, %v5319
        %v5325 = vlaneseq
        %v5326 = vshrl.u32 %v5325, 7
        %v5327 = vsub.s32 %v2251, %v5326
        %v5328 = vrot.slane %v4856, %v5327
        %v5329 = vsel %vm2256, %v5328, %v5324
        %v5330 = vlaneseq
        %v5331 = vshrl.u32 %v5330, 7
        %v5332 = vsub.s32 %v2258, %v5331
        %v5333 = vrot.slane %v4859, %v5332
        %v5334 = vsel %vm2263, %v5333, %v5329
        %v5335 = vlaneseq
        %v5336 = vshrl.u32 %v5335, 7
        %v5337 = vsub.s32 %v2265, %v5336
        %v5338 = vrot.slane %v4862, %v5337
        %v5339 = vsel %vm2270, %v5338, %v5334
        %v5340 = vlaneseq
        %v5341 = vshrl.u32 %v5340, 7
        %v5342 = vsub.s32 %v2162, %v5341
        %v5343 = vrot.slane %v4865, %v5342
        %v5344 = vlaneseq
        %v5345 = vshrl.u32 %v5344, 7
        %v5346 = vsub.s32 %v2167, %v5345
        %v5347 = vrot.slane %v4868, %v5346
        %v5348 = vsel %vm2172, %v5347, %v5343
        %v5349 = vlaneseq
        %v5350 = vshrl.u32 %v5349, 7
        %v5351 = vsub.s32 %v2174, %v5350
        %v5352 = vrot.slane %v4871, %v5351
        %v5353 = vsel %vm2179, %v5352, %v5348
        %v5354 = vlaneseq
        %v5355 = vshrl.u32 %v5354, 7
        %v5356 = vsub.s32 %v2181, %v5355
        %v5357 = vrot.slane %v4874, %v5356
        %v5358 = vsel %vm2186, %v5357, %v5353
        %v5359 = vlaneseq
        %v5360 = vshrl.u32 %v5359, 7
        %v5361 = vsub.s32 %v2188, %v5360
        %v5362 = vrot.slane %v4877, %v5361
        %v5363 = vsel %vm2193, %v5362, %v5358
        %v5364 = vlaneseq
        %v5365 = vshrl.u32 %v5364, 7
        %v5366 = vsub.s32 %v2195, %v5365
        %v5367 = vrot.slane %v4880, %v5366
        %v5368 = vsel %vm2200, %v5367, %v5363
        %v5369 = vlaneseq
        %v5370 = vshrl.u32 %v5369, 7
        %v5371 = vsub.s32 %v2202, %v5370
        %v5372 = vrot.slane %v4883, %v5371
        %v5373 = vsel %vm2207, %v5372, %v5368
        %v5374 = vlaneseq
        %v5375 = vshrl.u32 %v5374, 7
        %v5376 = vsub.s32 %v2209, %v5375
        %v5377 = vrot.slane %v4886, %v5376
        %v5378 = vsel %vm2214, %v5377, %v5373
        %v5379 = vlaneseq
        %v5380 = vshrl.u32 %v5379, 7
        %v5381 = vsub.s32 %v2216, %v5380
        %v5382 = vrot.slane %v4889, %v5381
        %v5383 = vsel %vm2221, %v5382, %v5378
        %v5384 = vlaneseq
        %v5385 = vshrl.u32 %v5384, 7
        %v5386 = vsub.s32 %v2223, %v5385
        %v5387 = vrot.slane %v4892, %v5386
        %v5388 = vsel %vm2228, %v5387, %v5383
        %v5389 = vlaneseq
        %v5390 = vshrl.u32 %v5389, 7
        %v5391 = vsub.s32 %v2230, %v5390
        %v5392 = vrot.slane %v4895, %v5391
        %v5393 = vsel %vm2235, %v5392, %v5388
        %v5394 = vlaneseq
        %v5395 = vshrl.u32 %v5394, 7
        %v5396 = vsub.s32 %v2237, %v5395
        %v5397 = vrot.slane %v4898, %v5396
        %v5398 = vsel %vm2242, %v5397, %v5393
        %v5399 = vlaneseq
        %v5400 = vshrl.u32 %v5399, 7
        %v5401 = vsub.s32 %v2244, %v5400
        %v5402 = vrot.slane %v4901, %v5401
        %v5403 = vsel %vm2249, %v5402, %v5398
        %v5404 = vlaneseq
        %v5405 = vshrl.u32 %v5404, 7
        %v5406 = vsub.s32 %v2251, %v5405
        %v5407 = vrot.slane %v4904, %v5406
        %v5408 = vsel %vm2256, %v5407, %v5403
        %v5409 = vlaneseq
        %v5410 = vshrl.u32 %v5409, 7
        %v5411 = vsub.s32 %v2258, %v5410
        %v5412 = vrot.slane %v4907, %v5411
        %v5413 = vsel %vm2263, %v5412, %v5408
        %v5414 = vlaneseq
        %v5415 = vshrl.u32 %v5414, 7
        %v5416 = vsub.s32 %v2265, %v5415
        %v5417 = vrot.slane %v4910, %v5416
        %v5418 = vsel %vm2270, %v5417, %v5413
        %v5419 = vlaneseq
        %v5420 = vshrl.u32 %v5419, 7
        %v5421 = vsub.s32 %v2162, %v5420
        %v5422 = vrot.slane %v4913, %v5421
        %v5423 = vlaneseq
        %v5424 = vshrl.u32 %v5423, 7
        %v5425 = vsub.s32 %v2167, %v5424
        %v5426 = vrot.slane %v4916, %v5425
        %v5427 = vsel %vm2172, %v5426, %v5422
        %v5428 = vlaneseq
        %v5429 = vshrl.u32 %v5428, 7
        %v5430 = vsub.s32 %v2174, %v5429
        %v5431 = vrot.slane %v4919, %v5430
        %v5432 = vsel %vm2179, %v5431, %v5427
        %v5433 = vlaneseq
        %v5434 = vshrl.u32 %v5433, 7
        %v5435 = vsub.s32 %v2181, %v5434
        %v5436 = vrot.slane %v4922, %v5435
        %v5437 = vsel %vm2186, %v5436, %v5432
        %v5438 = vlaneseq
        %v5439 = vshrl.u32 %v5438, 7
        %v5440 = vsub.s32 %v2188, %v5439
        %v5441 = vrot.slane %v4925, %v5440
        %v5442 = vsel %vm2193, %v5441, %v5437
        %v5443 = vlaneseq
        %v5444 = vshrl.u32 %v5443, 7
        %v5445 = vsub.s32 %v2195, %v5444
        %v5446 = vrot.slane %v4928, %v5445
        %v5447 = vsel %vm2200, %v5446, %v5442
        %v5448 = vlaneseq
        %v5449 = vshrl.u32 %v5448, 7
        %v5450 = vsub.s32 %v2202, %v5449
        %v5451 = vrot.slane %v4931, %v5450
        %v5452 = vsel %vm2207, %v5451, %v5447
        %v5453 = vlaneseq
        %v5454 = vshrl.u32 %v5453, 7
        %v5455 = vsub.s32 %v2209, %v5454
        %v5456 = vrot.slane %v4934, %v5455
        %v5457 = vsel %vm2214, %v5456, %v5452
        %v5458 = vlaneseq
        %v5459 = vshrl.u32 %v5458, 7
        %v5460 = vsub.s32 %v2216, %v5459
        %v5461 = vrot.slane %v4937, %v5460
        %v5462 = vsel %vm2221, %v5461, %v5457
        %v5463 = vlaneseq
        %v5464 = vshrl.u32 %v5463, 7
        %v5465 = vsub.s32 %v2223, %v5464
        %v5466 = vrot.slane %v4940, %v5465
        %v5467 = vsel %vm2228, %v5466, %v5462
        %v5468 = vlaneseq
        %v5469 = vshrl.u32 %v5468, 7
        %v5470 = vsub.s32 %v2230, %v5469
        %v5471 = vrot.slane %v4943, %v5470
        %v5472 = vsel %vm2235, %v5471, %v5467
        %v5473 = vlaneseq
        %v5474 = vshrl.u32 %v5473, 7
        %v5475 = vsub.s32 %v2237, %v5474
        %v5476 = vrot.slane %v4946, %v5475
        %v5477 = vsel %vm2242, %v5476, %v5472
        %v5478 = vlaneseq
        %v5479 = vshrl.u32 %v5478, 7
        %v5480 = vsub.s32 %v2244, %v5479
        %v5481 = vrot.slane %v4949, %v5480
        %v5482 = vsel %vm2249, %v5481, %v5477
        %v5483 = vlaneseq
        %v5484 = vshrl.u32 %v5483, 7
        %v5485 = vsub.s32 %v2251, %v5484
        %v5486 = vrot.slane %v4952, %v5485
        %v5487 = vsel %vm2256, %v5486, %v5482
        %v5488 = vlaneseq
        %v5489 = vshrl.u32 %v5488, 7
        %v5490 = vsub.s32 %v2258, %v5489
        %v5491 = vrot.slane %v4955, %v5490
        %v5492 = vsel %vm2263, %v5491, %v5487
        %v5493 = vlaneseq
        %v5494 = vshrl.u32 %v5493, 7
        %v5495 = vsub.s32 %v2265, %v5494
        %v5496 = vrot.slane %v4958, %v5495
        %v5497 = vsel %vm2270, %v5496, %v5492
        %v5498 = vlaneseq
        %v5499 = vshrl.u32 %v5498, 7
        %v5500 = vsub.s32 %v2162, %v5499
        %v5501 = vrot.slane %v4961, %v5500
        %v5502 = vlaneseq
        %v5503 = vshrl.u32 %v5502, 7
        %v5504 = vsub.s32 %v2167, %v5503
        %v5505 = vrot.slane %v4964, %v5504
        %v5506 = vsel %vm2172, %v5505, %v5501
        %v5507 = vlaneseq
        %v5508 = vshrl.u32 %v5507, 7
        %v5509 = vsub.s32 %v2174, %v5508
        %v5510 = vrot.slane %v4967, %v5509
        %v5511 = vsel %vm2179, %v5510, %v5506
        %v5512 = vlaneseq
        %v5513 = vshrl.u32 %v5512, 7
        %v5514 = vsub.s32 %v2181, %v5513
        %v5515 = vrot.slane %v4970, %v5514
        %v5516 = vsel %vm2186, %v5515, %v5511
        %v5517 = vlaneseq
        %v5518 = vshrl.u32 %v5517, 7
        %v5519 = vsub.s32 %v2188, %v5518
        %v5520 = vrot.slane %v4973, %v5519
        %v5521 = vsel %vm2193, %v5520, %v5516
        %v5522 = vlaneseq
        %v5523 = vshrl.u32 %v5522, 7
        %v5524 = vsub.s32 %v2195, %v5523
        %v5525 = vrot.slane %v4976, %v5524
        %v5526 = vsel %vm2200, %v5525, %v5521
        %v5527 = vlaneseq
        %v5528 = vshrl.u32 %v5527, 7
        %v5529 = vsub.s32 %v2202, %v5528
        %v5530 = vrot.slane %v4979, %v5529
        %v5531 = vsel %vm2207, %v5530, %v5526
        %v5532 = vlaneseq
        %v5533 = vshrl.u32 %v5532, 7
        %v5534 = vsub.s32 %v2209, %v5533
        %v5535 = vrot.slane %v4982, %v5534
        %v5536 = vsel %vm2214, %v5535, %v5531
        %v5537 = vlaneseq
        %v5538 = vshrl.u32 %v5537, 7
        %v5539 = vsub.s32 %v2216, %v5538
        %v5540 = vrot.slane %v4985, %v5539
        %v5541 = vsel %vm2221, %v5540, %v5536
        %v5542 = vlaneseq
        %v5543 = vshrl.u32 %v5542, 7
        %v5544 = vsub.s32 %v2223, %v5543
        %v5545 = vrot.slane %v4988, %v5544
        %v5546 = vsel %vm2228, %v5545, %v5541
        %v5547 = vlaneseq
        %v5548 = vshrl.u32 %v5547, 7
        %v5549 = vsub.s32 %v2230, %v5548
        %v5550 = vrot.slane %v4991, %v5549
        %v5551 = vsel %vm2235, %v5550, %v5546
        %v5552 = vlaneseq
        %v5553 = vshrl.u32 %v5552, 7
        %v5554 = vsub.s32 %v2237, %v5553
        %v5555 = vrot.slane %v4994, %v5554
        %v5556 = vsel %vm2242, %v5555, %v5551
        %v5557 = vlaneseq
        %v5558 = vshrl.u32 %v5557, 7
        %v5559 = vsub.s32 %v2244, %v5558
        %v5560 = vrot.slane %v4997, %v5559
        %v5561 = vsel %vm2249, %v5560, %v5556
        %v5562 = vlaneseq
        %v5563 = vshrl.u32 %v5562, 7
        %v5564 = vsub.s32 %v2251, %v5563
        %v5565 = vrot.slane %v5000, %v5564
        %v5566 = vsel %vm2256, %v5565, %v5561
        %v5567 = vlaneseq
        %v5568 = vshrl.u32 %v5567, 7
        %v5569 = vsub.s32 %v2258, %v5568
        %v5570 = vrot.slane %v5003, %v5569
        %v5571 = vsel %vm2263, %v5570, %v5566
        %v5572 = vlaneseq
        %v5573 = vshrl.u32 %v5572, 7
        %v5574 = vsub.s32 %v2265, %v5573
        %v5575 = vrot.slane %v5006, %v5574
        %v5576 = vsel %vm2270, %v5575, %v5571
        %v5577 = vlaneseq
        %v5578 = vshrl.u32 %v5577, 7
        %v5579 = vsub.s32 %v2162, %v5578
        %v5580 = vrot.slane %v5009, %v5579
        %v5581 = vlaneseq
        %v5582 = vshrl.u32 %v5581, 7
        %v5583 = vsub.s32 %v2167, %v5582
        %v5584 = vrot.slane %v5012, %v5583
        %v5585 = vsel %vm2172, %v5584, %v5580
        %v5586 = vlaneseq
        %v5587 = vshrl.u32 %v5586, 7
        %v5588 = vsub.s32 %v2174, %v5587
        %v5589 = vrot.slane %v5015, %v5588
        %v5590 = vsel %vm2179, %v5589, %v5585
        %v5591 = vlaneseq
        %v5592 = vshrl.u32 %v5591, 7
        %v5593 = vsub.s32 %v2181, %v5592
        %v5594 = vrot.slane %v5018, %v5593
        %v5595 = vsel %vm2186, %v5594, %v5590
        %v5596 = vlaneseq
        %v5597 = vshrl.u32 %v5596, 7
        %v5598 = vsub.s32 %v2188, %v5597
        %v5599 = vrot.slane %v5021, %v5598
        %v5600 = vsel %vm2193, %v5599, %v5595
        %v5601 = vlaneseq
        %v5602 = vshrl.u32 %v5601, 7
        %v5603 = vsub.s32 %v2195, %v5602
        %v5604 = vrot.slane %v5024, %v5603
        %v5605 = vsel %vm2200, %v5604, %v5600
        %v5606 = vlaneseq
        %v5607 = vshrl.u32 %v5606, 7
        %v5608 = vsub.s32 %v2202, %v5607
        %v5609 = vrot.slane %v5027, %v5608
        %v5610 = vsel %vm2207, %v5609, %v5605
        %v5611 = vlaneseq
        %v5612 = vshrl.u32 %v5611, 7
        %v5613 = vsub.s32 %v2209, %v5612
        %v5614 = vrot.slane %v5030, %v5613
        %v5615 = vsel %vm2214, %v5614, %v5610
        %v5616 = vlaneseq
        %v5617 = vshrl.u32 %v5616, 7
        %v5618 = vsub.s32 %v2216, %v5617
        %v5619 = vrot.slane %v5033, %v5618
        %v5620 = vsel %vm2221, %v5619, %v5615
        %v5621 = vlaneseq
        %v5622 = vshrl.u32 %v5621, 7
        %v5623 = vsub.s32 %v2223, %v5622
        %v5624 = vrot.slane %v5036, %v5623
        %v5625 = vsel %vm2228, %v5624, %v5620
        %v5626 = vlaneseq
        %v5627 = vshrl.u32 %v5626, 7
        %v5628 = vsub.s32 %v2230, %v5627
        %v5629 = vrot.slane %v5039, %v5628
        %v5630 = vsel %vm2235, %v5629, %v5625
        %v5631 = vlaneseq
        %v5632 = vshrl.u32 %v5631, 7
        %v5633 = vsub.s32 %v2237, %v5632
        %v5634 = vrot.slane %v5042, %v5633
        %v5635 = vsel %vm2242, %v5634, %v5630
        %v5636 = vlaneseq
        %v5637 = vshrl.u32 %v5636, 7
        %v5638 = vsub.s32 %v2244, %v5637
        %v5639 = vrot.slane %v5045, %v5638
        %v5640 = vsel %vm2249, %v5639, %v5635
        %v5641 = vlaneseq
        %v5642 = vshrl.u32 %v5641, 7
        %v5643 = vsub.s32 %v2251, %v5642
        %v5644 = vrot.slane %v5048, %v5643
        %v5645 = vsel %vm2256, %v5644, %v5640
        %v5646 = vlaneseq
        %v5647 = vshrl.u32 %v5646, 7
        %v5648 = vsub.s32 %v2258, %v5647
        %v5649 = vrot.slane %v5051, %v5648
        %v5650 = vsel %vm2263, %v5649, %v5645
        %v5651 = vlaneseq
        %v5652 = vshrl.u32 %v5651, 7
        %v5653 = vsub.s32 %v2265, %v5652
        %v5654 = vrot.slane %v5054, %v5653
        %v5655 = vsel %vm2270, %v5654, %v5650
        %v5656 = vlaneseq
        %v5657 = vshrl.u32 %v5656, 7
        %v5658 = vsub.s32 %v2162, %v5657
        %v5659 = vrot.slane %v5057, %v5658
        %v5660 = vlaneseq
        %v5661 = vshrl.u32 %v5660, 7
        %v5662 = vsub.s32 %v2167, %v5661
        %v5663 = vrot.slane %v5060, %v5662
        %v5664 = vsel %vm2172, %v5663, %v5659
        %v5665 = vlaneseq
        %v5666 = vshrl.u32 %v5665, 7
        %v5667 = vsub.s32 %v2174, %v5666
        %v5668 = vrot.slane %v5063, %v5667
        %v5669 = vsel %vm2179, %v5668, %v5664
        %v5670 = vlaneseq
        %v5671 = vshrl.u32 %v5670, 7
        %v5672 = vsub.s32 %v2181, %v5671
        %v5673 = vrot.slane %v5066, %v5672
        %v5674 = vsel %vm2186, %v5673, %v5669
        %v5675 = vlaneseq
        %v5676 = vshrl.u32 %v5675, 7
        %v5677 = vsub.s32 %v2188, %v5676
        %v5678 = vrot.slane %v5069, %v5677
        %v5679 = vsel %vm2193, %v5678, %v5674
        %v5680 = vlaneseq
        %v5681 = vshrl.u32 %v5680, 7
        %v5682 = vsub.s32 %v2195, %v5681
        %v5683 = vrot.slane %v5072, %v5682
        %v5684 = vsel %vm2200, %v5683, %v5679
        %v5685 = vlaneseq
        %v5686 = vshrl.u32 %v5685, 7
        %v5687 = vsub.s32 %v2202, %v5686
        %v5688 = vrot.slane %v5075, %v5687
        %v5689 = vsel %vm2207, %v5688, %v5684
        %v5690 = vlaneseq
        %v5691 = vshrl.u32 %v5690, 7
        %v5692 = vsub.s32 %v2209, %v5691
        %v5693 = vrot.slane %v5078, %v5692
        %v5694 = vsel %vm2214, %v5693, %v5689
        %v5695 = vlaneseq
        %v5696 = vshrl.u32 %v5695, 7
        %v5697 = vsub.s32 %v2216, %v5696
        %v5698 = vrot.slane %v5081, %v5697
        %v5699 = vsel %vm2221, %v5698, %v5694
        %v5700 = vlaneseq
        %v5701 = vshrl.u32 %v5700, 7
        %v5702 = vsub.s32 %v2223, %v5701
        %v5703 = vrot.slane %v5084, %v5702
        %v5704 = vsel %vm2228, %v5703, %v5699
        %v5705 = vlaneseq
        %v5706 = vshrl.u32 %v5705, 7
        %v5707 = vsub.s32 %v2230, %v5706
        %v5708 = vrot.slane %v5087, %v5707
        %v5709 = vsel %vm2235, %v5708, %v5704
        %v5710 = vlaneseq
        %v5711 = vshrl.u32 %v5710, 7
        %v5712 = vsub.s32 %v2237, %v5711
        %v5713 = vrot.slane %v5090, %v5712
        %v5714 = vsel %vm2242, %v5713, %v5709
        %v5715 = vlaneseq
        %v5716 = vshrl.u32 %v5715, 7
        %v5717 = vsub.s32 %v2244, %v5716
        %v5718 = vrot.slane %v5093, %v5717
        %v5719 = vsel %vm2249, %v5718, %v5714
        %v5720 = vlaneseq
        %v5721 = vshrl.u32 %v5720, 7
        %v5722 = vsub.s32 %v2251, %v5721
        %v5723 = vrot.slane %v5096, %v5722
        %v5724 = vsel %vm2256, %v5723, %v5719
        %v5725 = vlaneseq
        %v5726 = vshrl.u32 %v5725, 7
        %v5727 = vsub.s32 %v2258, %v5726
        %v5728 = vrot.slane %v5099, %v5727
        %v5729 = vsel %vm2263, %v5728, %v5724
        %v5730 = vlaneseq
        %v5731 = vshrl.u32 %v5730, 7
        %v5732 = vsub.s32 %v2265, %v5731
        %v5733 = vrot.slane %v5102, %v5732
        %v5734 = vsel %vm2270, %v5733, %v5729
        %v5735 = vsel %vm2825, %v5260, %v5181
        %v5736 = vsel %vm2827, %v5339, %v5735
        %v5737 = vsel %vm2829, %v5418, %v5736
        %v5738 = vsel %vm2831, %v5497, %v5737
        %v5739 = vsel %vm2833, %v5576, %v5738
        %v5740 = vsel %vm2835, %v5655, %v5739
        %v5741 = vsel %vm2837, %v5734, %v5740
        %5743 = vst [vmem:[%s417] sm:$0xff] %v5741
        %s5744 = sand.u32 %s236, 1
        %s5745 = scalar_lea.sflag [#allocation4], %s5744
        %s5746 = sand.u32 %s236, 1
        %s5747 = smul.addr %s5746, 8
        %s5748 = scalar_lea.vmem [#allocation10], %s5747
        // Predicated region
        $region69: #{tpu_custom_call.1} parent=51 // pred_check
          %p5749 = pneg %p246
        $region70: #{tpu_custom_call.1} parent=51 // pred_check_branch
          %5751 = sbr.rel (%p5749) target = $region72
        $region71: #{tpu_custom_call.1} parent=51 // pred_region
          %s5753 = ssub.s32 128, 128
          %5754 = vsyncadd %s5745, %s5753
          %s5755 = sadd.s32 %s34, %s33
          %s5756 = smul.addr %s5755, 128
          %s5757 = scalar_lea.hbm %s8, %s5756
          %s5759 = sshll.u32 %s5748, 4
          %s5760 = int_to_ptr.vmem [resolvable:$true] %s5759
          %5762 = dma.vmem_to_hbm [thread:$0]  %s5760, 128, %s5757, %s5745
        $region72: #{tpu_custom_call.1} parent=51 // pred_fallthru
          _
      $region52: #{tpu_custom_call.1} parent=5 // pred_fallthru
        _
      %p5763 = scmp.le.s32.totalorder 2, %s24
      // Predicated region
      $region73: #{tpu_custom_call.1} parent=5 // pred_check
        %p5764 = pneg %p5763
      $region74: #{tpu_custom_call.1} parent=5 // pred_check_branch
        %5766 = sbr.rel (%p5764) target = $region76
      $region75: #{tpu_custom_call.1} parent=5 // pred_region
        %s5767 = ssub.s32 %s24, 2
        // Predicated region
        $region77: #{tpu_custom_call.1} parent=75 // pred_check
          %p5768 = pneg %p252
        $region78: #{tpu_custom_call.1} parent=75 // pred_check_branch
          %5770 = sbr.rel (%p5768) target = $region80
        $region79: #{tpu_custom_call.1} parent=75 // pred_region
          %s5771 = sand.u32 %s237, 1
          %s5772 = scalar_lea.sflag [#allocation4], %s5771
          %s5773 = sand.u32 %s237, 1
          %s5774 = smul.addr %s5773, 8
          %s5775 = scalar_lea.vmem [#allocation10], %s5774
          %5776 = dma.done %s5772, 128
        $region80: #{tpu_custom_call.1} parent=75 // pred_fallthru
          _
      $region76: #{tpu_custom_call.1} parent=5 // pred_fallthru
        _
    $region6: #{tpu_custom_call.1} parent=1 // loop_footer
      %s28 = sadd.s32 1, %s24
    $region7: #{tpu_custom_call.1} parent=1 // loop_footer_branch
      %23 = sbr.rel target = $region3
    $region8: #{tpu_custom_call.1} parent=1 // loop_exit
      _
    %5777 = vsyncpa [#allocation3], 1
    %s5778 = scalar_lea.sflag [#allocation3], 1
    %5779 = vsyncpa %s5778, 1
    %5780 = vsyncpa [#allocation6], 1
    %s5781 = scalar_lea.sflag [#allocation6], 1
    %5782 = vsyncpa %s5781, 1
    %5783 = vsyncpa [#allocation9], 1
    %5784 = vsyncpa [#allocation4], 1
    %s5785 = scalar_lea.sflag [#allocation4], 1
    %5786 = vsyncpa %s5785, 1

</llo_original>
